<compile_context>
chip_gen: v5e
topology: v5e:2x2
jax: 0.10.0
libtpu: 0.0.40
codegen_flags: <defaults>
</compile_context>

<pallas_src>
import numpy as np
import jax
import jax.numpy as jnp
from jax.experimental import pallas as pl
from jax.experimental.pallas import tpu as pltpu


# -----------------------------------------------------------------------------
# Pallas kernel: one grid step == TB batch elements.
# -----------------------------------------------------------------------------
def _ghostvlad_kernel(x_ref, mask_ref, wc_ref, bc_ref, cent_ref,
                      wfc_ref, bfc_ref, out_ref, vstash_ref):
    TB, N, D = x_ref.shape
    K = cent_ref.shape[0]
    O = out_ref.shape[1]

    x = x_ref[...]                                    # (TB, N, D), f32

    # --- soft assignment: one (TB*N, D) @ (D, K) matmul (1x1 conv over feats) ---
    x2_bf = x.reshape(TB * N, D).astype(jnp.bfloat16)
    a2 = jnp.dot(x2_bf, wc_ref[...],
                 preferred_element_type=jnp.float32) + bc_ref[...]   # (TB*N, K)
    a = a2.reshape(TB, N, K) * mask_ref[...]          # f32, slice mask (TB, N, 1)

    # --- VLAD: vlad[b,k,d] = sum_n a[b,n,k]*x[b,n,d] - (sum_n a[b,n,k])*c[k,d] ---
    dn = (((1,), (1,)), ((0,), (0,)))                 # contract over N, batch TB
    vlad = jax.lax.dot_general(a.astype(jnp.bfloat16), x.astype(jnp.bfloat16),
                               dn, preferred_element_type=jnp.float32)  # (TB,K,D)
    ones_n = jnp.ones((TB, N, 1), jnp.float32)
    s = jax.lax.dot_general(a, ones_n, dn,
                            preferred_element_type=jnp.float32)         # (TB,K,1)
    vlad = vlad - s * cent_ref[...]                   # f32; (K, D) broadcasts

    # --- intra-normalization: L2 over D (F.normalize eps=1e-12) ---
    ss = jnp.sum(vlad * vlad, axis=-1, keepdims=True)
    vlad = vlad * jax.lax.rsqrt(jnp.maximum(ss, 1e-24))

    # --- fc with BN folded: y[b,:] = sum_k vladn[b,k,:] @ W3[k] ---
    # Row b*K + k: the (TB, K, D) -> (TB*K, D) collapse is layout-preserving;
    # the per-k (TB, D) operands are pulled back with sublane-strided ref loads
    # and fed directly to the MXU (no flattened (TB, K*D) copy).
    vstash_ref[...] = vlad.reshape(TB * K, D)
    acc = jnp.zeros((TB, O), jnp.float32)
    for k in range(K):                                # static unroll, K small
        lhs = vstash_ref[pl.ds(k, TB, stride=K), :].astype(jnp.bfloat16)
        acc = acc + jnp.dot(lhs, wfc_ref[k],
                            preferred_element_type=jnp.float32)
    y = acc + bfc_ref[...]                            # (TB, O)

    # --- final L2 normalization over out_dim ---
    ss2 = jnp.sum(y * y, axis=-1, keepdims=True)
    y = y * jax.lax.rsqrt(jnp.maximum(ss2, 1e-24))

    out_ref[...] = y.astype(out_ref.dtype)            # dense (TB, O) store


# -----------------------------------------------------------------------------
# Tiling / VMEM heuristics.
# -----------------------------------------------------------------------------
def _pick_tb(B):
    # Largest sublane-aligned batch tile that still leaves >= 2 grid steps
    # (so the parallel batch axis can shard across both v7x TensorCores);
    # fall back to the whole batch.
    for t in (256, 128, 64, 32, 16, 8):
        if B % t == 0 and B // t >= 2:
            return t
    return B


def _vmem_limit_bytes():
    # ~7/8 of physical VMEM, capped at 100 MiB -> ~56 MiB on v7x (64 MiB
    # physical), 100 MiB on v5e/v6e (128 MiB physical).
    try:
        cap = int(pltpu.get_tpu_info().vmem_capacity_bytes)
    except Exception:
        cap = 64 * 1024 * 1024
    return int(min(cap * 7 // 8, 100 * 1024 * 1024))


# -----------------------------------------------------------------------------
# Wrapper: parameter layout plumbing (BN fold, ghost-cluster drop) + pallas_call.
# -----------------------------------------------------------------------------
def ghostvlad_forward(x, slice_mask, params, *, tb=None):
    B, N, D = x.shape
    K = params["centroids"].shape[0]
    O = params["b_fc"].shape[0]

    if tb is None:
        tb = _pick_tb(B)
    assert B % tb == 0, "batch must be divisible by the per-step tile tb"
    assert tb % 8 == 0 or tb == B, "tb must be a sublane multiple (or the full batch)"

    # ghost clusters are discarded by the forward pass -> keep only first K rows
    wc = params["w_conv"][:K].T.astype(jnp.bfloat16)          # (D, K), bf16 MXU rhs
    bc = params["b_conv"][:K].reshape(1, K).astype(jnp.float32)
    cent = params["centroids"].astype(jnp.float32)            # (K, D), f32 VPU

    # eval-mode BatchNorm folded into the fc weight/bias; weight kept per-cluster
    eps = 1e-5
    s_bn = params["gamma"] / jnp.sqrt(params["rvar"] + eps)            # (O,)
    t_bn = params["beta"] - params["rmean"] * s_bn                     # (O,)
    wfc3 = ((params["w_fc"].T * s_bn[None, :])
            .reshape(K, D, O).astype(jnp.bfloat16))           # (K, D, O), bf16
    bfc = (params["b_fc"] * s_bn + t_bn).reshape(1, O).astype(jnp.float32)

    mask3 = slice_mask.reshape(B, N, 1).astype(jnp.float32)

    # grid-invariant operands: DMA'd once, single-buffered (saves VMEM)
    const = dict(pipeline_mode=pl.Buffered(1))

    out = pl.pallas_call(
        _ghostvlad_kernel,
        out_shape=jax.ShapeDtypeStruct((B, O), jnp.float32),
        grid=(B // tb,),
        in_specs=[
            pl.BlockSpec((tb, N, D), lambda i: (i, 0, 0)),              # x
            pl.BlockSpec((tb, N, 1), lambda i: (i, 0, 0)),              # slice mask
            pl.BlockSpec((D, K), lambda i: (0, 0), **const),            # conv weight^T (bf16)
            pl.BlockSpec((1, K), lambda i: (0, 0), **const),            # conv bias
            pl.BlockSpec((K, D), lambda i: (0, 0), **const),            # centroids
            pl.BlockSpec((K, D, O), lambda i: (0, 0, 0), **const),      # fc weight (BN folded, bf16)
            pl.BlockSpec((1, O), lambda i: (0, 0), **const),            # fc bias (BN folded)
        ],
        out_specs=pl.BlockSpec((tb, O), lambda i: (i, 0)),
        scratch_shapes=[
            pltpu.VMEM((tb * K, D), jnp.float32),                       # vlad stash
        ],
        compiler_params=pltpu.CompilerParams(
            dimension_semantics=("parallel",),
            vmem_limit_bytes=_vmem_limit_bytes()),
    )(x, mask3, wc, bc, cent, wfc3, bfc)

    return out


# -----------------------------------------------------------------------------
# Deterministic parameter init (mirrors GhostVLAD.__init__ / _init_params).
# -----------------------------------------------------------------------------
def init_params(key, num_clusters, num_g_cl, dim, out_dim, alpha):
    k1, k2, k3, k4, k5, k6, k7 = jax.random.split(key, 7)
    init = jax.random.normal(k1, (num_clusters + num_g_cl, dim), jnp.float32)
    init = init / jnp.linalg.norm(init, axis=-1, keepdims=True)

    w_conv = 2.0 * alpha * init                               # (K+G, D)
    b_conv = -alpha * jnp.linalg.norm(init, axis=1)           # (K+G,)
    centroids = init[:num_clusters]                           # (K, D)

    fan_in = num_clusters * dim
    bound = 1.0 / np.sqrt(fan_in)
    w_fc = jax.random.uniform(k2, (out_dim, fan_in), jnp.float32, -bound, bound)
    b_fc = jax.random.uniform(k3, (out_dim,), jnp.float32, -bound, bound)

    # non-trivial (eval-mode) BatchNorm stats so the BN fold is exercised
    gamma = jax.random.uniform(k4, (out_dim,), jnp.float32, 0.5, 1.5)
    beta = 0.1 * jax.random.normal(k5, (out_dim,), jnp.float32)
    rmean = 0.1 * jax.random.normal(k6, (out_dim,), jnp.float32)
    rvar = jax.random.uniform(k7, (out_dim,), jnp.float32, 0.5, 1.5)

    return dict(
        w_conv=w_conv, b_conv=b_conv, centroids=centroids,
        w_fc=w_fc, b_fc=b_fc,
        gamma=gamma, beta=beta, rmean=rmean, rvar=rvar,
    )


# -----------------------------------------------------------------------------
# Pure-JAX reference (mirrors the PyTorch forward) for a correctness check.
# -----------------------------------------------------------------------------
def ghostvlad_reference(x, slice_mask, params):
    B, N, D = x.shape
    K = params["centroids"].shape[0]
    hi = jax.lax.Precision.HIGHEST
    a = jnp.einsum("bnd,kd->bnk", x, params["w_conv"],
                   precision=hi) + params["b_conv"]
    a = a[:, :, :K]
    a = a * slice_mask[:, :, None]
    resid = x[:, :, None, :] - params["centroids"][None, None]          # (B,N,K,D)
    vlad = jnp.sum(resid * a[..., None], axis=1)                         # (B,K,D)
    vlad = vlad / jnp.maximum(
        jnp.linalg.norm(vlad, axis=2, keepdims=True), 1e-12)
    flat = vlad.reshape(B, K * D)
    y = jnp.dot(flat, params["w_fc"].T, precision=hi) + params["b_fc"]
    y = (y - params["rmean"]) / jnp.sqrt(params["rvar"] + 1e-5)
    y = y * params["gamma"] + params["beta"]
    y = y / jnp.maximum(jnp.linalg.norm(y, axis=1, keepdims=True), 1e-12)
    return y


if __name__ == "__main__":
    # Small shapes consistent with the module defaults (dim=128, out_dim=128):
    # B=32 batches, auto tb=16 (grid of 2 steps -> both v7x cores get work),
    # N=8 descriptors, K=8 real clusters + G=2 ghost clusters.
    B, N, D = 32, 8, 128
    K, G, O = 8, 2, 128
    alpha = 1.0

    key = jax.random.PRNGKey(0)
    kx, kp = jax.random.split(key)

    x = jax.random.normal(kx, (B, N, D), jnp.float32)
    lengths = (jnp.arange(B, dtype=jnp.int32) % N) + 1
    slice_mask = (jnp.arange(N)[None, :] < lengths[:, None]).astype(jnp.float32)

    params = init_params(kp, K, G, D, O, alpha)

    out = ghostvlad_forward(x, slice_mask, params)   # tb auto-picked (16)
    out = jax.block_until_ready(out)

    ref = ghostvlad_reference(x, slice_mask, params)
    np.testing.assert_allclose(np.asarray(out), np.asarray(ref),
                               rtol=5e-3, atol=5e-3)

    assert out.shape == (B, O)
    print("KERNEL_OK")
</pallas_src>

<mosaic_0001>
module attributes {stable_mosaic.version = 11 : i64} {
  func.func @_ghostvlad_kernel(%arg0: i32, %arg1: memref<16x8x128xf32, #tpu.memory_space<vmem>>, %arg2: memref<16x8x1xf32, #tpu.memory_space<vmem>>, %arg3: memref<128x8xbf16, #tpu.memory_space<vmem>>, %arg4: memref<1x8xf32, #tpu.memory_space<vmem>>, %arg5: memref<8x128xf32, #tpu.memory_space<vmem>>, %arg6: memref<8x128x128xbf16, #tpu.memory_space<vmem>>, %arg7: memref<1x128xf32, #tpu.memory_space<vmem>>, %arg8: memref<16x128xf32, #tpu.memory_space<vmem>>, %arg9: memref<128x128xf32, #tpu.memory_space<vmem>>) attributes {dimension_semantics = [#tpu.dimension_semantics<parallel>], iteration_bounds = array<i64: 2>, scalar_prefetch = 0 : i64, scratch_operands = 1 : i64, tpu.core_type = #tpu.core_type<tc>, window_params = [{transform_indices = @transform_0, window_bounds = array<i64: 16, 8, 128>}, {transform_indices = @transform_1, window_bounds = array<i64: 16, 8, 1>}, {pipeline_mode = #tpu.pipeline_mode<synchronous>, transform_indices = @transform_2, window_bounds = array<i64: 128, 8>}, {pipeline_mode = #tpu.pipeline_mode<synchronous>, transform_indices = @transform_3, window_bounds = array<i64: 1, 8>}, {pipeline_mode = #tpu.pipeline_mode<synchronous>, transform_indices = @transform_4, window_bounds = array<i64: 8, 128>}, {pipeline_mode = #tpu.pipeline_mode<synchronous>, transform_indices = @transform_5, window_bounds = array<i64: 8, 128, 128>}, {pipeline_mode = #tpu.pipeline_mode<synchronous>, transform_indices = @transform_6, window_bounds = array<i64: 1, 128>}, {transform_indices = @transform_7, window_bounds = array<i64: 16, 128>}]} {
    %c0 = arith.constant 0 : index
    %c0_0 = arith.constant 0 : index
    %c0_1 = arith.constant 0 : index
    %0 = vector.load %arg1[%c0, %c0_0, %c0_1] : memref<16x8x128xf32, #tpu.memory_space<vmem>>, vector<16x8x128xf32>
    %1 = vector.shape_cast %0 : vector<16x8x128xf32> to vector<128x128xf32>
    %2 = arith.truncf %1 : vector<128x128xf32> to vector<128x128xbf16>
    %c0_2 = arith.constant 0 : index
    %c0_3 = arith.constant 0 : index
    %3 = vector.load %arg3[%c0_2, %c0_3] : memref<128x8xbf16, #tpu.memory_space<vmem>>, vector<128x8xbf16>
    %cst = arith.constant dense<0.000000e+00> : vector<128x8xf32>
    %4 = tpu.matmul %2, %3, %cst {dimension_numbers = #tpu.dot_dimension_numbers<[1], [0], [0], [1], [0, 0, 1, 1], [], []>} : vector<128x128xbf16>, vector<128x8xbf16>, vector<128x8xf32> -> vector<128x8xf32>
    %c0_4 = arith.constant 0 : index
    %c0_5 = arith.constant 0 : index
    %5 = vector.load %arg4[%c0_4, %c0_5] : memref<1x8xf32, #tpu.memory_space<vmem>>, vector<1x8xf32>
    %6 = vector.broadcast %5 : vector<1x8xf32> to vector<128x8xf32>
    %7 = arith.addf %4, %6 : vector<128x8xf32>
    %8 = vector.shape_cast %7 : vector<128x8xf32> to vector<16x8x8xf32>
    %c0_6 = arith.constant 0 : index
    %c0_7 = arith.constant 0 : index
    %c0_8 = arith.constant 0 : index
    %9 = vector.load %arg2[%c0_6, %c0_7, %c0_8] : memref<16x8x1xf32, #tpu.memory_space<vmem>>, vector<16x8x1xf32>
    %10 = vector.broadcast %9 : vector<16x8x1xf32> to vector<16x8x8xf32>
    %11 = arith.mulf %8, %10 : vector<16x8x8xf32>
    %12 = arith.truncf %11 : vector<16x8x8xf32> to vector<16x8x8xbf16>
    %13 = arith.truncf %0 : vector<16x8x128xf32> to vector<16x8x128xbf16>
    %cst_9 = arith.constant dense<0.000000e+00> : vector<16x8x128xf32>
    %14 = tpu.matmul %12, %13, %cst_9 {dimension_numbers = #tpu.dot_dimension_numbers<[1], [1], [2], [2], [0, 0, 0, 2, 1, 2], [0], [0]>} : vector<16x8x8xbf16>, vector<16x8x128xbf16>, vector<16x8x128xf32> -> vector<16x8x128xf32>
    %cst_10 = arith.constant 1.000000e+00 : f32
    %15 = vector.broadcast %cst_10 : f32 to vector<16x8x1xf32>
    %cst_11 = arith.constant dense<0.000000e+00> : vector<16x8x1xf32>
    %16 = tpu.matmul %11, %15, %cst_11 {dimension_numbers = #tpu.dot_dimension_numbers<[1], [1], [2], [2], [0, 0, 0, 2, 1, 2], [0], [0]>} : vector<16x8x8xf32>, vector<16x8x1xf32>, vector<16x8x1xf32> -> vector<16x8x1xf32>
    %c0_12 = arith.constant 0 : index
    %c0_13 = arith.constant 0 : index
    %17 = vector.load %arg5[%c0_12, %c0_13] : memref<8x128xf32, #tpu.memory_space<vmem>>, vector<8x128xf32>
    %18 = vector.shape_cast %17 : vector<8x128xf32> to vector<1x8x128xf32>
    %19 = vector.broadcast %16 : vector<16x8x1xf32> to vector<16x8x128xf32>
    %20 = vector.broadcast %18 : vector<1x8x128xf32> to vector<16x8x128xf32>
    %21 = arith.mulf %19, %20 : vector<16x8x128xf32>
    %22 = arith.subf %14, %21 : vector<16x8x128xf32>
    %23 = arith.mulf %22, %22 : vector<16x8x128xf32>
    %cst_14 = arith.constant dense<0.000000e+00> : vector<16x8xf32>
    %24 = vector.multi_reduction <add>, %23, %cst_14 [2] : vector<16x8x128xf32> to vector<16x8xf32>
    %25 = vector.shape_cast %24 : vector<16x8xf32> to vector<16x8x1xf32>
    %cst_15 = arith.constant 1.000000e-24 : f32
    %26 = vector.broadcast %cst_15 : f32 to vector<16x8x1xf32>
    %27 = arith.maximumf %25, %26 : vector<16x8x1xf32>
    %28 = math.rsqrt %27 : vector<16x8x1xf32>
    %29 = vector.broadcast %28 : vector<16x8x1xf32> to vector<16x8x128xf32>
    %30 = arith.mulf %22, %29 : vector<16x8x128xf32>
    %31 = vector.shape_cast %30 : vector<16x8x128xf32> to vector<128x128xf32>
    %c0_16 = arith.constant 0 : index
    %c0_17 = arith.constant 0 : index
    %32 = vector.load %arg9[%c0_16, %c0_17] : memref<128x128xf32, #tpu.memory_space<vmem>>, vector<128x128xf32>
    tpu.vector_store %arg9[%c0_16, %c0_17], %31 {strides = array<i32>} : memref<128x128xf32, #tpu.memory_space<vmem>>, vector<128x128xf32>,
    %cst_18 = arith.constant 0.000000e+00 : f32
    %33 = vector.broadcast %cst_18 : f32 to vector<16x128xf32>
    %c0_19 = arith.constant 0 : index
    %c0_20 = arith.constant 0 : index
    %34 = tpu.strided_load %arg9[%c0_19, %c0_20] {strides = array<i32: 8, 1>} : memref<128x128xf32, #tpu.memory_space<vmem>>, vector<16x128xf32>
    %35 = arith.truncf %34 : vector<16x128xf32> to vector<16x128xbf16>
    %c0_21 = arith.constant 0 : index
    %c0_22 = arith.constant 0 : index
    %c0_23 = arith.constant 0 : index
    %36 = vector.load %arg6[%c0_21, %c0_22, %c0_23] : memref<8x128x128xbf16, #tpu.memory_space<vmem>>, vector<1x128x128xbf16>
    %37 = vector.shape_cast %36 : vector<1x128x128xbf16> to vector<128x128xbf16>
    %cst_24 = arith.constant dense<0.000000e+00> : vector<16x128xf32>
    %38 = tpu.matmul %35, %37, %cst_24 {dimension_numbers = #tpu.dot_dimension_numbers<[1], [0], [0], [1], [0, 0, 1, 1], [], []>} : vector<16x128xbf16>, vector<128x128xbf16>, vector<16x128xf32> -> vector<16x128xf32>
    %39 = arith.addf %33, %38 : vector<16x128xf32>
    %c1 = arith.constant 1 : index
    %c0_25 = arith.constant 0 : index
    %40 = tpu.strided_load %arg9[%c1, %c0_25] {strides = array<i32: 8, 1>} : memref<128x128xf32, #tpu.memory_space<vmem>>, vector<16x128xf32>
    %41 = arith.truncf %40 : vector<16x128xf32> to vector<16x128xbf16>
    %c1_26 = arith.constant 1 : index
    %c0_27 = arith.constant 0 : index
    %c0_28 = arith.constant 0 : index
    %42 = vector.load %arg6[%c1_26, %c0_27, %c0_28] : memref<8x128x128xbf16, #tpu.memory_space<vmem>>, vector<1x128x128xbf16>
    %43 = vector.shape_cast %42 : vector<1x128x128xbf16> to vector<128x128xbf16>
    %cst_29 = arith.constant dense<0.000000e+00> : vector<16x128xf32>
    %44 = tpu.matmul %41, %43, %cst_29 {dimension_numbers = #tpu.dot_dimension_numbers<[1], [0], [0], [1], [0, 0, 1, 1], [], []>} : vector<16x128xbf16>, vector<128x128xbf16>, vector<16x128xf32> -> vector<16x128xf32>
    %45 = arith.addf %39, %44 : vector<16x128xf32>
    %c2 = arith.constant 2 : index
    %c0_30 = arith.constant 0 : index
    %46 = tpu.strided_load %arg9[%c2, %c0_30] {strides = array<i32: 8, 1>} : memref<128x128xf32, #tpu.memory_space<vmem>>, vector<16x128xf32>
    %47 = arith.truncf %46 : vector<16x128xf32> to vector<16x128xbf16>
    %c2_31 = arith.constant 2 : index
    %c0_32 = arith.constant 0 : index
    %c0_33 = arith.constant 0 : index
    %48 = vector.load %arg6[%c2_31, %c0_32, %c0_33] : memref<8x128x128xbf16, #tpu.memory_space<vmem>>, vector<1x128x128xbf16>
    %49 = vector.shape_cast %48 : vector<1x128x128xbf16> to vector<128x128xbf16>
    %cst_34 = arith.constant dense<0.000000e+00> : vector<16x128xf32>
    %50 = tpu.matmul %47, %49, %cst_34 {dimension_numbers = #tpu.dot_dimension_numbers<[1], [0], [0], [1], [0, 0, 1, 1], [], []>} : vector<16x128xbf16>, vector<128x128xbf16>, vector<16x128xf32> -> vector<16x128xf32>
    %51 = arith.addf %45, %50 : vector<16x128xf32>
    %c3 = arith.constant 3 : index
    %c0_35 = arith.constant 0 : index
    %52 = tpu.strided_load %arg9[%c3, %c0_35] {strides = array<i32: 8, 1>} : memref<128x128xf32, #tpu.memory_space<vmem>>, vector<16x128xf32>
    %53 = arith.truncf %52 : vector<16x128xf32> to vector<16x128xbf16>
    %c3_36 = arith.constant 3 : index
    %c0_37 = arith.constant 0 : index
    %c0_38 = arith.constant 0 : index
    %54 = vector.load %arg6[%c3_36, %c0_37, %c0_38] : memref<8x128x128xbf16, #tpu.memory_space<vmem>>, vector<1x128x128xbf16>
    %55 = vector.shape_cast %54 : vector<1x128x128xbf16> to vector<128x128xbf16>
    %cst_39 = arith.constant dense<0.000000e+00> : vector<16x128xf32>
    %56 = tpu.matmul %53, %55, %cst_39 {dimension_numbers = #tpu.dot_dimension_numbers<[1], [0], [0], [1], [0, 0, 1, 1], [], []>} : vector<16x128xbf16>, vector<128x128xbf16>, vector<16x128xf32> -> vector<16x128xf32>
    %57 = arith.addf %51, %56 : vector<16x128xf32>
    %c4 = arith.constant 4 : index
    %c0_40 = arith.constant 0 : index
    %58 = tpu.strided_load %arg9[%c4, %c0_40] {strides = array<i32: 8, 1>} : memref<128x128xf32, #tpu.memory_space<vmem>>, vector<16x128xf32>
    %59 = arith.truncf %58 : vector<16x128xf32> to vector<16x128xbf16>
    %c4_41 = arith.constant 4 : index
    %c0_42 = arith.constant 0 : index
    %c0_43 = arith.constant 0 : index
    %60 = vector.load %arg6[%c4_41, %c0_42, %c0_43] : memref<8x128x128xbf16, #tpu.memory_space<vmem>>, vector<1x128x128xbf16>
    %61 = vector.shape_cast %60 : vector<1x128x128xbf16> to vector<128x128xbf16>
    %cst_44 = arith.constant dense<0.000000e+00> : vector<16x128xf32>
    %62 = tpu.matmul %59, %61, %cst_44 {dimension_numbers = #tpu.dot_dimension_numbers<[1], [0], [0], [1], [0, 0, 1, 1], [], []>} : vector<16x128xbf16>, vector<128x128xbf16>, vector<16x128xf32> -> vector<16x128xf32>
    %63 = arith.addf %57, %62 : vector<16x128xf32>
    %c5 = arith.constant 5 : index
    %c0_45 = arith.constant 0 : index
    %64 = tpu.strided_load %arg9[%c5, %c0_45] {strides = array<i32: 8, 1>} : memref<128x128xf32, #tpu.memory_space<vmem>>, vector<16x128xf32>
    %65 = arith.truncf %64 : vector<16x128xf32> to vector<16x128xbf16>
    %c5_46 = arith.constant 5 : index
    %c0_47 = arith.constant 0 : index
    %c0_48 = arith.constant 0 : index
    %66 = vector.load %arg6[%c5_46, %c0_47, %c0_48] : memref<8x128x128xbf16, #tpu.memory_space<vmem>>, vector<1x128x128xbf16>
    %67 = vector.shape_cast %66 : vector<1x128x128xbf16> to vector<128x128xbf16>
    %cst_49 = arith.constant dense<0.000000e+00> : vector<16x128xf32>
    %68 = tpu.matmul %65, %67, %cst_49 {dimension_numbers = #tpu.dot_dimension_numbers<[1], [0], [0], [1], [0, 0, 1, 1], [], []>} : vector<16x128xbf16>, vector<128x128xbf16>, vector<16x128xf32> -> vector<16x128xf32>
    %69 = arith.addf %63, %68 : vector<16x128xf32>
    %c6 = arith.constant 6 : index
    %c0_50 = arith.constant 0 : index
    %70 = tpu.strided_load %arg9[%c6, %c0_50] {strides = array<i32: 8, 1>} : memref<128x128xf32, #tpu.memory_space<vmem>>, vector<16x128xf32>
    %71 = arith.truncf %70 : vector<16x128xf32> to vector<16x128xbf16>
    %c6_51 = arith.constant 6 : index
    %c0_52 = arith.constant 0 : index
    %c0_53 = arith.constant 0 : index
    %72 = vector.load %arg6[%c6_51, %c0_52, %c0_53] : memref<8x128x128xbf16, #tpu.memory_space<vmem>>, vector<1x128x128xbf16>
    %73 = vector.shape_cast %72 : vector<1x128x128xbf16> to vector<128x128xbf16>
    %cst_54 = arith.constant dense<0.000000e+00> : vector<16x128xf32>
    %74 = tpu.matmul %71, %73, %cst_54 {dimension_numbers = #tpu.dot_dimension_numbers<[1], [0], [0], [1], [0, 0, 1, 1], [], []>} : vector<16x128xbf16>, vector<128x128xbf16>, vector<16x128xf32> -> vector<16x128xf32>
    %75 = arith.addf %69, %74 : vector<16x128xf32>
    %c7 = arith.constant 7 : index
    %c0_55 = arith.constant 0 : index
    %76 = tpu.strided_load %arg9[%c7, %c0_55] {strides = array<i32: 8, 1>} : memref<128x128xf32, #tpu.memory_space<vmem>>, vector<16x128xf32>
    %77 = arith.truncf %76 : vector<16x128xf32> to vector<16x128xbf16>
    %c7_56 = arith.constant 7 : index
    %c0_57 = arith.constant 0 : index
    %c0_58 = arith.constant 0 : index
    %78 = vector.load %arg6[%c7_56, %c0_57, %c0_58] : memref<8x128x128xbf16, #tpu.memory_space<vmem>>, vector<1x128x128xbf16>
    %79 = vector.shape_cast %78 : vector<1x128x128xbf16> to vector<128x128xbf16>
    %cst_59 = arith.constant dense<0.000000e+00> : vector<16x128xf32>
    %80 = tpu.matmul %77, %79, %cst_59 {dimension_numbers = #tpu.dot_dimension_numbers<[1], [0], [0], [1], [0, 0, 1, 1], [], []>} : vector<16x128xbf16>, vector<128x128xbf16>, vector<16x128xf32> -> vector<16x128xf32>
    %81 = arith.addf %75, %80 : vector<16x128xf32>
    %c0_60 = arith.constant 0 : index
    %c0_61 = arith.constant 0 : index
    %82 = vector.load %arg7[%c0_60, %c0_61] : memref<1x128xf32, #tpu.memory_space<vmem>>, vector<1x128xf32>
    %83 = vector.broadcast %82 : vector<1x128xf32> to vector<16x128xf32>
    %84 = arith.addf %81, %83 : vector<16x128xf32>
    %85 = arith.mulf %84, %84 : vector<16x128xf32>
    %cst_62 = arith.constant dense<0.000000e+00> : vector<16xf32>
    %86 = vector.multi_reduction <add>, %85, %cst_62 [1] : vector<16x128xf32> to vector<16xf32>
    %87 = vector.shape_cast %86 : vector<16xf32> to vector<16x1xf32>
    %cst_63 = arith.constant 1.000000e-24 : f32
    %88 = vector.broadcast %cst_63 : f32 to vector<16x1xf32>
    %89 = arith.maximumf %87, %88 : vector<16x1xf32>
    %90 = math.rsqrt %89 : vector<16x1xf32>
    %91 = vector.broadcast %90 : vector<16x1xf32> to vector<16x128xf32>
    %92 = arith.mulf %84, %91 : vector<16x128xf32>
    %c0_64 = arith.constant 0 : index
    %c0_65 = arith.constant 0 : index
    %93 = vector.load %arg8[%c0_64, %c0_65] : memref<16x128xf32, #tpu.memory_space<vmem>>, vector<16x128xf32>
    tpu.vector_store %arg8[%c0_64, %c0_65], %92 {strides = array<i32>} : memref<16x128xf32, #tpu.memory_space<vmem>>, vector<16x128xf32>,
    return
  }
  func.func @transform_0(%arg0: i32) -> (i32, i32, i32) {
    %c0_i32 = arith.constant 0 : i32
    %c0_i32_0 = arith.constant 0 : i32
    %c0_i32_1 = arith.constant 0 : i32
    return %arg0, %c0_i32, %c0_i32_0 : i32, i32, i32
  }
  func.func @transform_1(%arg0: i32) -> (i32, i32, i32) {
    %c0_i32 = arith.constant 0 : i32
    %c0_i32_0 = arith.constant 0 : i32
    %c0_i32_1 = arith.constant 0 : i32
    return %arg0, %c0_i32, %c0_i32_0 : i32, i32, i32
  }
  func.func @transform_2(%arg0: i32) -> (i32, i32) {
    %c0_i32 = arith.constant 0 : i32
    %c0_i32_0 = arith.constant 0 : i32
    %c0_i32_1 = arith.constant 0 : i32
    return %c0_i32, %c0_i32_0 : i32, i32
  }
  func.func @transform_3(%arg0: i32) -> (i32, i32) {
    %c0_i32 = arith.constant 0 : i32
    %c0_i32_0 = arith.constant 0 : i32
    %c0_i32_1 = arith.constant 0 : i32
    return %c0_i32, %c0_i32_0 : i32, i32
  }
  func.func @transform_4(%arg0: i32) -> (i32, i32) {
    %c0_i32 = arith.constant 0 : i32
    %c0_i32_0 = arith.constant 0 : i32
    %c0_i32_1 = arith.constant 0 : i32
    return %c0_i32, %c0_i32_0 : i32, i32
  }
  func.func @transform_5(%arg0: i32) -> (i32, i32, i32) {
    %c0_i32 = arith.constant 0 : i32
    %c0_i32_0 = arith.constant 0 : i32
    %c0_i32_1 = arith.constant 0 : i32
    %c0_i32_2 = arith.constant 0 : i32
    return %c0_i32, %c0_i32_0, %c0_i32_1 : i32, i32, i32
  }
  func.func @transform_6(%arg0: i32) -> (i32, i32) {
    %c0_i32 = arith.constant 0 : i32
    %c0_i32_0 = arith.constant 0 : i32
    %c0_i32_1 = arith.constant 0 : i32
    return %c0_i32, %c0_i32_0 : i32, i32
  }
  func.func @transform_7(%arg0: i32) -> (i32, i32) {
    %c0_i32 = arith.constant 0 : i32
    %c0_i32_0 = arith.constant 0 : i32
    return %arg0, %c0_i32 : i32, i32
  }
}

</mosaic_0001>

<llo_original>
// kernel: tpu_custom_call.1
$region0: #{tpu_custom_call.1}
  #allocation0 [shape = 'u32[]', space=smem, size = 0x4, offset = 0x4, fixed_abs, tag = 'smem constant byte address 0x4 - core index']
  #allocation1 [shape = 'u32[72,128]{1,0:T(1,128)}', space=vmem, size = 0x9000, scoped, tag = 'internal scratch']
  #allocation2 [shape = 'f32[128,128]{1,0:T(8,128)}', space=vmem, size = 0x10000, scoped, tag = 'scratch operand']
  %s0 = inlined_call_operand.vmem [shape: f32[32,8,128], index: 0, kind: input, shape index: {}]
  %s1 = inlined_call_operand.vmem [shape: f32[32,8,1], index: 1, kind: input, shape index: {}]
  %s2 = inlined_call_operand.vmem [shape: bf16[128,8], index: 2, kind: input, shape index: {}]
  %s3 = inlined_call_operand.vmem [shape: f32[1,8], index: 3, kind: input, shape index: {}]
  %s4 = inlined_call_operand.vmem [shape: f32[8,128], index: 4, kind: input, shape index: {}]
  %s5 = inlined_call_operand.hbm [shape: bf16[8,128,128], index: 5, kind: input, shape index: {}]
  %s6 = inlined_call_operand.vmem [shape: f32[1,128], index: 6, kind: input, shape index: {}]
  %s7 = inlined_call_operand.hbm [shape: f32[32,128], index: 7, kind: output, shape index: {}]
  %s8 = sld [smem:[#allocation0]]
  $region65: #{tpu_custom_call.1} parent=0
    _
  %s10 = ssub.s32 1, %s8
  %s11 = scalar_select 0, %s10, %s8
  $region1: #{tpu_custom_call.1} parent=0
    #allocation3 [shape = 'u8[262144]{0}', space=vmem, size = 0x40000, scoped, tag = 'input window, operand 5, single buffered']
    #allocation4 [shape = 's32[2]{0}', space=sflag, size = 0x8, scoped, tag = 'scoped memory for tpu_custom_call.1']
    #allocation5 [shape = 's32[2]{0}', space=sflag, size = 0x8, scoped, tag = 'scoped memory for tpu_custom_call.1']
    #allocation6 [shape = 'u8[16384]{0}', space=vmem, size = 0x4000, scoped, tag = 'output window, operand 0']
    %12 = vsyncpa [#allocation4], 0
    %13 = vsyncpa [#allocation5], 0
    %s14 = scalar_lea.sflag [#allocation5], 1
    %15 = vsyncpa %s14, 0
    loop: start=0, step=1, limit=4
    $region2: #{tpu_custom_call.1} parent=1 // loop_pre_header
      _
    $region3: #{tpu_custom_call.1} parent=1 // loop_header
      %s17 = sphi 0, %s21
      %p18 = scmp.ge.s32.totalorder %s17, 4
      %s27 = sphi 0, %s29
      %s30 = sphi 0, %s27
      %s31 = sphi 0, %s30
      %s47 = sphi 0, %s31
      %s53 = sphi 0, %s55
      %s56 = sphi 0, %s53
      %s57 = sphi 0, %s56
      %s73 = sphi 0, %s57
      %s77 = sphi 0, %s77
      %s79 = sphi 0, %s77
      %s80 = sphi 0, %s79
      %s94 = sphi 0, %s80
      %s98 = sphi 0, %s98
      %s100 = sphi 0, %s98
      %s101 = sphi 0, %s100
      %s115 = sphi 0, %s101
      %s119 = sphi 0, %s119
      %s121 = sphi 0, %s119
      %s122 = sphi 0, %s121
      %s136 = sphi 0, %s122
      %s140 = sphi 0, %s140
      %s142 = sphi 0, %s140
      %s143 = sphi 0, %s142
      %s157 = sphi 0, %s143
      %s161 = sphi 0, %s161
      %s163 = sphi 0, %s161
      %s164 = sphi 0, %s163
      %s178 = sphi 0, %s164
      %s184 = sphi 0, %s186
      %s187 = sphi 0, %s184
      %s188 = sphi 0, %s187
      %s204 = sphi 0, %s188
    $region4: #{tpu_custom_call.1} parent=1 // loop_header_branch
      %20 = sbr.rel (%p18) target = $region8
    $region5: #{tpu_custom_call.1} parent=1 // loop_body
      %s22 = ssub.s32 %s17, 1
      %s23 = ssub.s32 %s17, 2
      %s24 = sadd.s32 %s17, 1
      %s25 = ssub.s32 %s17, %s24
      %p26 = scmp.eq.s32.totalorder %s25, 0
      %s28 = sadd.s32 %s27, 1
      %s29 = scalar_select %p26, %s27, %s28
      %p32 = pneg %p26
      %p33 = scmp.eq.s32.totalorder %s17, 1
      %p34 = por %p32, %p33
      %p35 = scmp.ne.s32.totalorder %s27, %s30
      %p36 = scmp.eq.s32.totalorder %s17, 0
      %p37 = por %p35, %p36
      %p38 = scmp.ne.s32.totalorder %s27, %s30
      %p39 = scmp.eq.s32.totalorder %s22, 1
      %p40 = por %p38, %p39
      %p41 = scmp.ne.s32.totalorder %s30, %s31
      %p42 = scmp.eq.s32.totalorder %s22, 0
      %p43 = por %p41, %p42
      %p44 = scmp.ne.s32.totalorder %s30, %s31
      %p45 = scmp.eq.s32.totalorder %s23, 1
      %p46 = por %p44, %p45
      %p48 = scmp.ne.s32.totalorder %s31, %s47
      %p49 = scmp.eq.s32.totalorder %s23, 0
      %p50 = por %p48, %p49
      %s51 = ssub.s32 %s17, %s24
      %p52 = scmp.eq.s32.totalorder %s51, 0
      %s54 = sadd.s32 %s53, 1
      %s55 = scalar_select %p52, %s53, %s54
      %p58 = pneg %p52
      %p59 = scmp.eq.s32.totalorder %s17, 1
      %p60 = por %p58, %p59
      %p61 = scmp.ne.s32.totalorder %s53, %s56
      %p62 = scmp.eq.s32.totalorder %s17, 0
      %p63 = por %p61, %p62
      %p64 = scmp.ne.s32.totalorder %s53, %s56
      %p65 = scmp.eq.s32.totalorder %s22, 1
      %p66 = por %p64, %p65
      %p67 = scmp.ne.s32.totalorder %s56, %s57
      %p68 = scmp.eq.s32.totalorder %s22, 0
      %p69 = por %p67, %p68
      %p70 = scmp.ne.s32.totalorder %s56, %s57
      %p71 = scmp.eq.s32.totalorder %s23, 1
      %p72 = por %p70, %p71
      %p74 = scmp.ne.s32.totalorder %s57, %s73
      %p75 = scmp.eq.s32.totalorder %s23, 0
      %p76 = por %p74, %p75
      %s78 = sadd.s32 %s77, 1
      %p81 = scmp.eq.s32.totalorder %s17, 1
      %p82 = scmp.ne.s32.totalorder %s77, %s79
      %p83 = scmp.eq.s32.totalorder %s17, 0
      %p84 = por %p82, %p83
      %p85 = scmp.ne.s32.totalorder %s77, %s79
      %p86 = scmp.eq.s32.totalorder %s22, 1
      %p87 = por %p85, %p86
      %p88 = scmp.ne.s32.totalorder %s79, %s80
      %p89 = scmp.eq.s32.totalorder %s22, 0
      %p90 = por %p88, %p89
      %p91 = scmp.ne.s32.totalorder %s79, %s80
      %p92 = scmp.eq.s32.totalorder %s23, 1
      %p93 = por %p91, %p92
      %p95 = scmp.ne.s32.totalorder %s80, %s94
      %p96 = scmp.eq.s32.totalorder %s23, 0
      %p97 = por %p95, %p96
      %s99 = sadd.s32 %s98, 1
      %p102 = scmp.eq.s32.totalorder %s17, 1
      %p103 = scmp.ne.s32.totalorder %s98, %s100
      %p104 = scmp.eq.s32.totalorder %s17, 0
      %p105 = por %p103, %p104
      %p106 = scmp.ne.s32.totalorder %s98, %s100
      %p107 = scmp.eq.s32.totalorder %s22, 1
      %p108 = por %p106, %p107
      %p109 = scmp.ne.s32.totalorder %s100, %s101
      %p110 = scmp.eq.s32.totalorder %s22, 0
      %p111 = por %p109, %p110
      %p112 = scmp.ne.s32.totalorder %s100, %s101
      %p113 = scmp.eq.s32.totalorder %s23, 1
      %p114 = por %p112, %p113
      %p116 = scmp.ne.s32.totalorder %s101, %s115
      %p117 = scmp.eq.s32.totalorder %s23, 0
      %p118 = por %p116, %p117
      %s120 = sadd.s32 %s119, 1
      %p123 = scmp.eq.s32.totalorder %s17, 1
      %p124 = scmp.ne.s32.totalorder %s119, %s121
      %p125 = scmp.eq.s32.totalorder %s17, 0
      %p126 = por %p124, %p125
      %p127 = scmp.ne.s32.totalorder %s119, %s121
      %p128 = scmp.eq.s32.totalorder %s22, 1
      %p129 = por %p127, %p128
      %p130 = scmp.ne.s32.totalorder %s121, %s122
      %p131 = scmp.eq.s32.totalorder %s22, 0
      %p132 = por %p130, %p131
      %p133 = scmp.ne.s32.totalorder %s121, %s122
      %p134 = scmp.eq.s32.totalorder %s23, 1
      %p135 = por %p133, %p134
      %p137 = scmp.ne.s32.totalorder %s122, %s136
      %p138 = scmp.eq.s32.totalorder %s23, 0
      %p139 = por %p137, %p138
      %s141 = sadd.s32 %s140, 1
      %p144 = scmp.eq.s32.totalorder %s17, 1
      %p145 = scmp.ne.s32.totalorder %s140, %s142
      %p146 = scmp.eq.s32.totalorder %s17, 0
      %p147 = por %p145, %p146
      %p148 = scmp.ne.s32.totalorder %s140, %s142
      %p149 = scmp.eq.s32.totalorder %s22, 1
      %p150 = por %p148, %p149
      %p151 = scmp.ne.s32.totalorder %s142, %s143
      %p152 = scmp.eq.s32.totalorder %s22, 0
      %p153 = por %p151, %p152
      %p154 = scmp.ne.s32.totalorder %s142, %s143
      %p155 = scmp.eq.s32.totalorder %s23, 1
      %p156 = por %p154, %p155
      %p158 = scmp.ne.s32.totalorder %s143, %s157
      %p159 = scmp.eq.s32.totalorder %s23, 0
      %p160 = por %p158, %p159
      %s162 = sadd.s32 %s161, 1
      %p165 = scmp.eq.s32.totalorder %s17, 1
      %p166 = scmp.ne.s32.totalorder %s161, %s163
      %p167 = scmp.eq.s32.totalorder %s17, 0
      %p168 = por %p166, %p167
      %p169 = scmp.ne.s32.totalorder %s161, %s163
      %p170 = scmp.eq.s32.totalorder %s22, 1
      %p171 = por %p169, %p170
      %p172 = scmp.ne.s32.totalorder %s163, %s164
      %p173 = scmp.eq.s32.totalorder %s22, 0
      %p174 = por %p172, %p173
      %p175 = scmp.ne.s32.totalorder %s163, %s164
      %p176 = scmp.eq.s32.totalorder %s23, 1
      %p177 = por %p175, %p176
      %p179 = scmp.ne.s32.totalorder %s164, %s178
      %p180 = scmp.eq.s32.totalorder %s23, 0
      %p181 = por %p179, %p180
      %s182 = ssub.s32 %s17, %s24
      %p183 = scmp.eq.s32.totalorder %s182, 0
      %s185 = sadd.s32 %s184, 1
      %s186 = scalar_select %p183, %s184, %s185
      %p189 = pneg %p183
      %p190 = scmp.eq.s32.totalorder %s17, 1
      %p191 = por %p189, %p190
      %p192 = scmp.ne.s32.totalorder %s184, %s187
      %p193 = scmp.eq.s32.totalorder %s17, 0
      %p194 = por %p192, %p193
      %p195 = scmp.ne.s32.totalorder %s184, %s187
      %p196 = scmp.eq.s32.totalorder %s22, 1
      %p197 = por %p195, %p196
      %p198 = scmp.ne.s32.totalorder %s187, %s188
      %p199 = scmp.eq.s32.totalorder %s22, 0
      %p200 = por %p198, %p199
      %p201 = scmp.ne.s32.totalorder %s187, %s188
      %p202 = scmp.eq.s32.totalorder %s23, 1
      %p203 = por %p201, %p202
      %p205 = scmp.ne.s32.totalorder %s188, %s204
      %p206 = scmp.eq.s32.totalorder %s23, 0
      %p207 = por %p205, %p206
      %p208 = scmp.le.s32.totalorder 1, %s17
      %p209 = scmp.lt.s32.totalorder %s17, 3
      %p210 = pnand %p208, %p209
      %p211 = pneg %p210
      // Predicated region
      $region9: #{tpu_custom_call.1} parent=5 // pred_check
        _
      $region10: #{tpu_custom_call.1} parent=5 // pred_check_branch
        %213 = sbr.rel (%p210) target = $region12
      $region11: #{tpu_custom_call.1} parent=5 // pred_region
        %s214 = ssub.s32 %s17, 1
        // Predicated region
        $region13: #{tpu_custom_call.1} parent=11 // pred_check
          %p215 = pneg %p90
        $region14: #{tpu_custom_call.1} parent=11 // pred_check_branch
          %217 = sbr.rel (%p215) target = $region16
        $region15: #{tpu_custom_call.1} parent=11 // pred_region
          _
        $region16: #{tpu_custom_call.1} parent=11 // pred_fallthru
          _
        // Predicated region
        $region17: #{tpu_custom_call.1} parent=11 // pred_check
          %p218 = pneg %p111
        $region18: #{tpu_custom_call.1} parent=11 // pred_check_branch
          %220 = sbr.rel (%p218) target = $region20
        $region19: #{tpu_custom_call.1} parent=11 // pred_region
          _
        $region20: #{tpu_custom_call.1} parent=11 // pred_fallthru
          _
        // Predicated region
        $region21: #{tpu_custom_call.1} parent=11 // pred_check
          %p221 = pneg %p132
        $region22: #{tpu_custom_call.1} parent=11 // pred_check_branch
          %223 = sbr.rel (%p221) target = $region24
        $region23: #{tpu_custom_call.1} parent=11 // pred_region
          _
        $region24: #{tpu_custom_call.1} parent=11 // pred_fallthru
          _
        // Predicated region
        $region25: #{tpu_custom_call.1} parent=11 // pred_check
          %p224 = pneg %p153
        $region26: #{tpu_custom_call.1} parent=11 // pred_check_branch
          %226 = sbr.rel (%p224) target = $region28
        $region27: #{tpu_custom_call.1} parent=11 // pred_region
          %228 = vsyncadd [#allocation4], 0
          %s229 = sshll.u32 %s5, 4
          %s230 = int_to_ptr.hbm [resolvable:$true] %s229
          %s231 = sshll.u32 [#allocation3], 4
          %s232 = int_to_ptr.vmem [resolvable:$true] %s231
          %237 = dma.hbm_to_vmem [thread:$0]  %s230, 8192, %s232, [#allocation4], 64, 64, 4
        $region28: #{tpu_custom_call.1} parent=11 // pred_fallthru
          _
        // Predicated region
        $region29: #{tpu_custom_call.1} parent=11 // pred_check
          %p238 = pneg %p174
        $region30: #{tpu_custom_call.1} parent=11 // pred_check_branch
          %240 = sbr.rel (%p238) target = $region32
        $region31: #{tpu_custom_call.1} parent=11 // pred_region
          _
        $region32: #{tpu_custom_call.1} parent=11 // pred_fallthru
          _
      $region12: #{tpu_custom_call.1} parent=5 // pred_fallthru
        _
      %p241 = scmp.lt.s32.totalorder %s17, 2
      // Predicated region
      $region33: #{tpu_custom_call.1} parent=5 // pred_check
        %p242 = pneg %p241
      $region34: #{tpu_custom_call.1} parent=5 // pred_check_branch
        %244 = sbr.rel (%p242) target = $region36
      $region35: #{tpu_custom_call.1} parent=5 // pred_region
        // Predicated region
        $region37: #{tpu_custom_call.1} parent=35 // pred_check
          %p245 = pneg %p37
        $region38: #{tpu_custom_call.1} parent=35 // pred_check_branch
          %247 = sbr.rel (%p245) target = $region40
        $region39: #{tpu_custom_call.1} parent=35 // pred_region
          %s248 = smul.u32 16, %s17
          %p249 = scmp.lt.s32.totalorder %s248, 31
          %s250 = scalar_select %p249, %s248, 31
          %s251 = smul.addr %s250, 8
          %s252 = scalar_lea.vmem %s0, %s251
          %s253 = smul.u32 16, %s17
        $region40: #{tpu_custom_call.1} parent=35 // pred_fallthru
          _
        // Predicated region
        $region41: #{tpu_custom_call.1} parent=35 // pred_check
          %p254 = pneg %p63
        $region42: #{tpu_custom_call.1} parent=35 // pred_check_branch
          %256 = sbr.rel (%p254) target = $region44
        $region43: #{tpu_custom_call.1} parent=35 // pred_region
          %s257 = smul.u32 16, %s17
          %p258 = scmp.lt.s32.totalorder %s257, 31
          %s259 = scalar_select %p258, %s257, 31
          %s260 = smul.addr %s259, 8
          %s261 = scalar_lea.vmem %s1, %s260
          %s262 = smul.u32 16, %s17
        $region44: #{tpu_custom_call.1} parent=35 // pred_fallthru
          _
      $region36: #{tpu_custom_call.1} parent=5 // pred_fallthru
        _
      %p263 = scmp.le.s32.totalorder 1, %s17
      %p264 = scmp.lt.s32.totalorder %s17, 3
      %p265 = pnand %p263, %p264
      %p266 = pneg %p265
      // Predicated region
      $region45: #{tpu_custom_call.1} parent=5 // pred_check
        _
      $region46: #{tpu_custom_call.1} parent=5 // pred_check_branch
        %268 = sbr.rel (%p265) target = $region48
      $region47: #{tpu_custom_call.1} parent=5 // pred_region
        %s269 = ssub.s32 %s17, 1
        // Predicated region
        $region49: #{tpu_custom_call.1} parent=47 // pred_check
          %p270 = pneg %p153
        $region50: #{tpu_custom_call.1} parent=47 // pred_check_branch
          %272 = sbr.rel (%p270) target = $region52
        $region51: #{tpu_custom_call.1} parent=47 // pred_region
          %274 = dma.done [#allocation4], 8192
        $region52: #{tpu_custom_call.1} parent=47 // pred_fallthru
          _
        %s275 = smul.u32 16, %s22
        %p276 = scmp.lt.s32.totalorder %s275, 31
        %s277 = scalar_select %p276, %s275, 31
        %s278 = smul.addr %s277, 8
        %s279 = scalar_lea.vmem %s0, %s278
        %p280 = pneg %p43
        %p281 = pneg %p40
        %s282 = smul.u32 16, %s22
        %p283 = scmp.lt.s32.totalorder %s282, 31
        %s284 = scalar_select %p283, %s282, 31
        %s285 = smul.addr %s284, 8
        %s286 = scalar_lea.vmem %s1, %s285
        %p287 = pneg %p69
        %p288 = pneg %p66
        %p289 = pneg %p90
        %p290 = pneg %p87
        %p291 = pneg %p111
        %p292 = pneg %p108
        %p293 = pneg %p132
        %p294 = pneg %p129
        %p295 = pneg %p153
        %p296 = pneg %p150
        %p297 = pneg %p174
        %p298 = pneg %p171
        %p299 = pneg %p200
        %p300 = pneg %p197
        %s301 = sand.u32 %s187, 1
        %s302 = scalar_lea.sflag [#allocation5], %s301
        %s303 = sand.u32 %s187, 1
        %s304 = smul.addr %s303, 16
        %s305 = scalar_lea.vmem [#allocation6], %s304
        %s306 = smul.u32 16, %s22
        %p307 = scmp.lt.s32.totalorder %s306, 31
        %s308 = scalar_select %p307, %s306, 31
        %s309 = smul.addr %s308, 8
        %s310 = scalar_lea.vmem %s0, %s309
        %s311 = smul.u32 16, %s22
        %s312 = smul.u32 16, %s22
        %p313 = scmp.lt.s32.totalorder %s312, 31
        %s314 = scalar_select %p313, %s312, 31
        %s315 = smul.addr %s314, 8
        %s316 = scalar_lea.vmem %s1, %s315
        %s317 = smul.u32 16, %s22
        %s318 = smul.u32 2, %s22
        %v320 = vld [vmem:[%s310] sm:$0xff]
        %v321 = vld [vmem:[%s310 + $0x8] sm:$0xff]
        %v322 = vld [vmem:[%s310 + $0x10] sm:$0xff]
        %v323 = vld [vmem:[%s310 + $0x18] sm:$0xff]
        %v324 = vld [vmem:[%s310 + $0x20] sm:$0xff]
        %v325 = vld [vmem:[%s310 + $0x28] sm:$0xff]
        %v326 = vld [vmem:[%s310 + $0x30] sm:$0xff]
        %v327 = vld [vmem:[%s310 + $0x38] sm:$0xff]
        %v328 = vld [vmem:[%s310 + $0x40] sm:$0xff]
        %v329 = vld [vmem:[%s310 + $0x48] sm:$0xff]
        %v330 = vld [vmem:[%s310 + $0x50] sm:$0xff]
        %v331 = vld [vmem:[%s310 + $0x58] sm:$0xff]
        %v332 = vld [vmem:[%s310 + $0x60] sm:$0xff]
        %v333 = vld [vmem:[%s310 + $0x68] sm:$0xff]
        %v334 = vld [vmem:[%s310 + $0x70] sm:$0xff]
        %v335 = vld [vmem:[%s310 + $0x78] sm:$0xff]
        %v336 = vpack.c.bf16 %v321, %v320
        %v337 = vpack.c.bf16 %v323, %v322
        %v338 = vpack.c.bf16 %v325, %v324
        %v339 = vpack.c.bf16 %v327, %v326
        %v340 = vpack.c.bf16 %v329, %v328
        %v341 = vpack.c.bf16 %v331, %v330
        %v342 = vpack.c.bf16 %v333, %v332
        %v343 = vpack.c.bf16 %v335, %v334
        %v344 = vld [vmem:[%s2] sm:$0xf]
        %v345 = vld [vmem:[%s2 + $0x4] sm:$0xf]
        %v346 = vld [vmem:[%s2 + $0x8] sm:$0xf]
        %v347 = vld [vmem:[%s2 + $0xc] sm:$0xf]
        %v348 = vld [vmem:[%s2 + $0x10] sm:$0xf]
        %v349 = vld [vmem:[%s2 + $0x14] sm:$0xf]
        %v350 = vld [vmem:[%s2 + $0x18] sm:$0xf]
        %v351 = vld [vmem:[%s2 + $0x1c] sm:$0xf]
        %v352 = vld [vmem:[%s2 + $0x20] sm:$0xf]
        %v353 = vld [vmem:[%s2 + $0x24] sm:$0xf]
        %v354 = vld [vmem:[%s2 + $0x28] sm:$0xf]
        %v355 = vld [vmem:[%s2 + $0x2c] sm:$0xf]
        %v356 = vld [vmem:[%s2 + $0x30] sm:$0xf]
        %v357 = vld [vmem:[%s2 + $0x34] sm:$0xf]
        %v358 = vld [vmem:[%s2 + $0x38] sm:$0xf]
        %v359 = vld [vmem:[%s2 + $0x3c] sm:$0xf]
        %v360 = vld [vmem:[%s3] sm:$0x1]
        %v362 = vperm.slane %v360, 0
        %v380 = vunpack.c.l.b16 %v344
        %v381 = vunpack.c.l.b16 %v345
        %v382 = vunpack.c.l.b16 %v346
        %v383 = vunpack.c.l.b16 %v347
        %v384 = vunpack.c.l.b16 %v348
        %v385 = vunpack.c.l.b16 %v349
        %v386 = vunpack.c.l.b16 %v350
        %v387 = vunpack.c.l.b16 %v351
        %v388 = vunpack.c.l.b16 %v352
        %v389 = vunpack.c.l.b16 %v353
        %v390 = vunpack.c.l.b16 %v354
        %v391 = vunpack.c.l.b16 %v355
        %v392 = vunpack.c.l.b16 %v356
        %v393 = vunpack.c.l.b16 %v357
        %v394 = vunpack.c.l.b16 %v358
        %v395 = vunpack.c.l.b16 %v359
        %v396 = vpack.c.b16 %v381, %v380
        %v397 = vpack.c.b16 %v383, %v382
        %v398 = vpack.c.b16 %v385, %v384
        %v399 = vpack.c.b16 %v387, %v386
        %v400 = vpack.c.b16 %v389, %v388
        %v401 = vpack.c.b16 %v391, %v390
        %v402 = vpack.c.b16 %v393, %v392
        %v403 = vpack.c.b16 %v395, %v394
        %412 = vmatpush.bf16.msra.mxu0 %v403
        %413 = vmatpush.bf16.msra.mxu0 %v402
        %414 = vmatpush.bf16.msra.mxu0 %v401
        %415 = vmatpush.bf16.msra.mxu0 %v400
        %416 = vmatpush.bf16.msra.mxu0 %v399
        %417 = vmatpush.bf16.msra.mxu0 %v398
        %418 = vmatpush.bf16.msra.mxu0 %v397
        %419 = vmatpush.bf16.msra.mxu0 %v396
        %420 = vmatmul.bf16.gmra.mxu0 %v336
        %v421 = vpop.f32.mrf.mxu0
        %v422 = vadd.f32 %v362, %v421
        %v423 = vpop.f32.mrf.mxu0
        %v424 = vadd.f32 %v362, %v423
        %425 = vmatmul.bf16.gmra.mxu0 %v337
        %v426 = vpop.f32.mrf.mxu0
        %v427 = vadd.f32 %v362, %v426
        %v428 = vpop.f32.mrf.mxu0
        %v429 = vadd.f32 %v362, %v428
        %430 = vmatmul.bf16.gmra.mxu0 %v338
        %v431 = vpop.f32.mrf.mxu0
        %v432 = vadd.f32 %v362, %v431
        %v433 = vpop.f32.mrf.mxu0
        %v434 = vadd.f32 %v362, %v433
        %435 = vmatmul.bf16.gmra.mxu0 %v339
        %v436 = vpop.f32.mrf.mxu0
        %v437 = vadd.f32 %v362, %v436
        %v438 = vpop.f32.mrf.mxu0
        %v439 = vadd.f32 %v362, %v438
        %440 = vmatmul.bf16.gmra.mxu0 %v340
        %v441 = vpop.f32.mrf.mxu0
        %v442 = vadd.f32 %v362, %v441
        %v443 = vpop.f32.mrf.mxu0
        %v444 = vadd.f32 %v362, %v443
        %445 = vmatmul.bf16.gmra.mxu0 %v341
        %v446 = vpop.f32.mrf.mxu0
        %v447 = vadd.f32 %v362, %v446
        %v448 = vpop.f32.mrf.mxu0
        %v449 = vadd.f32 %v362, %v448
        %450 = vmatmul.bf16.gmra.mxu0 %v342
        %v451 = vpop.f32.mrf.mxu0
        %v452 = vadd.f32 %v362, %v451
        %v453 = vpop.f32.mrf.mxu0
        %v454 = vadd.f32 %v362, %v453
        %455 = vmatmul.bf16.gmra.mxu0 %v343
        %v456 = vpop.f32.mrf.mxu0
        %v457 = vadd.f32 %v362, %v456
        %v458 = vpop.f32.mrf.mxu0
        %v459 = vadd.f32 %v362, %v458
        %460 = vdwg.mxu0
        %v461 = vld [vmem:[%s316] sm:$0xff]
        %v462 = vld [vmem:[%s316 + $0x8] sm:$0xff]
        %v463 = vld [vmem:[%s316 + $0x10] sm:$0xff]
        %v464 = vld [vmem:[%s316 + $0x18] sm:$0xff]
        %v465 = vld [vmem:[%s316 + $0x20] sm:$0xff]
        %v466 = vld [vmem:[%s316 + $0x28] sm:$0xff]
        %v467 = vld [vmem:[%s316 + $0x30] sm:$0xff]
        %v468 = vld [vmem:[%s316 + $0x38] sm:$0xff]
        %v469 = vld [vmem:[%s316 + $0x40] sm:$0xff]
        %v470 = vld [vmem:[%s316 + $0x48] sm:$0xff]
        %v471 = vld [vmem:[%s316 + $0x50] sm:$0xff]
        %v472 = vld [vmem:[%s316 + $0x58] sm:$0xff]
        %v473 = vld [vmem:[%s316 + $0x60] sm:$0xff]
        %v474 = vld [vmem:[%s316 + $0x68] sm:$0xff]
        %v475 = vld [vmem:[%s316 + $0x70] sm:$0xff]
        %v476 = vld [vmem:[%s316 + $0x78] sm:$0xff]
        %478 = vset.pattern.permute.xlu0 0
        %479 = vperm.xlu0 %478, %v461
        %v480 = vpop.permute.xlu0 %479
        %483 = vset.pattern.permute.xlu0 0
        %484 = vperm.xlu0 %483, %v462
        %v485 = vpop.permute.xlu0 %484
        %488 = vset.pattern.permute.xlu0 0
        %489 = vperm.xlu0 %488, %v463
        %v490 = vpop.permute.xlu0 %489
        %493 = vset.pattern.permute.xlu0 0
        %494 = vperm.xlu0 %493, %v464
        %v495 = vpop.permute.xlu0 %494
        %498 = vset.pattern.permute.xlu0 0
        %499 = vperm.xlu0 %498, %v465
        %v500 = vpop.permute.xlu0 %499
        %503 = vset.pattern.permute.xlu0 0
        %504 = vperm.xlu0 %503, %v466
        %v505 = vpop.permute.xlu0 %504
        %508 = vset.pattern.permute.xlu0 0
        %509 = vperm.xlu0 %508, %v467
        %v510 = vpop.permute.xlu0 %509
        %513 = vset.pattern.permute.xlu0 0
        %514 = vperm.xlu0 %513, %v468
        %v515 = vpop.permute.xlu0 %514
        %518 = vset.pattern.permute.xlu0 0
        %519 = vperm.xlu0 %518, %v469
        %v520 = vpop.permute.xlu0 %519
        %523 = vset.pattern.permute.xlu0 0
        %524 = vperm.xlu0 %523, %v470
        %v525 = vpop.permute.xlu0 %524
        %528 = vset.pattern.permute.xlu0 0
        %529 = vperm.xlu0 %528, %v471
        %v530 = vpop.permute.xlu0 %529
        %533 = vset.pattern.permute.xlu0 0
        %534 = vperm.xlu0 %533, %v472
        %v535 = vpop.permute.xlu0 %534
        %538 = vset.pattern.permute.xlu0 0
        %539 = vperm.xlu0 %538, %v473
        %v540 = vpop.permute.xlu0 %539
        %543 = vset.pattern.permute.xlu0 0
        %544 = vperm.xlu0 %543, %v474
        %v545 = vpop.permute.xlu0 %544
        %548 = vset.pattern.permute.xlu0 0
        %549 = vperm.xlu0 %548, %v475
        %v550 = vpop.permute.xlu0 %549
        %553 = vset.pattern.permute.xlu0 0
        %554 = vperm.xlu0 %553, %v476
        %v555 = vpop.permute.xlu0 %554
        %v557 = vmul.f32 %v422, %v480
        %v558 = vmul.f32 %v424, %v485
        %v559 = vmul.f32 %v427, %v490
        %v560 = vmul.f32 %v429, %v495
        %v561 = vmul.f32 %v432, %v500
        %v562 = vmul.f32 %v434, %v505
        %v563 = vmul.f32 %v437, %v510
        %v564 = vmul.f32 %v439, %v515
        %v565 = vmul.f32 %v442, %v520
        %v566 = vmul.f32 %v444, %v525
        %v567 = vmul.f32 %v447, %v530
        %v568 = vmul.f32 %v449, %v535
        %v569 = vmul.f32 %v452, %v540
        %v570 = vmul.f32 %v454, %v545
        %v571 = vmul.f32 %v457, %v550
        %v572 = vmul.f32 %v459, %v555
        %v573 = vpack.c.bf16 %v557, %v557
        %v574 = vpack.c.bf16 %v558, %v558
        %v575 = vpack.c.bf16 %v559, %v559
        %v576 = vpack.c.bf16 %v560, %v560
        %v577 = vpack.c.bf16 %v561, %v561
        %v578 = vpack.c.bf16 %v562, %v562
        %v579 = vpack.c.bf16 %v563, %v563
        %v580 = vpack.c.bf16 %v564, %v564
        %v581 = vpack.c.bf16 %v565, %v565
        %v582 = vpack.c.bf16 %v566, %v566
        %v583 = vpack.c.bf16 %v567, %v567
        %v584 = vpack.c.bf16 %v568, %v568
        %v585 = vpack.c.bf16 %v569, %v569
        %v586 = vpack.c.bf16 %v570, %v570
        %v587 = vpack.c.bf16 %v571, %v571
        %v588 = vpack.c.bf16 %v572, %v572
        %v589 = vpack.c.bf16 %v320, %v320
        %v590 = vpack.c.bf16 %v321, %v321
        %v591 = vpack.c.bf16 %v322, %v322
        %v592 = vpack.c.bf16 %v323, %v323
        %v593 = vpack.c.bf16 %v324, %v324
        %v594 = vpack.c.bf16 %v325, %v325
        %v595 = vpack.c.bf16 %v326, %v326
        %v596 = vpack.c.bf16 %v327, %v327
        %v597 = vpack.c.bf16 %v328, %v328
        %v598 = vpack.c.bf16 %v329, %v329
        %v599 = vpack.c.bf16 %v330, %v330
        %v600 = vpack.c.bf16 %v331, %v331
        %v601 = vpack.c.bf16 %v332, %v332
        %v602 = vpack.c.bf16 %v333, %v333
        %v603 = vpack.c.bf16 %v334, %v334
        %v604 = vpack.c.bf16 %v335, %v335
        %605 = vxpose.xlu0.c.b16.start [1/8] %v573, 128
        %606 = vxpose.xlu0.c.b16.cont [2/8] 0, 128
        %607 = vxpose.xlu0.c.b16.cont [3/8] 0, 128
        %608 = vxpose.xlu0.c.b16.cont [4/8] 0, 128
        %609 = vxpose.xlu0.c.b16.cont [5/8] 0, 128
        %610 = vxpose.xlu0.c.b16.cont [6/8] 0, 128
        %611 = vxpose.xlu0.c.b16.cont [7/8] 0, 128
        %612 = vxpose.xlu0.c.b16.end [8/8] 0, 128
        %v613 = vpop.trf.xlu0
        %v614 = vpop.trf.xlu0
        %v615 = vpop.trf.xlu0
        %v616 = vpop.trf.xlu0
        %v617 = vpop.trf.xlu0
        %v618 = vpop.trf.xlu0
        %v619 = vpop.trf.xlu0
        %v620 = vpop.trf.xlu0
        %vm621 = vcmask 64512
        %v623 = vsel %vm621, %v613, 0
        %vm625 = vcmask 1043456
        %v627 = vsel %vm625, %v589, 0
        %629 = vmatpush.bf16.msra.mxu0 0
        %630 = vmatpush.bf16.msra.mxu0 0
        %631 = vmatpush.bf16.msra.mxu0 0
        %632 = vmatpush.bf16.msra.mxu0 0
        %633 = vmatpush.bf16.msra.mxu0 0
        %634 = vmatpush.bf16.msra.mxu0 0
        %635 = vmatpush.bf16.msra.mxu0 0
        %636 = vmatpush.bf16.msra.mxu0 %v627
        %637 = vmatmul.bf16.gmra.mxu0 %v623
        %v638 = vpop.f32.mrf.mxu0
        %v639 = vadd.f32 0.0, %v638
        %v640 = vpop.f32.mrf.mxu0
        %641 = vdwg.mxu0
        %642 = vxpose.xlu0.c.b16.start [1/8] %v574, 128
        %643 = vxpose.xlu0.c.b16.cont [2/8] 0, 128
        %644 = vxpose.xlu0.c.b16.cont [3/8] 0, 128
        %645 = vxpose.xlu0.c.b16.cont [4/8] 0, 128
        %646 = vxpose.xlu0.c.b16.cont [5/8] 0, 128
        %647 = vxpose.xlu0.c.b16.cont [6/8] 0, 128
        %648 = vxpose.xlu0.c.b16.cont [7/8] 0, 128
        %649 = vxpose.xlu0.c.b16.end [8/8] 0, 128
        %v650 = vpop.trf.xlu0
        %v651 = vpop.trf.xlu0
        %v652 = vpop.trf.xlu0
        %v653 = vpop.trf.xlu0
        %v654 = vpop.trf.xlu0
        %v655 = vpop.trf.xlu0
        %v656 = vpop.trf.xlu0
        %v657 = vpop.trf.xlu0
        %v659 = vsel %vm621, %v650, 0
        %v662 = vsel %vm625, %v590, 0
        %664 = vmatpush.bf16.msra.mxu0 0
        %665 = vmatpush.bf16.msra.mxu0 0
        %666 = vmatpush.bf16.msra.mxu0 0
        %667 = vmatpush.bf16.msra.mxu0 0
        %668 = vmatpush.bf16.msra.mxu0 0
        %669 = vmatpush.bf16.msra.mxu0 0
        %670 = vmatpush.bf16.msra.mxu0 0
        %671 = vmatpush.bf16.msra.mxu0 %v662
        %672 = vmatmul.bf16.gmra.mxu0 %v659
        %v673 = vpop.f32.mrf.mxu0
        %v674 = vadd.f32 0.0, %v673
        %v675 = vpop.f32.mrf.mxu0
        %676 = vdwg.mxu0
        %677 = vxpose.xlu0.c.b16.start [1/8] %v575, 128
        %678 = vxpose.xlu0.c.b16.cont [2/8] 0, 128
        %679 = vxpose.xlu0.c.b16.cont [3/8] 0, 128
        %680 = vxpose.xlu0.c.b16.cont [4/8] 0, 128
        %681 = vxpose.xlu0.c.b16.cont [5/8] 0, 128
        %682 = vxpose.xlu0.c.b16.cont [6/8] 0, 128
        %683 = vxpose.xlu0.c.b16.cont [7/8] 0, 128
        %684 = vxpose.xlu0.c.b16.end [8/8] 0, 128
        %v685 = vpop.trf.xlu0
        %v686 = vpop.trf.xlu0
        %v687 = vpop.trf.xlu0
        %v688 = vpop.trf.xlu0
        %v689 = vpop.trf.xlu0
        %v690 = vpop.trf.xlu0
        %v691 = vpop.trf.xlu0
        %v692 = vpop.trf.xlu0
        %v694 = vsel %vm621, %v685, 0
        %v697 = vsel %vm625, %v591, 0
        %699 = vmatpush.bf16.msra.mxu0 0
        %700 = vmatpush.bf16.msra.mxu0 0
        %701 = vmatpush.bf16.msra.mxu0 0
        %702 = vmatpush.bf16.msra.mxu0 0
        %703 = vmatpush.bf16.msra.mxu0 0
        %704 = vmatpush.bf16.msra.mxu0 0
        %705 = vmatpush.bf16.msra.mxu0 0
        %706 = vmatpush.bf16.msra.mxu0 %v697
        %707 = vmatmul.bf16.gmra.mxu0 %v694
        %v708 = vpop.f32.mrf.mxu0
        %v709 = vadd.f32 0.0, %v708
        %v710 = vpop.f32.mrf.mxu0
        %711 = vdwg.mxu0
        %712 = vxpose.xlu0.c.b16.start [1/8] %v576, 128
        %713 = vxpose.xlu0.c.b16.cont [2/8] 0, 128
        %714 = vxpose.xlu0.c.b16.cont [3/8] 0, 128
        %715 = vxpose.xlu0.c.b16.cont [4/8] 0, 128
        %716 = vxpose.xlu0.c.b16.cont [5/8] 0, 128
        %717 = vxpose.xlu0.c.b16.cont [6/8] 0, 128
        %718 = vxpose.xlu0.c.b16.cont [7/8] 0, 128
        %719 = vxpose.xlu0.c.b16.end [8/8] 0, 128
        %v720 = vpop.trf.xlu0
        %v721 = vpop.trf.xlu0
        %v722 = vpop.trf.xlu0
        %v723 = vpop.trf.xlu0
        %v724 = vpop.trf.xlu0
        %v725 = vpop.trf.xlu0
        %v726 = vpop.trf.xlu0
        %v727 = vpop.trf.xlu0
        %v729 = vsel %vm621, %v720, 0
        %v732 = vsel %vm625, %v592, 0
        %734 = vmatpush.bf16.msra.mxu0 0
        %735 = vmatpush.bf16.msra.mxu0 0
        %736 = vmatpush.bf16.msra.mxu0 0
        %737 = vmatpush.bf16.msra.mxu0 0
        %738 = vmatpush.bf16.msra.mxu0 0
        %739 = vmatpush.bf16.msra.mxu0 0
        %740 = vmatpush.bf16.msra.mxu0 0
        %741 = vmatpush.bf16.msra.mxu0 %v732
        %742 = vmatmul.bf16.gmra.mxu0 %v729
        %v743 = vpop.f32.mrf.mxu0
        %v744 = vadd.f32 0.0, %v743
        %v745 = vpop.f32.mrf.mxu0
        %746 = vdwg.mxu0
        %747 = vxpose.xlu0.c.b16.start [1/8] %v577, 128
        %748 = vxpose.xlu0.c.b16.cont [2/8] 0, 128
        %749 = vxpose.xlu0.c.b16.cont [3/8] 0, 128
        %750 = vxpose.xlu0.c.b16.cont [4/8] 0, 128
        %751 = vxpose.xlu0.c.b16.cont [5/8] 0, 128
        %752 = vxpose.xlu0.c.b16.cont [6/8] 0, 128
        %753 = vxpose.xlu0.c.b16.cont [7/8] 0, 128
        %754 = vxpose.xlu0.c.b16.end [8/8] 0, 128
        %v755 = vpop.trf.xlu0
        %v756 = vpop.trf.xlu0
        %v757 = vpop.trf.xlu0
        %v758 = vpop.trf.xlu0
        %v759 = vpop.trf.xlu0
        %v760 = vpop.trf.xlu0
        %v761 = vpop.trf.xlu0
        %v762 = vpop.trf.xlu0
        %v764 = vsel %vm621, %v755, 0
        %v767 = vsel %vm625, %v593, 0
        %769 = vmatpush.bf16.msra.mxu0 0
        %770 = vmatpush.bf16.msra.mxu0 0
        %771 = vmatpush.bf16.msra.mxu0 0
        %772 = vmatpush.bf16.msra.mxu0 0
        %773 = vmatpush.bf16.msra.mxu0 0
        %774 = vmatpush.bf16.msra.mxu0 0
        %775 = vmatpush.bf16.msra.mxu0 0
        %776 = vmatpush.bf16.msra.mxu0 %v767
        %777 = vmatmul.bf16.gmra.mxu0 %v764
        %v778 = vpop.f32.mrf.mxu0
        %v779 = vadd.f32 0.0, %v778
        %v780 = vpop.f32.mrf.mxu0
        %781 = vdwg.mxu0
        %782 = vxpose.xlu0.c.b16.start [1/8] %v578, 128
        %783 = vxpose.xlu0.c.b16.cont [2/8] 0, 128
        %784 = vxpose.xlu0.c.b16.cont [3/8] 0, 128
        %785 = vxpose.xlu0.c.b16.cont [4/8] 0, 128
        %786 = vxpose.xlu0.c.b16.cont [5/8] 0, 128
        %787 = vxpose.xlu0.c.b16.cont [6/8] 0, 128
        %788 = vxpose.xlu0.c.b16.cont [7/8] 0, 128
        %789 = vxpose.xlu0.c.b16.end [8/8] 0, 128
        %v790 = vpop.trf.xlu0
        %v791 = vpop.trf.xlu0
        %v792 = vpop.trf.xlu0
        %v793 = vpop.trf.xlu0
        %v794 = vpop.trf.xlu0
        %v795 = vpop.trf.xlu0
        %v796 = vpop.trf.xlu0
        %v797 = vpop.trf.xlu0
        %v799 = vsel %vm621, %v790, 0
        %v802 = vsel %vm625, %v594, 0
        %804 = vmatpush.bf16.msra.mxu0 0
        %805 = vmatpush.bf16.msra.mxu0 0
        %806 = vmatpush.bf16.msra.mxu0 0
        %807 = vmatpush.bf16.msra.mxu0 0
        %808 = vmatpush.bf16.msra.mxu0 0
        %809 = vmatpush.bf16.msra.mxu0 0
        %810 = vmatpush.bf16.msra.mxu0 0
        %811 = vmatpush.bf16.msra.mxu0 %v802
        %812 = vmatmul.bf16.gmra.mxu0 %v799
        %v813 = vpop.f32.mrf.mxu0
        %v814 = vadd.f32 0.0, %v813
        %v815 = vpop.f32.mrf.mxu0
        %816 = vdwg.mxu0
        %817 = vxpose.xlu0.c.b16.start [1/8] %v579, 128
        %818 = vxpose.xlu0.c.b16.cont [2/8] 0, 128
        %819 = vxpose.xlu0.c.b16.cont [3/8] 0, 128
        %820 = vxpose.xlu0.c.b16.cont [4/8] 0, 128
        %821 = vxpose.xlu0.c.b16.cont [5/8] 0, 128
        %822 = vxpose.xlu0.c.b16.cont [6/8] 0, 128
        %823 = vxpose.xlu0.c.b16.cont [7/8] 0, 128
        %824 = vxpose.xlu0.c.b16.end [8/8] 0, 128
        %v825 = vpop.trf.xlu0
        %v826 = vpop.trf.xlu0
        %v827 = vpop.trf.xlu0
        %v828 = vpop.trf.xlu0
        %v829 = vpop.trf.xlu0
        %v830 = vpop.trf.xlu0
        %v831 = vpop.trf.xlu0
        %v832 = vpop.trf.xlu0
        %v834 = vsel %vm621, %v825, 0
        %v837 = vsel %vm625, %v595, 0
        %839 = vmatpush.bf16.msra.mxu0 0
        %840 = vmatpush.bf16.msra.mxu0 0
        %841 = vmatpush.bf16.msra.mxu0 0
        %842 = vmatpush.bf16.msra.mxu0 0
        %843 = vmatpush.bf16.msra.mxu0 0
        %844 = vmatpush.bf16.msra.mxu0 0
        %845 = vmatpush.bf16.msra.mxu0 0
        %846 = vmatpush.bf16.msra.mxu0 %v837
        %847 = vmatmul.bf16.gmra.mxu0 %v834
        %v848 = vpop.f32.mrf.mxu0
        %v849 = vadd.f32 0.0, %v848
        %v850 = vpop.f32.mrf.mxu0
        %851 = vdwg.mxu0
        %852 = vxpose.xlu0.c.b16.start [1/8] %v580, 128
        %853 = vxpose.xlu0.c.b16.cont [2/8] 0, 128
        %854 = vxpose.xlu0.c.b16.cont [3/8] 0, 128
        %855 = vxpose.xlu0.c.b16.cont [4/8] 0, 128
        %856 = vxpose.xlu0.c.b16.cont [5/8] 0, 128
        %857 = vxpose.xlu0.c.b16.cont [6/8] 0, 128
        %858 = vxpose.xlu0.c.b16.cont [7/8] 0, 128
        %859 = vxpose.xlu0.c.b16.end [8/8] 0, 128
        %v860 = vpop.trf.xlu0
        %v861 = vpop.trf.xlu0
        %v862 = vpop.trf.xlu0
        %v863 = vpop.trf.xlu0
        %v864 = vpop.trf.xlu0
        %v865 = vpop.trf.xlu0
        %v866 = vpop.trf.xlu0
        %v867 = vpop.trf.xlu0
        %v869 = vsel %vm621, %v860, 0
        %v872 = vsel %vm625, %v596, 0
        %874 = vmatpush.bf16.msra.mxu0 0
        %875 = vmatpush.bf16.msra.mxu0 0
        %876 = vmatpush.bf16.msra.mxu0 0
        %877 = vmatpush.bf16.msra.mxu0 0
        %878 = vmatpush.bf16.msra.mxu0 0
        %879 = vmatpush.bf16.msra.mxu0 0
        %880 = vmatpush.bf16.msra.mxu0 0
        %881 = vmatpush.bf16.msra.mxu0 %v872
        %882 = vmatmul.bf16.gmra.mxu0 %v869
        %v883 = vpop.f32.mrf.mxu0
        %v884 = vadd.f32 0.0, %v883
        %v885 = vpop.f32.mrf.mxu0
        %886 = vdwg.mxu0
        %887 = vxpose.xlu0.c.b16.start [1/8] %v581, 128
        %888 = vxpose.xlu0.c.b16.cont [2/8] 0, 128
        %889 = vxpose.xlu0.c.b16.cont [3/8] 0, 128
        %890 = vxpose.xlu0.c.b16.cont [4/8] 0, 128
        %891 = vxpose.xlu0.c.b16.cont [5/8] 0, 128
        %892 = vxpose.xlu0.c.b16.cont [6/8] 0, 128
        %893 = vxpose.xlu0.c.b16.cont [7/8] 0, 128
        %894 = vxpose.xlu0.c.b16.end [8/8] 0, 128
        %v895 = vpop.trf.xlu0
        %v896 = vpop.trf.xlu0
        %v897 = vpop.trf.xlu0
        %v898 = vpop.trf.xlu0
        %v899 = vpop.trf.xlu0
        %v900 = vpop.trf.xlu0
        %v901 = vpop.trf.xlu0
        %v902 = vpop.trf.xlu0
        %v904 = vsel %vm621, %v895, 0
        %v907 = vsel %vm625, %v597, 0
        %909 = vmatpush.bf16.msra.mxu0 0
        %910 = vmatpush.bf16.msra.mxu0 0
        %911 = vmatpush.bf16.msra.mxu0 0
        %912 = vmatpush.bf16.msra.mxu0 0
        %913 = vmatpush.bf16.msra.mxu0 0
        %914 = vmatpush.bf16.msra.mxu0 0
        %915 = vmatpush.bf16.msra.mxu0 0
        %916 = vmatpush.bf16.msra.mxu0 %v907
        %917 = vmatmul.bf16.gmra.mxu0 %v904
        %v918 = vpop.f32.mrf.mxu0
        %v919 = vadd.f32 0.0, %v918
        %v920 = vpop.f32.mrf.mxu0
        %921 = vdwg.mxu0
        %922 = vxpose.xlu0.c.b16.start [1/8] %v582, 128
        %923 = vxpose.xlu0.c.b16.cont [2/8] 0, 128
        %924 = vxpose.xlu0.c.b16.cont [3/8] 0, 128
        %925 = vxpose.xlu0.c.b16.cont [4/8] 0, 128
        %926 = vxpose.xlu0.c.b16.cont [5/8] 0, 128
        %927 = vxpose.xlu0.c.b16.cont [6/8] 0, 128
        %928 = vxpose.xlu0.c.b16.cont [7/8] 0, 128
        %929 = vxpose.xlu0.c.b16.end [8/8] 0, 128
        %v930 = vpop.trf.xlu0
        %v931 = vpop.trf.xlu0
        %v932 = vpop.trf.xlu0
        %v933 = vpop.trf.xlu0
        %v934 = vpop.trf.xlu0
        %v935 = vpop.trf.xlu0
        %v936 = vpop.trf.xlu0
        %v937 = vpop.trf.xlu0
        %v939 = vsel %vm621, %v930, 0
        %v942 = vsel %vm625, %v598, 0
        %944 = vmatpush.bf16.msra.mxu0 0
        %945 = vmatpush.bf16.msra.mxu0 0
        %946 = vmatpush.bf16.msra.mxu0 0
        %947 = vmatpush.bf16.msra.mxu0 0
        %948 = vmatpush.bf16.msra.mxu0 0
        %949 = vmatpush.bf16.msra.mxu0 0
        %950 = vmatpush.bf16.msra.mxu0 0
        %951 = vmatpush.bf16.msra.mxu0 %v942
        %952 = vmatmul.bf16.gmra.mxu0 %v939
        %v953 = vpop.f32.mrf.mxu0
        %v954 = vadd.f32 0.0, %v953
        %v955 = vpop.f32.mrf.mxu0
        %956 = vdwg.mxu0
        %957 = vxpose.xlu0.c.b16.start [1/8] %v583, 128
        %958 = vxpose.xlu0.c.b16.cont [2/8] 0, 128
        %959 = vxpose.xlu0.c.b16.cont [3/8] 0, 128
        %960 = vxpose.xlu0.c.b16.cont [4/8] 0, 128
        %961 = vxpose.xlu0.c.b16.cont [5/8] 0, 128
        %962 = vxpose.xlu0.c.b16.cont [6/8] 0, 128
        %963 = vxpose.xlu0.c.b16.cont [7/8] 0, 128
        %964 = vxpose.xlu0.c.b16.end [8/8] 0, 128
        %v965 = vpop.trf.xlu0
        %v966 = vpop.trf.xlu0
        %v967 = vpop.trf.xlu0
        %v968 = vpop.trf.xlu0
        %v969 = vpop.trf.xlu0
        %v970 = vpop.trf.xlu0
        %v971 = vpop.trf.xlu0
        %v972 = vpop.trf.xlu0
        %v974 = vsel %vm621, %v965, 0
        %v977 = vsel %vm625, %v599, 0
        %979 = vmatpush.bf16.msra.mxu0 0
        %980 = vmatpush.bf16.msra.mxu0 0
        %981 = vmatpush.bf16.msra.mxu0 0
        %982 = vmatpush.bf16.msra.mxu0 0
        %983 = vmatpush.bf16.msra.mxu0 0
        %984 = vmatpush.bf16.msra.mxu0 0
        %985 = vmatpush.bf16.msra.mxu0 0
        %986 = vmatpush.bf16.msra.mxu0 %v977
        %987 = vmatmul.bf16.gmra.mxu0 %v974
        %v988 = vpop.f32.mrf.mxu0
        %v989 = vadd.f32 0.0, %v988
        %v990 = vpop.f32.mrf.mxu0
        %991 = vdwg.mxu0
        %992 = vxpose.xlu0.c.b16.start [1/8] %v584, 128
        %993 = vxpose.xlu0.c.b16.cont [2/8] 0, 128
        %994 = vxpose.xlu0.c.b16.cont [3/8] 0, 128
        %995 = vxpose.xlu0.c.b16.cont [4/8] 0, 128
        %996 = vxpose.xlu0.c.b16.cont [5/8] 0, 128
        %997 = vxpose.xlu0.c.b16.cont [6/8] 0, 128
        %998 = vxpose.xlu0.c.b16.cont [7/8] 0, 128
        %999 = vxpose.xlu0.c.b16.end [8/8] 0, 128
        %v1000 = vpop.trf.xlu0
        %v1001 = vpop.trf.xlu0
        %v1002 = vpop.trf.xlu0
        %v1003 = vpop.trf.xlu0
        %v1004 = vpop.trf.xlu0
        %v1005 = vpop.trf.xlu0
        %v1006 = vpop.trf.xlu0
        %v1007 = vpop.trf.xlu0
        %v1009 = vsel %vm621, %v1000, 0
        %v1012 = vsel %vm625, %v600, 0
        %1014 = vmatpush.bf16.msra.mxu0 0
        %1015 = vmatpush.bf16.msra.mxu0 0
        %1016 = vmatpush.bf16.msra.mxu0 0
        %1017 = vmatpush.bf16.msra.mxu0 0
        %1018 = vmatpush.bf16.msra.mxu0 0
        %1019 = vmatpush.bf16.msra.mxu0 0
        %1020 = vmatpush.bf16.msra.mxu0 0
        %1021 = vmatpush.bf16.msra.mxu0 %v1012
        %1022 = vmatmul.bf16.gmra.mxu0 %v1009
        %v1023 = vpop.f32.mrf.mxu0
        %v1024 = vadd.f32 0.0, %v1023
        %v1025 = vpop.f32.mrf.mxu0
        %1026 = vdwg.mxu0
        %1027 = vxpose.xlu0.c.b16.start [1/8] %v585, 128
        %1028 = vxpose.xlu0.c.b16.cont [2/8] 0, 128
        %1029 = vxpose.xlu0.c.b16.cont [3/8] 0, 128
        %1030 = vxpose.xlu0.c.b16.cont [4/8] 0, 128
        %1031 = vxpose.xlu0.c.b16.cont [5/8] 0, 128
        %1032 = vxpose.xlu0.c.b16.cont [6/8] 0, 128
        %1033 = vxpose.xlu0.c.b16.cont [7/8] 0, 128
        %1034 = vxpose.xlu0.c.b16.end [8/8] 0, 128
        %v1035 = vpop.trf.xlu0
        %v1036 = vpop.trf.xlu0
        %v1037 = vpop.trf.xlu0
        %v1038 = vpop.trf.xlu0
        %v1039 = vpop.trf.xlu0
        %v1040 = vpop.trf.xlu0
        %v1041 = vpop.trf.xlu0
        %v1042 = vpop.trf.xlu0
        %v1044 = vsel %vm621, %v1035, 0
        %v1047 = vsel %vm625, %v601, 0
        %1049 = vmatpush.bf16.msra.mxu0 0
        %1050 = vmatpush.bf16.msra.mxu0 0
        %1051 = vmatpush.bf16.msra.mxu0 0
        %1052 = vmatpush.bf16.msra.mxu0 0
        %1053 = vmatpush.bf16.msra.mxu0 0
        %1054 = vmatpush.bf16.msra.mxu0 0
        %1055 = vmatpush.bf16.msra.mxu0 0
        %1056 = vmatpush.bf16.msra.mxu0 %v1047
        %1057 = vmatmul.bf16.gmra.mxu0 %v1044
        %v1058 = vpop.f32.mrf.mxu0
        %v1059 = vadd.f32 0.0, %v1058
        %v1060 = vpop.f32.mrf.mxu0
        %1061 = vdwg.mxu0
        %1062 = vxpose.xlu0.c.b16.start [1/8] %v586, 128
        %1063 = vxpose.xlu0.c.b16.cont [2/8] 0, 128
        %1064 = vxpose.xlu0.c.b16.cont [3/8] 0, 128
        %1065 = vxpose.xlu0.c.b16.cont [4/8] 0, 128
        %1066 = vxpose.xlu0.c.b16.cont [5/8] 0, 128
        %1067 = vxpose.xlu0.c.b16.cont [6/8] 0, 128
        %1068 = vxpose.xlu0.c.b16.cont [7/8] 0, 128
        %1069 = vxpose.xlu0.c.b16.end [8/8] 0, 128
        %v1070 = vpop.trf.xlu0
        %v1071 = vpop.trf.xlu0
        %v1072 = vpop.trf.xlu0
        %v1073 = vpop.trf.xlu0
        %v1074 = vpop.trf.xlu0
        %v1075 = vpop.trf.xlu0
        %v1076 = vpop.trf.xlu0
        %v1077 = vpop.trf.xlu0
        %v1079 = vsel %vm621, %v1070, 0
        %v1082 = vsel %vm625, %v602, 0
        %1084 = vmatpush.bf16.msra.mxu0 0
        %1085 = vmatpush.bf16.msra.mxu0 0
        %1086 = vmatpush.bf16.msra.mxu0 0
        %1087 = vmatpush.bf16.msra.mxu0 0
        %1088 = vmatpush.bf16.msra.mxu0 0
        %1089 = vmatpush.bf16.msra.mxu0 0
        %1090 = vmatpush.bf16.msra.mxu0 0
        %1091 = vmatpush.bf16.msra.mxu0 %v1082
        %1092 = vmatmul.bf16.gmra.mxu0 %v1079
        %v1093 = vpop.f32.mrf.mxu0
        %v1094 = vadd.f32 0.0, %v1093
        %v1095 = vpop.f32.mrf.mxu0
        %1096 = vdwg.mxu0
        %1097 = vxpose.xlu0.c.b16.start [1/8] %v587, 128
        %1098 = vxpose.xlu0.c.b16.cont [2/8] 0, 128
        %1099 = vxpose.xlu0.c.b16.cont [3/8] 0, 128
        %1100 = vxpose.xlu0.c.b16.cont [4/8] 0, 128
        %1101 = vxpose.xlu0.c.b16.cont [5/8] 0, 128
        %1102 = vxpose.xlu0.c.b16.cont [6/8] 0, 128
        %1103 = vxpose.xlu0.c.b16.cont [7/8] 0, 128
        %1104 = vxpose.xlu0.c.b16.end [8/8] 0, 128
        %v1105 = vpop.trf.xlu0
        %v1106 = vpop.trf.xlu0
        %v1107 = vpop.trf.xlu0
        %v1108 = vpop.trf.xlu0
        %v1109 = vpop.trf.xlu0
        %v1110 = vpop.trf.xlu0
        %v1111 = vpop.trf.xlu0
        %v1112 = vpop.trf.xlu0
        %v1114 = vsel %vm621, %v1105, 0
        %v1117 = vsel %vm625, %v603, 0
        %1119 = vmatpush.bf16.msra.mxu0 0
        %1120 = vmatpush.bf16.msra.mxu0 0
        %1121 = vmatpush.bf16.msra.mxu0 0
        %1122 = vmatpush.bf16.msra.mxu0 0
        %1123 = vmatpush.bf16.msra.mxu0 0
        %1124 = vmatpush.bf16.msra.mxu0 0
        %1125 = vmatpush.bf16.msra.mxu0 0
        %1126 = vmatpush.bf16.msra.mxu0 %v1117
        %1127 = vmatmul.bf16.gmra.mxu0 %v1114
        %v1128 = vpop.f32.mrf.mxu0
        %v1129 = vadd.f32 0.0, %v1128
        %v1130 = vpop.f32.mrf.mxu0
        %1131 = vdwg.mxu0
        %1132 = vxpose.xlu0.c.b16.start [1/8] %v588, 128
        %1133 = vxpose.xlu0.c.b16.cont [2/8] 0, 128
        %1134 = vxpose.xlu0.c.b16.cont [3/8] 0, 128
        %1135 = vxpose.xlu0.c.b16.cont [4/8] 0, 128
        %1136 = vxpose.xlu0.c.b16.cont [5/8] 0, 128
        %1137 = vxpose.xlu0.c.b16.cont [6/8] 0, 128
        %1138 = vxpose.xlu0.c.b16.cont [7/8] 0, 128
        %1139 = vxpose.xlu0.c.b16.end [8/8] 0, 128
        %v1140 = vpop.trf.xlu0
        %v1141 = vpop.trf.xlu0
        %v1142 = vpop.trf.xlu0
        %v1143 = vpop.trf.xlu0
        %v1144 = vpop.trf.xlu0
        %v1145 = vpop.trf.xlu0
        %v1146 = vpop.trf.xlu0
        %v1147 = vpop.trf.xlu0
        %v1149 = vsel %vm621, %v1140, 0
        %v1152 = vsel %vm625, %v604, 0
        %1154 = vmatpush.bf16.msra.mxu0 0
        %1155 = vmatpush.bf16.msra.mxu0 0
        %1156 = vmatpush.bf16.msra.mxu0 0
        %1157 = vmatpush.bf16.msra.mxu0 0
        %1158 = vmatpush.bf16.msra.mxu0 0
        %1159 = vmatpush.bf16.msra.mxu0 0
        %1160 = vmatpush.bf16.msra.mxu0 0
        %1161 = vmatpush.bf16.msra.mxu0 %v1152
        %1162 = vmatmul.bf16.gmra.mxu0 %v1149
        %v1163 = vpop.f32.mrf.mxu0
        %v1164 = vadd.f32 0.0, %v1163
        %v1165 = vpop.f32.mrf.mxu0
        %1166 = vdwg.mxu0
        %1167 = vxpose.xlu0.b32.start [1/16] %v557, 128
        %1168 = vxpose.xlu0.b32.cont [2/16] 0.0, 128
        %1169 = vxpose.xlu0.b32.cont [3/16] 0.0, 128
        %1170 = vxpose.xlu0.b32.cont [4/16] 0.0, 128
        %1171 = vxpose.xlu0.b32.cont [5/16] 0.0, 128
        %1172 = vxpose.xlu0.b32.cont [6/16] 0.0, 128
        %1173 = vxpose.xlu0.b32.cont [7/16] 0.0, 128
        %1174 = vxpose.xlu0.b32.cont [8/16] 0.0, 128
        %1175 = vxpose.xlu0.b32.cont [9/16] 0.0, 128
        %1176 = vxpose.xlu0.b32.cont [10/16] 0.0, 128
        %1177 = vxpose.xlu0.b32.cont [11/16] 0.0, 128
        %1178 = vxpose.xlu0.b32.cont [12/16] 0.0, 128
        %1179 = vxpose.xlu0.b32.cont [13/16] 0.0, 128
        %1180 = vxpose.xlu0.b32.cont [14/16] 0.0, 128
        %1181 = vxpose.xlu0.b32.cont [15/16] 0.0, 128
        %1182 = vxpose.xlu0.b32.end [16/16] 0.0, 128
        %v1183 = vpop.trf.xlu0
        %v1184 = vpop.trf.xlu0
        %v1185 = vpop.trf.xlu0
        %v1186 = vpop.trf.xlu0
        %v1187 = vpop.trf.xlu0
        %v1188 = vpop.trf.xlu0
        %v1189 = vpop.trf.xlu0
        %v1190 = vpop.trf.xlu0
        %v1191 = vpop.trf.xlu0
        %v1192 = vpop.trf.xlu0
        %v1193 = vpop.trf.xlu0
        %v1194 = vpop.trf.xlu0
        %v1195 = vpop.trf.xlu0
        %v1196 = vpop.trf.xlu0
        %v1197 = vpop.trf.xlu0
        %v1198 = vpop.trf.xlu0
        %v1200 = vsel %vm621, %v1183, 0
        %1202 = vmatpush.msra.mxu0 0.0
        %1203 = vmatpush.msra.mxu0 0.0
        %1204 = vmatpush.msra.mxu0 0.0
        %1205 = vmatpush.msra.mxu0 0.0
        %1206 = vmatpush.msra.mxu0 0.0
        %1207 = vmatpush.msra.mxu0 0.0
        %1208 = vmatpush.msra.mxu0 0.0
        %1209 = vmatpush.msra.mxu0 0.0
        %1210 = vmatpush.msra.mxu0 0.0
        %1211 = vmatpush.msra.mxu0 0.0
        %1212 = vmatpush.msra.mxu0 0.0
        %1213 = vmatpush.msra.mxu0 0.0
        %1214 = vmatpush.msra.mxu0 0.0
        %1215 = vmatpush.msra.mxu0 0.0
        %1216 = vmatpush.msra.mxu0 0.0
        %1217 = vmatpush.msra.mxu0 1.0
        %1218 = vmatmul.f32.gmra.mxu0 %v1200
        %v1219 = vpop.f32.mrf.mxu0
        %v1220 = vadd.f32 0.0, %v1219
        %1221 = vdwg.mxu0
        %1222 = vxpose.xlu0.b32.start [1/16] %v558, 128
        %1223 = vxpose.xlu0.b32.cont [2/16] 0.0, 128
        %1224 = vxpose.xlu0.b32.cont [3/16] 0.0, 128
        %1225 = vxpose.xlu0.b32.cont [4/16] 0.0, 128
        %1226 = vxpose.xlu0.b32.cont [5/16] 0.0, 128
        %1227 = vxpose.xlu0.b32.cont [6/16] 0.0, 128
        %1228 = vxpose.xlu0.b32.cont [7/16] 0.0, 128
        %1229 = vxpose.xlu0.b32.cont [8/16] 0.0, 128
        %1230 = vxpose.xlu0.b32.cont [9/16] 0.0, 128
        %1231 = vxpose.xlu0.b32.cont [10/16] 0.0, 128
        %1232 = vxpose.xlu0.b32.cont [11/16] 0.0, 128
        %1233 = vxpose.xlu0.b32.cont [12/16] 0.0, 128
        %1234 = vxpose.xlu0.b32.cont [13/16] 0.0, 128
        %1235 = vxpose.xlu0.b32.cont [14/16] 0.0, 128
        %1236 = vxpose.xlu0.b32.cont [15/16] 0.0, 128
        %1237 = vxpose.xlu0.b32.end [16/16] 0.0, 128
        %v1238 = vpop.trf.xlu0
        %v1239 = vpop.trf.xlu0
        %v1240 = vpop.trf.xlu0
        %v1241 = vpop.trf.xlu0
        %v1242 = vpop.trf.xlu0
        %v1243 = vpop.trf.xlu0
        %v1244 = vpop.trf.xlu0
        %v1245 = vpop.trf.xlu0
        %v1246 = vpop.trf.xlu0
        %v1247 = vpop.trf.xlu0
        %v1248 = vpop.trf.xlu0
        %v1249 = vpop.trf.xlu0
        %v1250 = vpop.trf.xlu0
        %v1251 = vpop.trf.xlu0
        %v1252 = vpop.trf.xlu0
        %v1253 = vpop.trf.xlu0
        %v1255 = vsel %vm621, %v1238, 0
        %1257 = vmatpush.msra.mxu0 0.0
        %1258 = vmatpush.msra.mxu0 0.0
        %1259 = vmatpush.msra.mxu0 0.0
        %1260 = vmatpush.msra.mxu0 0.0
        %1261 = vmatpush.msra.mxu0 0.0
        %1262 = vmatpush.msra.mxu0 0.0
        %1263 = vmatpush.msra.mxu0 0.0
        %1264 = vmatpush.msra.mxu0 0.0
        %1265 = vmatpush.msra.mxu0 0.0
        %1266 = vmatpush.msra.mxu0 0.0
        %1267 = vmatpush.msra.mxu0 0.0
        %1268 = vmatpush.msra.mxu0 0.0
        %1269 = vmatpush.msra.mxu0 0.0
        %1270 = vmatpush.msra.mxu0 0.0
        %1271 = vmatpush.msra.mxu0 0.0
        %1272 = vmatpush.msra.mxu0 1.0
        %1273 = vmatmul.f32.gmra.mxu0 %v1255
        %v1274 = vpop.f32.mrf.mxu0
        %v1275 = vadd.f32 0.0, %v1274
        %1276 = vdwg.mxu0
        %1277 = vxpose.xlu0.b32.start [1/16] %v559, 128
        %1278 = vxpose.xlu0.b32.cont [2/16] 0.0, 128
        %1279 = vxpose.xlu0.b32.cont [3/16] 0.0, 128
        %1280 = vxpose.xlu0.b32.cont [4/16] 0.0, 128
        %1281 = vxpose.xlu0.b32.cont [5/16] 0.0, 128
        %1282 = vxpose.xlu0.b32.cont [6/16] 0.0, 128
        %1283 = vxpose.xlu0.b32.cont [7/16] 0.0, 128
        %1284 = vxpose.xlu0.b32.cont [8/16] 0.0, 128
        %1285 = vxpose.xlu0.b32.cont [9/16] 0.0, 128
        %1286 = vxpose.xlu0.b32.cont [10/16] 0.0, 128
        %1287 = vxpose.xlu0.b32.cont [11/16] 0.0, 128
        %1288 = vxpose.xlu0.b32.cont [12/16] 0.0, 128
        %1289 = vxpose.xlu0.b32.cont [13/16] 0.0, 128
        %1290 = vxpose.xlu0.b32.cont [14/16] 0.0, 128
        %1291 = vxpose.xlu0.b32.cont [15/16] 0.0, 128
        %1292 = vxpose.xlu0.b32.end [16/16] 0.0, 128
        %v1293 = vpop.trf.xlu0
        %v1294 = vpop.trf.xlu0
        %v1295 = vpop.trf.xlu0
        %v1296 = vpop.trf.xlu0
        %v1297 = vpop.trf.xlu0
        %v1298 = vpop.trf.xlu0
        %v1299 = vpop.trf.xlu0
        %v1300 = vpop.trf.xlu0
        %v1301 = vpop.trf.xlu0
        %v1302 = vpop.trf.xlu0
        %v1303 = vpop.trf.xlu0
        %v1304 = vpop.trf.xlu0
        %v1305 = vpop.trf.xlu0
        %v1306 = vpop.trf.xlu0
        %v1307 = vpop.trf.xlu0
        %v1308 = vpop.trf.xlu0
        %v1310 = vsel %vm621, %v1293, 0
        %1312 = vmatpush.msra.mxu0 0.0
        %1313 = vmatpush.msra.mxu0 0.0
        %1314 = vmatpush.msra.mxu0 0.0
        %1315 = vmatpush.msra.mxu0 0.0
        %1316 = vmatpush.msra.mxu0 0.0
        %1317 = vmatpush.msra.mxu0 0.0
        %1318 = vmatpush.msra.mxu0 0.0
        %1319 = vmatpush.msra.mxu0 0.0
        %1320 = vmatpush.msra.mxu0 0.0
        %1321 = vmatpush.msra.mxu0 0.0
        %1322 = vmatpush.msra.mxu0 0.0
        %1323 = vmatpush.msra.mxu0 0.0
        %1324 = vmatpush.msra.mxu0 0.0
        %1325 = vmatpush.msra.mxu0 0.0
        %1326 = vmatpush.msra.mxu0 0.0
        %1327 = vmatpush.msra.mxu0 1.0
        %1328 = vmatmul.f32.gmra.mxu0 %v1310
        %v1329 = vpop.f32.mrf.mxu0
        %v1330 = vadd.f32 0.0, %v1329
        %1331 = vdwg.mxu0
        %1332 = vxpose.xlu0.b32.start [1/16] %v560, 128
        %1333 = vxpose.xlu0.b32.cont [2/16] 0.0, 128
        %1334 = vxpose.xlu0.b32.cont [3/16] 0.0, 128
        %1335 = vxpose.xlu0.b32.cont [4/16] 0.0, 128
        %1336 = vxpose.xlu0.b32.cont [5/16] 0.0, 128
        %1337 = vxpose.xlu0.b32.cont [6/16] 0.0, 128
        %1338 = vxpose.xlu0.b32.cont [7/16] 0.0, 128
        %1339 = vxpose.xlu0.b32.cont [8/16] 0.0, 128
        %1340 = vxpose.xlu0.b32.cont [9/16] 0.0, 128
        %1341 = vxpose.xlu0.b32.cont [10/16] 0.0, 128
        %1342 = vxpose.xlu0.b32.cont [11/16] 0.0, 128
        %1343 = vxpose.xlu0.b32.cont [12/16] 0.0, 128
        %1344 = vxpose.xlu0.b32.cont [13/16] 0.0, 128
        %1345 = vxpose.xlu0.b32.cont [14/16] 0.0, 128
        %1346 = vxpose.xlu0.b32.cont [15/16] 0.0, 128
        %1347 = vxpose.xlu0.b32.end [16/16] 0.0, 128
        %v1348 = vpop.trf.xlu0
        %v1349 = vpop.trf.xlu0
        %v1350 = vpop.trf.xlu0
        %v1351 = vpop.trf.xlu0
        %v1352 = vpop.trf.xlu0
        %v1353 = vpop.trf.xlu0
        %v1354 = vpop.trf.xlu0
        %v1355 = vpop.trf.xlu0
        %v1356 = vpop.trf.xlu0
        %v1357 = vpop.trf.xlu0
        %v1358 = vpop.trf.xlu0
        %v1359 = vpop.trf.xlu0
        %v1360 = vpop.trf.xlu0
        %v1361 = vpop.trf.xlu0
        %v1362 = vpop.trf.xlu0
        %v1363 = vpop.trf.xlu0
        %v1365 = vsel %vm621, %v1348, 0
        %1367 = vmatpush.msra.mxu0 0.0
        %1368 = vmatpush.msra.mxu0 0.0
        %1369 = vmatpush.msra.mxu0 0.0
        %1370 = vmatpush.msra.mxu0 0.0
        %1371 = vmatpush.msra.mxu0 0.0
        %1372 = vmatpush.msra.mxu0 0.0
        %1373 = vmatpush.msra.mxu0 0.0
        %1374 = vmatpush.msra.mxu0 0.0
        %1375 = vmatpush.msra.mxu0 0.0
        %1376 = vmatpush.msra.mxu0 0.0
        %1377 = vmatpush.msra.mxu0 0.0
        %1378 = vmatpush.msra.mxu0 0.0
        %1379 = vmatpush.msra.mxu0 0.0
        %1380 = vmatpush.msra.mxu0 0.0
        %1381 = vmatpush.msra.mxu0 0.0
        %1382 = vmatpush.msra.mxu0 1.0
        %1383 = vmatmul.f32.gmra.mxu0 %v1365
        %v1384 = vpop.f32.mrf.mxu0
        %v1385 = vadd.f32 0.0, %v1384
        %1386 = vdwg.mxu0
        %1387 = vxpose.xlu0.b32.start [1/16] %v561, 128
        %1388 = vxpose.xlu0.b32.cont [2/16] 0.0, 128
        %1389 = vxpose.xlu0.b32.cont [3/16] 0.0, 128
        %1390 = vxpose.xlu0.b32.cont [4/16] 0.0, 128
        %1391 = vxpose.xlu0.b32.cont [5/16] 0.0, 128
        %1392 = vxpose.xlu0.b32.cont [6/16] 0.0, 128
        %1393 = vxpose.xlu0.b32.cont [7/16] 0.0, 128
        %1394 = vxpose.xlu0.b32.cont [8/16] 0.0, 128
        %1395 = vxpose.xlu0.b32.cont [9/16] 0.0, 128
        %1396 = vxpose.xlu0.b32.cont [10/16] 0.0, 128
        %1397 = vxpose.xlu0.b32.cont [11/16] 0.0, 128
        %1398 = vxpose.xlu0.b32.cont [12/16] 0.0, 128
        %1399 = vxpose.xlu0.b32.cont [13/16] 0.0, 128
        %1400 = vxpose.xlu0.b32.cont [14/16] 0.0, 128
        %1401 = vxpose.xlu0.b32.cont [15/16] 0.0, 128
        %1402 = vxpose.xlu0.b32.end [16/16] 0.0, 128
        %v1403 = vpop.trf.xlu0
        %v1404 = vpop.trf.xlu0
        %v1405 = vpop.trf.xlu0
        %v1406 = vpop.trf.xlu0
        %v1407 = vpop.trf.xlu0
        %v1408 = vpop.trf.xlu0
        %v1409 = vpop.trf.xlu0
        %v1410 = vpop.trf.xlu0
        %v1411 = vpop.trf.xlu0
        %v1412 = vpop.trf.xlu0
        %v1413 = vpop.trf.xlu0
        %v1414 = vpop.trf.xlu0
        %v1415 = vpop.trf.xlu0
        %v1416 = vpop.trf.xlu0
        %v1417 = vpop.trf.xlu0
        %v1418 = vpop.trf.xlu0
        %v1420 = vsel %vm621, %v1403, 0
        %1422 = vmatpush.msra.mxu0 0.0
        %1423 = vmatpush.msra.mxu0 0.0
        %1424 = vmatpush.msra.mxu0 0.0
        %1425 = vmatpush.msra.mxu0 0.0
        %1426 = vmatpush.msra.mxu0 0.0
        %1427 = vmatpush.msra.mxu0 0.0
        %1428 = vmatpush.msra.mxu0 0.0
        %1429 = vmatpush.msra.mxu0 0.0
        %1430 = vmatpush.msra.mxu0 0.0
        %1431 = vmatpush.msra.mxu0 0.0
        %1432 = vmatpush.msra.mxu0 0.0
        %1433 = vmatpush.msra.mxu0 0.0
        %1434 = vmatpush.msra.mxu0 0.0
        %1435 = vmatpush.msra.mxu0 0.0
        %1436 = vmatpush.msra.mxu0 0.0
        %1437 = vmatpush.msra.mxu0 1.0
        %1438 = vmatmul.f32.gmra.mxu0 %v1420
        %v1439 = vpop.f32.mrf.mxu0
        %v1440 = vadd.f32 0.0, %v1439
        %1441 = vdwg.mxu0
        %1442 = vxpose.xlu0.b32.start [1/16] %v562, 128
        %1443 = vxpose.xlu0.b32.cont [2/16] 0.0, 128
        %1444 = vxpose.xlu0.b32.cont [3/16] 0.0, 128
        %1445 = vxpose.xlu0.b32.cont [4/16] 0.0, 128
        %1446 = vxpose.xlu0.b32.cont [5/16] 0.0, 128
        %1447 = vxpose.xlu0.b32.cont [6/16] 0.0, 128
        %1448 = vxpose.xlu0.b32.cont [7/16] 0.0, 128
        %1449 = vxpose.xlu0.b32.cont [8/16] 0.0, 128
        %1450 = vxpose.xlu0.b32.cont [9/16] 0.0, 128
        %1451 = vxpose.xlu0.b32.cont [10/16] 0.0, 128
        %1452 = vxpose.xlu0.b32.cont [11/16] 0.0, 128
        %1453 = vxpose.xlu0.b32.cont [12/16] 0.0, 128
        %1454 = vxpose.xlu0.b32.cont [13/16] 0.0, 128
        %1455 = vxpose.xlu0.b32.cont [14/16] 0.0, 128
        %1456 = vxpose.xlu0.b32.cont [15/16] 0.0, 128
        %1457 = vxpose.xlu0.b32.end [16/16] 0.0, 128
        %v1458 = vpop.trf.xlu0
        %v1459 = vpop.trf.xlu0
        %v1460 = vpop.trf.xlu0
        %v1461 = vpop.trf.xlu0
        %v1462 = vpop.trf.xlu0
        %v1463 = vpop.trf.xlu0
        %v1464 = vpop.trf.xlu0
        %v1465 = vpop.trf.xlu0
        %v1466 = vpop.trf.xlu0
        %v1467 = vpop.trf.xlu0
        %v1468 = vpop.trf.xlu0
        %v1469 = vpop.trf.xlu0
        %v1470 = vpop.trf.xlu0
        %v1471 = vpop.trf.xlu0
        %v1472 = vpop.trf.xlu0
        %v1473 = vpop.trf.xlu0
        %v1475 = vsel %vm621, %v1458, 0
        %1477 = vmatpush.msra.mxu0 0.0
        %1478 = vmatpush.msra.mxu0 0.0
        %1479 = vmatpush.msra.mxu0 0.0
        %1480 = vmatpush.msra.mxu0 0.0
        %1481 = vmatpush.msra.mxu0 0.0
        %1482 = vmatpush.msra.mxu0 0.0
        %1483 = vmatpush.msra.mxu0 0.0
        %1484 = vmatpush.msra.mxu0 0.0
        %1485 = vmatpush.msra.mxu0 0.0
        %1486 = vmatpush.msra.mxu0 0.0
        %1487 = vmatpush.msra.mxu0 0.0
        %1488 = vmatpush.msra.mxu0 0.0
        %1489 = vmatpush.msra.mxu0 0.0
        %1490 = vmatpush.msra.mxu0 0.0
        %1491 = vmatpush.msra.mxu0 0.0
        %1492 = vmatpush.msra.mxu0 1.0
        %1493 = vmatmul.f32.gmra.mxu0 %v1475
        %v1494 = vpop.f32.mrf.mxu0
        %v1495 = vadd.f32 0.0, %v1494
        %1496 = vdwg.mxu0
        %1497 = vxpose.xlu0.b32.start [1/16] %v563, 128
        %1498 = vxpose.xlu0.b32.cont [2/16] 0.0, 128
        %1499 = vxpose.xlu0.b32.cont [3/16] 0.0, 128
        %1500 = vxpose.xlu0.b32.cont [4/16] 0.0, 128
        %1501 = vxpose.xlu0.b32.cont [5/16] 0.0, 128
        %1502 = vxpose.xlu0.b32.cont [6/16] 0.0, 128
        %1503 = vxpose.xlu0.b32.cont [7/16] 0.0, 128
        %1504 = vxpose.xlu0.b32.cont [8/16] 0.0, 128
        %1505 = vxpose.xlu0.b32.cont [9/16] 0.0, 128
        %1506 = vxpose.xlu0.b32.cont [10/16] 0.0, 128
        %1507 = vxpose.xlu0.b32.cont [11/16] 0.0, 128
        %1508 = vxpose.xlu0.b32.cont [12/16] 0.0, 128
        %1509 = vxpose.xlu0.b32.cont [13/16] 0.0, 128
        %1510 = vxpose.xlu0.b32.cont [14/16] 0.0, 128
        %1511 = vxpose.xlu0.b32.cont [15/16] 0.0, 128
        %1512 = vxpose.xlu0.b32.end [16/16] 0.0, 128
        %v1513 = vpop.trf.xlu0
        %v1514 = vpop.trf.xlu0
        %v1515 = vpop.trf.xlu0
        %v1516 = vpop.trf.xlu0
        %v1517 = vpop.trf.xlu0
        %v1518 = vpop.trf.xlu0
        %v1519 = vpop.trf.xlu0
        %v1520 = vpop.trf.xlu0
        %v1521 = vpop.trf.xlu0
        %v1522 = vpop.trf.xlu0
        %v1523 = vpop.trf.xlu0
        %v1524 = vpop.trf.xlu0
        %v1525 = vpop.trf.xlu0
        %v1526 = vpop.trf.xlu0
        %v1527 = vpop.trf.xlu0
        %v1528 = vpop.trf.xlu0
        %v1530 = vsel %vm621, %v1513, 0
        %1532 = vmatpush.msra.mxu0 0.0
        %1533 = vmatpush.msra.mxu0 0.0
        %1534 = vmatpush.msra.mxu0 0.0
        %1535 = vmatpush.msra.mxu0 0.0
        %1536 = vmatpush.msra.mxu0 0.0
        %1537 = vmatpush.msra.mxu0 0.0
        %1538 = vmatpush.msra.mxu0 0.0
        %1539 = vmatpush.msra.mxu0 0.0
        %1540 = vmatpush.msra.mxu0 0.0
        %1541 = vmatpush.msra.mxu0 0.0
        %1542 = vmatpush.msra.mxu0 0.0
        %1543 = vmatpush.msra.mxu0 0.0
        %1544 = vmatpush.msra.mxu0 0.0
        %1545 = vmatpush.msra.mxu0 0.0
        %1546 = vmatpush.msra.mxu0 0.0
        %1547 = vmatpush.msra.mxu0 1.0
        %1548 = vmatmul.f32.gmra.mxu0 %v1530
        %v1549 = vpop.f32.mrf.mxu0
        %v1550 = vadd.f32 0.0, %v1549
        %1551 = vdwg.mxu0
        %1552 = vxpose.xlu0.b32.start [1/16] %v564, 128
        %1553 = vxpose.xlu0.b32.cont [2/16] 0.0, 128
        %1554 = vxpose.xlu0.b32.cont [3/16] 0.0, 128
        %1555 = vxpose.xlu0.b32.cont [4/16] 0.0, 128
        %1556 = vxpose.xlu0.b32.cont [5/16] 0.0, 128
        %1557 = vxpose.xlu0.b32.cont [6/16] 0.0, 128
        %1558 = vxpose.xlu0.b32.cont [7/16] 0.0, 128
        %1559 = vxpose.xlu0.b32.cont [8/16] 0.0, 128
        %1560 = vxpose.xlu0.b32.cont [9/16] 0.0, 128
        %1561 = vxpose.xlu0.b32.cont [10/16] 0.0, 128
        %1562 = vxpose.xlu0.b32.cont [11/16] 0.0, 128
        %1563 = vxpose.xlu0.b32.cont [12/16] 0.0, 128
        %1564 = vxpose.xlu0.b32.cont [13/16] 0.0, 128
        %1565 = vxpose.xlu0.b32.cont [14/16] 0.0, 128
        %1566 = vxpose.xlu0.b32.cont [15/16] 0.0, 128
        %1567 = vxpose.xlu0.b32.end [16/16] 0.0, 128
        %v1568 = vpop.trf.xlu0
        %v1569 = vpop.trf.xlu0
        %v1570 = vpop.trf.xlu0
        %v1571 = vpop.trf.xlu0
        %v1572 = vpop.trf.xlu0
        %v1573 = vpop.trf.xlu0
        %v1574 = vpop.trf.xlu0
        %v1575 = vpop.trf.xlu0
        %v1576 = vpop.trf.xlu0
        %v1577 = vpop.trf.xlu0
        %v1578 = vpop.trf.xlu0
        %v1579 = vpop.trf.xlu0
        %v1580 = vpop.trf.xlu0
        %v1581 = vpop.trf.xlu0
        %v1582 = vpop.trf.xlu0
        %v1583 = vpop.trf.xlu0
        %v1585 = vsel %vm621, %v1568, 0
        %1587 = vmatpush.msra.mxu0 0.0
        %1588 = vmatpush.msra.mxu0 0.0
        %1589 = vmatpush.msra.mxu0 0.0
        %1590 = vmatpush.msra.mxu0 0.0
        %1591 = vmatpush.msra.mxu0 0.0
        %1592 = vmatpush.msra.mxu0 0.0
        %1593 = vmatpush.msra.mxu0 0.0
        %1594 = vmatpush.msra.mxu0 0.0
        %1595 = vmatpush.msra.mxu0 0.0
        %1596 = vmatpush.msra.mxu0 0.0
        %1597 = vmatpush.msra.mxu0 0.0
        %1598 = vmatpush.msra.mxu0 0.0
        %1599 = vmatpush.msra.mxu0 0.0
        %1600 = vmatpush.msra.mxu0 0.0
        %1601 = vmatpush.msra.mxu0 0.0
        %1602 = vmatpush.msra.mxu0 1.0
        %1603 = vmatmul.f32.gmra.mxu0 %v1585
        %v1604 = vpop.f32.mrf.mxu0
        %v1605 = vadd.f32 0.0, %v1604
        %1606 = vdwg.mxu0
        %1607 = vxpose.xlu0.b32.start [1/16] %v565, 128
        %1608 = vxpose.xlu0.b32.cont [2/16] 0.0, 128
        %1609 = vxpose.xlu0.b32.cont [3/16] 0.0, 128
        %1610 = vxpose.xlu0.b32.cont [4/16] 0.0, 128
        %1611 = vxpose.xlu0.b32.cont [5/16] 0.0, 128
        %1612 = vxpose.xlu0.b32.cont [6/16] 0.0, 128
        %1613 = vxpose.xlu0.b32.cont [7/16] 0.0, 128
        %1614 = vxpose.xlu0.b32.cont [8/16] 0.0, 128
        %1615 = vxpose.xlu0.b32.cont [9/16] 0.0, 128
        %1616 = vxpose.xlu0.b32.cont [10/16] 0.0, 128
        %1617 = vxpose.xlu0.b32.cont [11/16] 0.0, 128
        %1618 = vxpose.xlu0.b32.cont [12/16] 0.0, 128
        %1619 = vxpose.xlu0.b32.cont [13/16] 0.0, 128
        %1620 = vxpose.xlu0.b32.cont [14/16] 0.0, 128
        %1621 = vxpose.xlu0.b32.cont [15/16] 0.0, 128
        %1622 = vxpose.xlu0.b32.end [16/16] 0.0, 128
        %v1623 = vpop.trf.xlu0
        %v1624 = vpop.trf.xlu0
        %v1625 = vpop.trf.xlu0
        %v1626 = vpop.trf.xlu0
        %v1627 = vpop.trf.xlu0
        %v1628 = vpop.trf.xlu0
        %v1629 = vpop.trf.xlu0
        %v1630 = vpop.trf.xlu0
        %v1631 = vpop.trf.xlu0
        %v1632 = vpop.trf.xlu0
        %v1633 = vpop.trf.xlu0
        %v1634 = vpop.trf.xlu0
        %v1635 = vpop.trf.xlu0
        %v1636 = vpop.trf.xlu0
        %v1637 = vpop.trf.xlu0
        %v1638 = vpop.trf.xlu0
        %v1640 = vsel %vm621, %v1623, 0
        %1642 = vmatpush.msra.mxu0 0.0
        %1643 = vmatpush.msra.mxu0 0.0
        %1644 = vmatpush.msra.mxu0 0.0
        %1645 = vmatpush.msra.mxu0 0.0
        %1646 = vmatpush.msra.mxu0 0.0
        %1647 = vmatpush.msra.mxu0 0.0
        %1648 = vmatpush.msra.mxu0 0.0
        %1649 = vmatpush.msra.mxu0 0.0
        %1650 = vmatpush.msra.mxu0 0.0
        %1651 = vmatpush.msra.mxu0 0.0
        %1652 = vmatpush.msra.mxu0 0.0
        %1653 = vmatpush.msra.mxu0 0.0
        %1654 = vmatpush.msra.mxu0 0.0
        %1655 = vmatpush.msra.mxu0 0.0
        %1656 = vmatpush.msra.mxu0 0.0
        %1657 = vmatpush.msra.mxu0 1.0
        %1658 = vmatmul.f32.gmra.mxu0 %v1640
        %v1659 = vpop.f32.mrf.mxu0
        %v1660 = vadd.f32 0.0, %v1659
        %1661 = vdwg.mxu0
        %1662 = vxpose.xlu0.b32.start [1/16] %v566, 128
        %1663 = vxpose.xlu0.b32.cont [2/16] 0.0, 128
        %1664 = vxpose.xlu0.b32.cont [3/16] 0.0, 128
        %1665 = vxpose.xlu0.b32.cont [4/16] 0.0, 128
        %1666 = vxpose.xlu0.b32.cont [5/16] 0.0, 128
        %1667 = vxpose.xlu0.b32.cont [6/16] 0.0, 128
        %1668 = vxpose.xlu0.b32.cont [7/16] 0.0, 128
        %1669 = vxpose.xlu0.b32.cont [8/16] 0.0, 128
        %1670 = vxpose.xlu0.b32.cont [9/16] 0.0, 128
        %1671 = vxpose.xlu0.b32.cont [10/16] 0.0, 128
        %1672 = vxpose.xlu0.b32.cont [11/16] 0.0, 128
        %1673 = vxpose.xlu0.b32.cont [12/16] 0.0, 128
        %1674 = vxpose.xlu0.b32.cont [13/16] 0.0, 128
        %1675 = vxpose.xlu0.b32.cont [14/16] 0.0, 128
        %1676 = vxpose.xlu0.b32.cont [15/16] 0.0, 128
        %1677 = vxpose.xlu0.b32.end [16/16] 0.0, 128
        %v1678 = vpop.trf.xlu0
        %v1679 = vpop.trf.xlu0
        %v1680 = vpop.trf.xlu0
        %v1681 = vpop.trf.xlu0
        %v1682 = vpop.trf.xlu0
        %v1683 = vpop.trf.xlu0
        %v1684 = vpop.trf.xlu0
        %v1685 = vpop.trf.xlu0
        %v1686 = vpop.trf.xlu0
        %v1687 = vpop.trf.xlu0
        %v1688 = vpop.trf.xlu0
        %v1689 = vpop.trf.xlu0
        %v1690 = vpop.trf.xlu0
        %v1691 = vpop.trf.xlu0
        %v1692 = vpop.trf.xlu0
        %v1693 = vpop.trf.xlu0
        %v1695 = vsel %vm621, %v1678, 0
        %1697 = vmatpush.msra.mxu0 0.0
        %1698 = vmatpush.msra.mxu0 0.0
        %1699 = vmatpush.msra.mxu0 0.0
        %1700 = vmatpush.msra.mxu0 0.0
        %1701 = vmatpush.msra.mxu0 0.0
        %1702 = vmatpush.msra.mxu0 0.0
        %1703 = vmatpush.msra.mxu0 0.0
        %1704 = vmatpush.msra.mxu0 0.0
        %1705 = vmatpush.msra.mxu0 0.0
        %1706 = vmatpush.msra.mxu0 0.0
        %1707 = vmatpush.msra.mxu0 0.0
        %1708 = vmatpush.msra.mxu0 0.0
        %1709 = vmatpush.msra.mxu0 0.0
        %1710 = vmatpush.msra.mxu0 0.0
        %1711 = vmatpush.msra.mxu0 0.0
        %1712 = vmatpush.msra.mxu0 1.0
        %1713 = vmatmul.f32.gmra.mxu0 %v1695
        %v1714 = vpop.f32.mrf.mxu0
        %v1715 = vadd.f32 0.0, %v1714
        %1716 = vdwg.mxu0
        %1717 = vxpose.xlu0.b32.start [1/16] %v567, 128
        %1718 = vxpose.xlu0.b32.cont [2/16] 0.0, 128
        %1719 = vxpose.xlu0.b32.cont [3/16] 0.0, 128
        %1720 = vxpose.xlu0.b32.cont [4/16] 0.0, 128
        %1721 = vxpose.xlu0.b32.cont [5/16] 0.0, 128
        %1722 = vxpose.xlu0.b32.cont [6/16] 0.0, 128
        %1723 = vxpose.xlu0.b32.cont [7/16] 0.0, 128
        %1724 = vxpose.xlu0.b32.cont [8/16] 0.0, 128
        %1725 = vxpose.xlu0.b32.cont [9/16] 0.0, 128
        %1726 = vxpose.xlu0.b32.cont [10/16] 0.0, 128
        %1727 = vxpose.xlu0.b32.cont [11/16] 0.0, 128
        %1728 = vxpose.xlu0.b32.cont [12/16] 0.0, 128
        %1729 = vxpose.xlu0.b32.cont [13/16] 0.0, 128
        %1730 = vxpose.xlu0.b32.cont [14/16] 0.0, 128
        %1731 = vxpose.xlu0.b32.cont [15/16] 0.0, 128
        %1732 = vxpose.xlu0.b32.end [16/16] 0.0, 128
        %v1733 = vpop.trf.xlu0
        %v1734 = vpop.trf.xlu0
        %v1735 = vpop.trf.xlu0
        %v1736 = vpop.trf.xlu0
        %v1737 = vpop.trf.xlu0
        %v1738 = vpop.trf.xlu0
        %v1739 = vpop.trf.xlu0
        %v1740 = vpop.trf.xlu0
        %v1741 = vpop.trf.xlu0
        %v1742 = vpop.trf.xlu0
        %v1743 = vpop.trf.xlu0
        %v1744 = vpop.trf.xlu0
        %v1745 = vpop.trf.xlu0
        %v1746 = vpop.trf.xlu0
        %v1747 = vpop.trf.xlu0
        %v1748 = vpop.trf.xlu0
        %v1750 = vsel %vm621, %v1733, 0
        %1752 = vmatpush.msra.mxu0 0.0
        %1753 = vmatpush.msra.mxu0 0.0
        %1754 = vmatpush.msra.mxu0 0.0
        %1755 = vmatpush.msra.mxu0 0.0
        %1756 = vmatpush.msra.mxu0 0.0
        %1757 = vmatpush.msra.mxu0 0.0
        %1758 = vmatpush.msra.mxu0 0.0
        %1759 = vmatpush.msra.mxu0 0.0
        %1760 = vmatpush.msra.mxu0 0.0
        %1761 = vmatpush.msra.mxu0 0.0
        %1762 = vmatpush.msra.mxu0 0.0
        %1763 = vmatpush.msra.mxu0 0.0
        %1764 = vmatpush.msra.mxu0 0.0
        %1765 = vmatpush.msra.mxu0 0.0
        %1766 = vmatpush.msra.mxu0 0.0
        %1767 = vmatpush.msra.mxu0 1.0
        %1768 = vmatmul.f32.gmra.mxu0 %v1750
        %v1769 = vpop.f32.mrf.mxu0
        %v1770 = vadd.f32 0.0, %v1769
        %1771 = vdwg.mxu0
        %1772 = vxpose.xlu0.b32.start [1/16] %v568, 128
        %1773 = vxpose.xlu0.b32.cont [2/16] 0.0, 128
        %1774 = vxpose.xlu0.b32.cont [3/16] 0.0, 128
        %1775 = vxpose.xlu0.b32.cont [4/16] 0.0, 128
        %1776 = vxpose.xlu0.b32.cont [5/16] 0.0, 128
        %1777 = vxpose.xlu0.b32.cont [6/16] 0.0, 128
        %1778 = vxpose.xlu0.b32.cont [7/16] 0.0, 128
        %1779 = vxpose.xlu0.b32.cont [8/16] 0.0, 128
        %1780 = vxpose.xlu0.b32.cont [9/16] 0.0, 128
        %1781 = vxpose.xlu0.b32.cont [10/16] 0.0, 128
        %1782 = vxpose.xlu0.b32.cont [11/16] 0.0, 128
        %1783 = vxpose.xlu0.b32.cont [12/16] 0.0, 128
        %1784 = vxpose.xlu0.b32.cont [13/16] 0.0, 128
        %1785 = vxpose.xlu0.b32.cont [14/16] 0.0, 128
        %1786 = vxpose.xlu0.b32.cont [15/16] 0.0, 128
        %1787 = vxpose.xlu0.b32.end [16/16] 0.0, 128
        %v1788 = vpop.trf.xlu0
        %v1789 = vpop.trf.xlu0
        %v1790 = vpop.trf.xlu0
        %v1791 = vpop.trf.xlu0
        %v1792 = vpop.trf.xlu0
        %v1793 = vpop.trf.xlu0
        %v1794 = vpop.trf.xlu0
        %v1795 = vpop.trf.xlu0
        %v1796 = vpop.trf.xlu0
        %v1797 = vpop.trf.xlu0
        %v1798 = vpop.trf.xlu0
        %v1799 = vpop.trf.xlu0
        %v1800 = vpop.trf.xlu0
        %v1801 = vpop.trf.xlu0
        %v1802 = vpop.trf.xlu0
        %v1803 = vpop.trf.xlu0
        %v1805 = vsel %vm621, %v1788, 0
        %1807 = vmatpush.msra.mxu0 0.0
        %1808 = vmatpush.msra.mxu0 0.0
        %1809 = vmatpush.msra.mxu0 0.0
        %1810 = vmatpush.msra.mxu0 0.0
        %1811 = vmatpush.msra.mxu0 0.0
        %1812 = vmatpush.msra.mxu0 0.0
        %1813 = vmatpush.msra.mxu0 0.0
        %1814 = vmatpush.msra.mxu0 0.0
        %1815 = vmatpush.msra.mxu0 0.0
        %1816 = vmatpush.msra.mxu0 0.0
        %1817 = vmatpush.msra.mxu0 0.0
        %1818 = vmatpush.msra.mxu0 0.0
        %1819 = vmatpush.msra.mxu0 0.0
        %1820 = vmatpush.msra.mxu0 0.0
        %1821 = vmatpush.msra.mxu0 0.0
        %1822 = vmatpush.msra.mxu0 1.0
        %1823 = vmatmul.f32.gmra.mxu0 %v1805
        %v1824 = vpop.f32.mrf.mxu0
        %v1825 = vadd.f32 0.0, %v1824
        %1826 = vdwg.mxu0
        %1827 = vxpose.xlu0.b32.start [1/16] %v569, 128
        %1828 = vxpose.xlu0.b32.cont [2/16] 0.0, 128
        %1829 = vxpose.xlu0.b32.cont [3/16] 0.0, 128
        %1830 = vxpose.xlu0.b32.cont [4/16] 0.0, 128
        %1831 = vxpose.xlu0.b32.cont [5/16] 0.0, 128
        %1832 = vxpose.xlu0.b32.cont [6/16] 0.0, 128
        %1833 = vxpose.xlu0.b32.cont [7/16] 0.0, 128
        %1834 = vxpose.xlu0.b32.cont [8/16] 0.0, 128
        %1835 = vxpose.xlu0.b32.cont [9/16] 0.0, 128
        %1836 = vxpose.xlu0.b32.cont [10/16] 0.0, 128
        %1837 = vxpose.xlu0.b32.cont [11/16] 0.0, 128
        %1838 = vxpose.xlu0.b32.cont [12/16] 0.0, 128
        %1839 = vxpose.xlu0.b32.cont [13/16] 0.0, 128
        %1840 = vxpose.xlu0.b32.cont [14/16] 0.0, 128
        %1841 = vxpose.xlu0.b32.cont [15/16] 0.0, 128
        %1842 = vxpose.xlu0.b32.end [16/16] 0.0, 128
        %v1843 = vpop.trf.xlu0
        %v1844 = vpop.trf.xlu0
        %v1845 = vpop.trf.xlu0
        %v1846 = vpop.trf.xlu0
        %v1847 = vpop.trf.xlu0
        %v1848 = vpop.trf.xlu0
        %v1849 = vpop.trf.xlu0
        %v1850 = vpop.trf.xlu0
        %v1851 = vpop.trf.xlu0
        %v1852 = vpop.trf.xlu0
        %v1853 = vpop.trf.xlu0
        %v1854 = vpop.trf.xlu0
        %v1855 = vpop.trf.xlu0
        %v1856 = vpop.trf.xlu0
        %v1857 = vpop.trf.xlu0
        %v1858 = vpop.trf.xlu0
        %v1860 = vsel %vm621, %v1843, 0
        %1862 = vmatpush.msra.mxu0 0.0
        %1863 = vmatpush.msra.mxu0 0.0
        %1864 = vmatpush.msra.mxu0 0.0
        %1865 = vmatpush.msra.mxu0 0.0
        %1866 = vmatpush.msra.mxu0 0.0
        %1867 = vmatpush.msra.mxu0 0.0
        %1868 = vmatpush.msra.mxu0 0.0
        %1869 = vmatpush.msra.mxu0 0.0
        %1870 = vmatpush.msra.mxu0 0.0
        %1871 = vmatpush.msra.mxu0 0.0
        %1872 = vmatpush.msra.mxu0 0.0
        %1873 = vmatpush.msra.mxu0 0.0
        %1874 = vmatpush.msra.mxu0 0.0
        %1875 = vmatpush.msra.mxu0 0.0
        %1876 = vmatpush.msra.mxu0 0.0
        %1877 = vmatpush.msra.mxu0 1.0
        %1878 = vmatmul.f32.gmra.mxu0 %v1860
        %v1879 = vpop.f32.mrf.mxu0
        %v1880 = vadd.f32 0.0, %v1879
        %1881 = vdwg.mxu0
        %1882 = vxpose.xlu0.b32.start [1/16] %v570, 128
        %1883 = vxpose.xlu0.b32.cont [2/16] 0.0, 128
        %1884 = vxpose.xlu0.b32.cont [3/16] 0.0, 128
        %1885 = vxpose.xlu0.b32.cont [4/16] 0.0, 128
        %1886 = vxpose.xlu0.b32.cont [5/16] 0.0, 128
        %1887 = vxpose.xlu0.b32.cont [6/16] 0.0, 128
        %1888 = vxpose.xlu0.b32.cont [7/16] 0.0, 128
        %1889 = vxpose.xlu0.b32.cont [8/16] 0.0, 128
        %1890 = vxpose.xlu0.b32.cont [9/16] 0.0, 128
        %1891 = vxpose.xlu0.b32.cont [10/16] 0.0, 128
        %1892 = vxpose.xlu0.b32.cont [11/16] 0.0, 128
        %1893 = vxpose.xlu0.b32.cont [12/16] 0.0, 128
        %1894 = vxpose.xlu0.b32.cont [13/16] 0.0, 128
        %1895 = vxpose.xlu0.b32.cont [14/16] 0.0, 128
        %1896 = vxpose.xlu0.b32.cont [15/16] 0.0, 128
        %1897 = vxpose.xlu0.b32.end [16/16] 0.0, 128
        %v1898 = vpop.trf.xlu0
        %v1899 = vpop.trf.xlu0
        %v1900 = vpop.trf.xlu0
        %v1901 = vpop.trf.xlu0
        %v1902 = vpop.trf.xlu0
        %v1903 = vpop.trf.xlu0
        %v1904 = vpop.trf.xlu0
        %v1905 = vpop.trf.xlu0
        %v1906 = vpop.trf.xlu0
        %v1907 = vpop.trf.xlu0
        %v1908 = vpop.trf.xlu0
        %v1909 = vpop.trf.xlu0
        %v1910 = vpop.trf.xlu0
        %v1911 = vpop.trf.xlu0
        %v1912 = vpop.trf.xlu0
        %v1913 = vpop.trf.xlu0
        %v1915 = vsel %vm621, %v1898, 0
        %1917 = vmatpush.msra.mxu0 0.0
        %1918 = vmatpush.msra.mxu0 0.0
        %1919 = vmatpush.msra.mxu0 0.0
        %1920 = vmatpush.msra.mxu0 0.0
        %1921 = vmatpush.msra.mxu0 0.0
        %1922 = vmatpush.msra.mxu0 0.0
        %1923 = vmatpush.msra.mxu0 0.0
        %1924 = vmatpush.msra.mxu0 0.0
        %1925 = vmatpush.msra.mxu0 0.0
        %1926 = vmatpush.msra.mxu0 0.0
        %1927 = vmatpush.msra.mxu0 0.0
        %1928 = vmatpush.msra.mxu0 0.0
        %1929 = vmatpush.msra.mxu0 0.0
        %1930 = vmatpush.msra.mxu0 0.0
        %1931 = vmatpush.msra.mxu0 0.0
        %1932 = vmatpush.msra.mxu0 1.0
        %1933 = vmatmul.f32.gmra.mxu0 %v1915
        %v1934 = vpop.f32.mrf.mxu0
        %v1935 = vadd.f32 0.0, %v1934
        %1936 = vdwg.mxu0
        %1937 = vxpose.xlu0.b32.start [1/16] %v571, 128
        %1938 = vxpose.xlu0.b32.cont [2/16] 0.0, 128
        %1939 = vxpose.xlu0.b32.cont [3/16] 0.0, 128
        %1940 = vxpose.xlu0.b32.cont [4/16] 0.0, 128
        %1941 = vxpose.xlu0.b32.cont [5/16] 0.0, 128
        %1942 = vxpose.xlu0.b32.cont [6/16] 0.0, 128
        %1943 = vxpose.xlu0.b32.cont [7/16] 0.0, 128
        %1944 = vxpose.xlu0.b32.cont [8/16] 0.0, 128
        %1945 = vxpose.xlu0.b32.cont [9/16] 0.0, 128
        %1946 = vxpose.xlu0.b32.cont [10/16] 0.0, 128
        %1947 = vxpose.xlu0.b32.cont [11/16] 0.0, 128
        %1948 = vxpose.xlu0.b32.cont [12/16] 0.0, 128
        %1949 = vxpose.xlu0.b32.cont [13/16] 0.0, 128
        %1950 = vxpose.xlu0.b32.cont [14/16] 0.0, 128
        %1951 = vxpose.xlu0.b32.cont [15/16] 0.0, 128
        %1952 = vxpose.xlu0.b32.end [16/16] 0.0, 128
        %v1953 = vpop.trf.xlu0
        %v1954 = vpop.trf.xlu0
        %v1955 = vpop.trf.xlu0
        %v1956 = vpop.trf.xlu0
        %v1957 = vpop.trf.xlu0
        %v1958 = vpop.trf.xlu0
        %v1959 = vpop.trf.xlu0
        %v1960 = vpop.trf.xlu0
        %v1961 = vpop.trf.xlu0
        %v1962 = vpop.trf.xlu0
        %v1963 = vpop.trf.xlu0
        %v1964 = vpop.trf.xlu0
        %v1965 = vpop.trf.xlu0
        %v1966 = vpop.trf.xlu0
        %v1967 = vpop.trf.xlu0
        %v1968 = vpop.trf.xlu0
        %v1970 = vsel %vm621, %v1953, 0
        %1972 = vmatpush.msra.mxu0 0.0
        %1973 = vmatpush.msra.mxu0 0.0
        %1974 = vmatpush.msra.mxu0 0.0
        %1975 = vmatpush.msra.mxu0 0.0
        %1976 = vmatpush.msra.mxu0 0.0
        %1977 = vmatpush.msra.mxu0 0.0
        %1978 = vmatpush.msra.mxu0 0.0
        %1979 = vmatpush.msra.mxu0 0.0
        %1980 = vmatpush.msra.mxu0 0.0
        %1981 = vmatpush.msra.mxu0 0.0
        %1982 = vmatpush.msra.mxu0 0.0
        %1983 = vmatpush.msra.mxu0 0.0
        %1984 = vmatpush.msra.mxu0 0.0
        %1985 = vmatpush.msra.mxu0 0.0
        %1986 = vmatpush.msra.mxu0 0.0
        %1987 = vmatpush.msra.mxu0 1.0
        %1988 = vmatmul.f32.gmra.mxu0 %v1970
        %v1989 = vpop.f32.mrf.mxu0
        %v1990 = vadd.f32 0.0, %v1989
        %1991 = vdwg.mxu0
        %1992 = vxpose.xlu0.b32.start [1/16] %v572, 128
        %1993 = vxpose.xlu0.b32.cont [2/16] 0.0, 128
        %1994 = vxpose.xlu0.b32.cont [3/16] 0.0, 128
        %1995 = vxpose.xlu0.b32.cont [4/16] 0.0, 128
        %1996 = vxpose.xlu0.b32.cont [5/16] 0.0, 128
        %1997 = vxpose.xlu0.b32.cont [6/16] 0.0, 128
        %1998 = vxpose.xlu0.b32.cont [7/16] 0.0, 128
        %1999 = vxpose.xlu0.b32.cont [8/16] 0.0, 128
        %2000 = vxpose.xlu0.b32.cont [9/16] 0.0, 128
        %2001 = vxpose.xlu0.b32.cont [10/16] 0.0, 128
        %2002 = vxpose.xlu0.b32.cont [11/16] 0.0, 128
        %2003 = vxpose.xlu0.b32.cont [12/16] 0.0, 128
        %2004 = vxpose.xlu0.b32.cont [13/16] 0.0, 128
        %2005 = vxpose.xlu0.b32.cont [14/16] 0.0, 128
        %2006 = vxpose.xlu0.b32.cont [15/16] 0.0, 128
        %2007 = vxpose.xlu0.b32.end [16/16] 0.0, 128
        %v2008 = vpop.trf.xlu0
        %v2009 = vpop.trf.xlu0
        %v2010 = vpop.trf.xlu0
        %v2011 = vpop.trf.xlu0
        %v2012 = vpop.trf.xlu0
        %v2013 = vpop.trf.xlu0
        %v2014 = vpop.trf.xlu0
        %v2015 = vpop.trf.xlu0
        %v2016 = vpop.trf.xlu0
        %v2017 = vpop.trf.xlu0
        %v2018 = vpop.trf.xlu0
        %v2019 = vpop.trf.xlu0
        %v2020 = vpop.trf.xlu0
        %v2021 = vpop.trf.xlu0
        %v2022 = vpop.trf.xlu0
        %v2023 = vpop.trf.xlu0
        %v2025 = vsel %vm621, %v2008, 0
        %2027 = vmatpush.msra.mxu0 0.0
        %2028 = vmatpush.msra.mxu0 0.0
        %2029 = vmatpush.msra.mxu0 0.0
        %2030 = vmatpush.msra.mxu0 0.0
        %2031 = vmatpush.msra.mxu0 0.0
        %2032 = vmatpush.msra.mxu0 0.0
        %2033 = vmatpush.msra.mxu0 0.0
        %2034 = vmatpush.msra.mxu0 0.0
        %2035 = vmatpush.msra.mxu0 0.0
        %2036 = vmatpush.msra.mxu0 0.0
        %2037 = vmatpush.msra.mxu0 0.0
        %2038 = vmatpush.msra.mxu0 0.0
        %2039 = vmatpush.msra.mxu0 0.0
        %2040 = vmatpush.msra.mxu0 0.0
        %2041 = vmatpush.msra.mxu0 0.0
        %2042 = vmatpush.msra.mxu0 1.0
        %2043 = vmatmul.f32.gmra.mxu0 %v2025
        %v2044 = vpop.f32.mrf.mxu0
        %v2045 = vadd.f32 0.0, %v2044
        %2046 = vdwg.mxu0
        %v2047 = vld [vmem:[%s4] sm:$0xff]
        %2049 = vset.pattern.permute.xlu0 0
        %2050 = vperm.xlu0 %2049, %v1220
        %v2051 = vpop.permute.xlu0 %2050
        %2054 = vset.pattern.permute.xlu0 0
        %2055 = vperm.xlu0 %2054, %v1275
        %v2056 = vpop.permute.xlu0 %2055
        %2059 = vset.pattern.permute.xlu0 0
        %2060 = vperm.xlu0 %2059, %v1330
        %v2061 = vpop.permute.xlu0 %2060
        %2064 = vset.pattern.permute.xlu0 0
        %2065 = vperm.xlu0 %2064, %v1385
        %v2066 = vpop.permute.xlu0 %2065
        %2069 = vset.pattern.permute.xlu0 0
        %2070 = vperm.xlu0 %2069, %v1440
        %v2071 = vpop.permute.xlu0 %2070
        %2074 = vset.pattern.permute.xlu0 0
        %2075 = vperm.xlu0 %2074, %v1495
        %v2076 = vpop.permute.xlu0 %2075
        %2079 = vset.pattern.permute.xlu0 0
        %2080 = vperm.xlu0 %2079, %v1550
        %v2081 = vpop.permute.xlu0 %2080
        %2084 = vset.pattern.permute.xlu0 0
        %2085 = vperm.xlu0 %2084, %v1605
        %v2086 = vpop.permute.xlu0 %2085
        %2089 = vset.pattern.permute.xlu0 0
        %2090 = vperm.xlu0 %2089, %v1660
        %v2091 = vpop.permute.xlu0 %2090
        %2094 = vset.pattern.permute.xlu0 0
        %2095 = vperm.xlu0 %2094, %v1715
        %v2096 = vpop.permute.xlu0 %2095
        %2099 = vset.pattern.permute.xlu0 0
        %2100 = vperm.xlu0 %2099, %v1770
        %v2101 = vpop.permute.xlu0 %2100
        %2104 = vset.pattern.permute.xlu0 0
        %2105 = vperm.xlu0 %2104, %v1825
        %v2106 = vpop.permute.xlu0 %2105
        %2109 = vset.pattern.permute.xlu0 0
        %2110 = vperm.xlu0 %2109, %v1880
        %v2111 = vpop.permute.xlu0 %2110
        %2114 = vset.pattern.permute.xlu0 0
        %2115 = vperm.xlu0 %2114, %v1935
        %v2116 = vpop.permute.xlu0 %2115
        %2119 = vset.pattern.permute.xlu0 0
        %2120 = vperm.xlu0 %2119, %v1990
        %v2121 = vpop.permute.xlu0 %2120
        %2124 = vset.pattern.permute.xlu0 0
        %2125 = vperm.xlu0 %2124, %v2045
        %v2126 = vpop.permute.xlu0 %2125
        %v2128 = vmul.f32 %v2051, %v2047
        %v2129 = vmul.f32 %v2056, %v2047
        %v2130 = vmul.f32 %v2061, %v2047
        %v2131 = vmul.f32 %v2066, %v2047
        %v2132 = vmul.f32 %v2071, %v2047
        %v2133 = vmul.f32 %v2076, %v2047
        %v2134 = vmul.f32 %v2081, %v2047
        %v2135 = vmul.f32 %v2086, %v2047
        %v2136 = vmul.f32 %v2091, %v2047
        %v2137 = vmul.f32 %v2096, %v2047
        %v2138 = vmul.f32 %v2101, %v2047
        %v2139 = vmul.f32 %v2106, %v2047
        %v2140 = vmul.f32 %v2111, %v2047
        %v2141 = vmul.f32 %v2116, %v2047
        %v2142 = vmul.f32 %v2121, %v2047
        %v2143 = vmul.f32 %v2126, %v2047
        %v2144 = vsub.f32 %v639, %v2128
        %v2145 = vsub.f32 %v674, %v2129
        %v2146 = vsub.f32 %v709, %v2130
        %v2147 = vsub.f32 %v744, %v2131
        %v2148 = vsub.f32 %v779, %v2132
        %v2149 = vsub.f32 %v814, %v2133
        %v2150 = vsub.f32 %v849, %v2134
        %v2151 = vsub.f32 %v884, %v2135
        %v2152 = vsub.f32 %v919, %v2136
        %v2153 = vsub.f32 %v954, %v2137
        %v2154 = vsub.f32 %v989, %v2138
        %v2155 = vsub.f32 %v1024, %v2139
        %v2156 = vsub.f32 %v1059, %v2140
        %v2157 = vsub.f32 %v1094, %v2141
        %v2158 = vsub.f32 %v1129, %v2142
        %v2159 = vsub.f32 %v1164, %v2143
        %v2160 = vmul.f32 %v2144, %v2144
        %v2161 = vmul.f32 %v2145, %v2145
        %v2162 = vmul.f32 %v2146, %v2146
        %v2163 = vmul.f32 %v2147, %v2147
        %v2164 = vmul.f32 %v2148, %v2148
        %v2165 = vmul.f32 %v2149, %v2149
        %v2166 = vmul.f32 %v2150, %v2150
        %v2167 = vmul.f32 %v2151, %v2151
        %v2168 = vmul.f32 %v2152, %v2152
        %v2169 = vmul.f32 %v2153, %v2153
        %v2170 = vmul.f32 %v2154, %v2154
        %v2171 = vmul.f32 %v2155, %v2155
        %v2172 = vmul.f32 %v2156, %v2156
        %v2173 = vmul.f32 %v2157, %v2157
        %v2174 = vmul.f32 %v2158, %v2158
        %v2175 = vmul.f32 %v2159, %v2159
        %2176 = vadd.xlane.f32.xlu0 %v2160
        %v2177 = vpop.xlane.xlu0 %2176
        %2178 = vadd.xlane.f32.xlu0 %v2161
        %v2179 = vpop.xlane.xlu0 %2178
        %2180 = vadd.xlane.f32.xlu0 %v2162
        %v2181 = vpop.xlane.xlu0 %2180
        %2182 = vadd.xlane.f32.xlu0 %v2163
        %v2183 = vpop.xlane.xlu0 %2182
        %2184 = vadd.xlane.f32.xlu0 %v2164
        %v2185 = vpop.xlane.xlu0 %2184
        %2186 = vadd.xlane.f32.xlu0 %v2165
        %v2187 = vpop.xlane.xlu0 %2186
        %2188 = vadd.xlane.f32.xlu0 %v2166
        %v2189 = vpop.xlane.xlu0 %2188
        %2190 = vadd.xlane.f32.xlu0 %v2167
        %v2191 = vpop.xlane.xlu0 %2190
        %2192 = vadd.xlane.f32.xlu0 %v2168
        %v2193 = vpop.xlane.xlu0 %2192
        %2194 = vadd.xlane.f32.xlu0 %v2169
        %v2195 = vpop.xlane.xlu0 %2194
        %2196 = vadd.xlane.f32.xlu0 %v2170
        %v2197 = vpop.xlane.xlu0 %2196
        %2198 = vadd.xlane.f32.xlu0 %v2171
        %v2199 = vpop.xlane.xlu0 %2198
        %2200 = vadd.xlane.f32.xlu0 %v2172
        %v2201 = vpop.xlane.xlu0 %2200
        %2202 = vadd.xlane.f32.xlu0 %v2173
        %v2203 = vpop.xlane.xlu0 %2202
        %2204 = vadd.xlane.f32.xlu0 %v2174
        %v2205 = vpop.xlane.xlu0 %2204
        %2206 = vadd.xlane.f32.xlu0 %v2175
        %v2207 = vpop.xlane.xlu0 %2206
        %v2208 = vmax.f32 %v2177, 1e-24
        %v2209 = vmax.f32 %v2179, 1e-24
        %v2210 = vmax.f32 %v2181, 1e-24
        %v2211 = vmax.f32 %v2183, 1e-24
        %v2212 = vmax.f32 %v2185, 1e-24
        %v2213 = vmax.f32 %v2187, 1e-24
        %v2214 = vmax.f32 %v2189, 1e-24
        %v2215 = vmax.f32 %v2191, 1e-24
        %v2216 = vmax.f32 %v2193, 1e-24
        %v2217 = vmax.f32 %v2195, 1e-24
        %v2218 = vmax.f32 %v2197, 1e-24
        %v2219 = vmax.f32 %v2199, 1e-24
        %v2220 = vmax.f32 %v2201, 1e-24
        %v2221 = vmax.f32 %v2203, 1e-24
        %v2222 = vmax.f32 %v2205, 1e-24
        %v2223 = vmax.f32 %v2207, 1e-24
        %v2224 = vrsqrt.pop %v2208
        %v2225 = vmul.f32 %v2224, %v2208
        %v2226 = vmul.f32 %v2225, %v2224
        %v2227 = vmul.f32 0.5, %v2226
        %v2228 = vsub.f32 1.5, %v2227
        %v2229 = vmul.f32 %v2224, %v2228
        %vm2230 = vweird.f32 %v2208
        %vm2231 = vweird.f32 %v2224
        %vm2232 = vmor %vm2230, %vm2231
        %v2233 = vsel %vm2232, %v2224, %v2229
        %v2234 = vrsqrt.pop %v2209
        %v2235 = vmul.f32 %v2234, %v2209
        %v2236 = vmul.f32 %v2235, %v2234
        %v2237 = vmul.f32 0.5, %v2236
        %v2238 = vsub.f32 1.5, %v2237
        %v2239 = vmul.f32 %v2234, %v2238
        %vm2240 = vweird.f32 %v2209
        %vm2241 = vweird.f32 %v2234
        %vm2242 = vmor %vm2240, %vm2241
        %v2243 = vsel %vm2242, %v2234, %v2239
        %v2244 = vrsqrt.pop %v2210
        %v2245 = vmul.f32 %v2244, %v2210
        %v2246 = vmul.f32 %v2245, %v2244
        %v2247 = vmul.f32 0.5, %v2246
        %v2248 = vsub.f32 1.5, %v2247
        %v2249 = vmul.f32 %v2244, %v2248
        %vm2250 = vweird.f32 %v2210
        %vm2251 = vweird.f32 %v2244
        %vm2252 = vmor %vm2250, %vm2251
        %v2253 = vsel %vm2252, %v2244, %v2249
        %v2254 = vrsqrt.pop %v2211
        %v2255 = vmul.f32 %v2254, %v2211
        %v2256 = vmul.f32 %v2255, %v2254
        %v2257 = vmul.f32 0.5, %v2256
        %v2258 = vsub.f32 1.5, %v2257
        %v2259 = vmul.f32 %v2254, %v2258
        %vm2260 = vweird.f32 %v2211
        %vm2261 = vweird.f32 %v2254
        %vm2262 = vmor %vm2260, %vm2261
        %v2263 = vsel %vm2262, %v2254, %v2259
        %v2264 = vrsqrt.pop %v2212
        %v2265 = vmul.f32 %v2264, %v2212
        %v2266 = vmul.f32 %v2265, %v2264
        %v2267 = vmul.f32 0.5, %v2266
        %v2268 = vsub.f32 1.5, %v2267
        %v2269 = vmul.f32 %v2264, %v2268
        %vm2270 = vweird.f32 %v2212
        %vm2271 = vweird.f32 %v2264
        %vm2272 = vmor %vm2270, %vm2271
        %v2273 = vsel %vm2272, %v2264, %v2269
        %v2274 = vrsqrt.pop %v2213
        %v2275 = vmul.f32 %v2274, %v2213
        %v2276 = vmul.f32 %v2275, %v2274
        %v2277 = vmul.f32 0.5, %v2276
        %v2278 = vsub.f32 1.5, %v2277
        %v2279 = vmul.f32 %v2274, %v2278
        %vm2280 = vweird.f32 %v2213
        %vm2281 = vweird.f32 %v2274
        %vm2282 = vmor %vm2280, %vm2281
        %v2283 = vsel %vm2282, %v2274, %v2279
        %v2284 = vrsqrt.pop %v2214
        %v2285 = vmul.f32 %v2284, %v2214
        %v2286 = vmul.f32 %v2285, %v2284
        %v2287 = vmul.f32 0.5, %v2286
        %v2288 = vsub.f32 1.5, %v2287
        %v2289 = vmul.f32 %v2284, %v2288
        %vm2290 = vweird.f32 %v2214
        %vm2291 = vweird.f32 %v2284
        %vm2292 = vmor %vm2290, %vm2291
        %v2293 = vsel %vm2292, %v2284, %v2289
        %v2294 = vrsqrt.pop %v2215
        %v2295 = vmul.f32 %v2294, %v2215
        %v2296 = vmul.f32 %v2295, %v2294
        %v2297 = vmul.f32 0.5, %v2296
        %v2298 = vsub.f32 1.5, %v2297
        %v2299 = vmul.f32 %v2294, %v2298
        %vm2300 = vweird.f32 %v2215
        %vm2301 = vweird.f32 %v2294
        %vm2302 = vmor %vm2300, %vm2301
        %v2303 = vsel %vm2302, %v2294, %v2299
        %v2304 = vrsqrt.pop %v2216
        %v2305 = vmul.f32 %v2304, %v2216
        %v2306 = vmul.f32 %v2305, %v2304
        %v2307 = vmul.f32 0.5, %v2306
        %v2308 = vsub.f32 1.5, %v2307
        %v2309 = vmul.f32 %v2304, %v2308
        %vm2310 = vweird.f32 %v2216
        %vm2311 = vweird.f32 %v2304
        %vm2312 = vmor %vm2310, %vm2311
        %v2313 = vsel %vm2312, %v2304, %v2309
        %v2314 = vrsqrt.pop %v2217
        %v2315 = vmul.f32 %v2314, %v2217
        %v2316 = vmul.f32 %v2315, %v2314
        %v2317 = vmul.f32 0.5, %v2316
        %v2318 = vsub.f32 1.5, %v2317
        %v2319 = vmul.f32 %v2314, %v2318
        %vm2320 = vweird.f32 %v2217
        %vm2321 = vweird.f32 %v2314
        %vm2322 = vmor %vm2320, %vm2321
        %v2323 = vsel %vm2322, %v2314, %v2319
        %v2324 = vrsqrt.pop %v2218
        %v2325 = vmul.f32 %v2324, %v2218
        %v2326 = vmul.f32 %v2325, %v2324
        %v2327 = vmul.f32 0.5, %v2326
        %v2328 = vsub.f32 1.5, %v2327
        %v2329 = vmul.f32 %v2324, %v2328
        %vm2330 = vweird.f32 %v2218
        %vm2331 = vweird.f32 %v2324
        %vm2332 = vmor %vm2330, %vm2331
        %v2333 = vsel %vm2332, %v2324, %v2329
        %v2334 = vrsqrt.pop %v2219
        %v2335 = vmul.f32 %v2334, %v2219
        %v2336 = vmul.f32 %v2335, %v2334
        %v2337 = vmul.f32 0.5, %v2336
        %v2338 = vsub.f32 1.5, %v2337
        %v2339 = vmul.f32 %v2334, %v2338
        %vm2340 = vweird.f32 %v2219
        %vm2341 = vweird.f32 %v2334
        %vm2342 = vmor %vm2340, %vm2341
        %v2343 = vsel %vm2342, %v2334, %v2339
        %v2344 = vrsqrt.pop %v2220
        %v2345 = vmul.f32 %v2344, %v2220
        %v2346 = vmul.f32 %v2345, %v2344
        %v2347 = vmul.f32 0.5, %v2346
        %v2348 = vsub.f32 1.5, %v2347
        %v2349 = vmul.f32 %v2344, %v2348
        %vm2350 = vweird.f32 %v2220
        %vm2351 = vweird.f32 %v2344
        %vm2352 = vmor %vm2350, %vm2351
        %v2353 = vsel %vm2352, %v2344, %v2349
        %v2354 = vrsqrt.pop %v2221
        %v2355 = vmul.f32 %v2354, %v2221
        %v2356 = vmul.f32 %v2355, %v2354
        %v2357 = vmul.f32 0.5, %v2356
        %v2358 = vsub.f32 1.5, %v2357
        %v2359 = vmul.f32 %v2354, %v2358
        %vm2360 = vweird.f32 %v2221
        %vm2361 = vweird.f32 %v2354
        %vm2362 = vmor %vm2360, %vm2361
        %v2363 = vsel %vm2362, %v2354, %v2359
        %v2364 = vrsqrt.pop %v2222
        %v2365 = vmul.f32 %v2364, %v2222
        %v2366 = vmul.f32 %v2365, %v2364
        %v2367 = vmul.f32 0.5, %v2366
        %v2368 = vsub.f32 1.5, %v2367
        %v2369 = vmul.f32 %v2364, %v2368
        %vm2370 = vweird.f32 %v2222
        %vm2371 = vweird.f32 %v2364
        %vm2372 = vmor %vm2370, %vm2371
        %v2373 = vsel %vm2372, %v2364, %v2369
        %v2374 = vrsqrt.pop %v2223
        %v2375 = vmul.f32 %v2374, %v2223
        %v2376 = vmul.f32 %v2375, %v2374
        %v2377 = vmul.f32 0.5, %v2376
        %v2378 = vsub.f32 1.5, %v2377
        %v2379 = vmul.f32 %v2374, %v2378
        %vm2380 = vweird.f32 %v2223
        %vm2381 = vweird.f32 %v2374
        %vm2382 = vmor %vm2380, %vm2381
        %v2383 = vsel %vm2382, %v2374, %v2379
        %v2384 = vmul.f32 %v2144, %v2233
        %v2385 = vmul.f32 %v2145, %v2243
        %v2386 = vmul.f32 %v2146, %v2253
        %v2387 = vmul.f32 %v2147, %v2263
        %v2388 = vmul.f32 %v2148, %v2273
        %v2389 = vmul.f32 %v2149, %v2283
        %v2390 = vmul.f32 %v2150, %v2293
        %v2391 = vmul.f32 %v2151, %v2303
        %v2392 = vmul.f32 %v2152, %v2313
        %v2393 = vmul.f32 %v2153, %v2323
        %v2394 = vmul.f32 %v2154, %v2333
        %v2395 = vmul.f32 %v2155, %v2343
        %v2396 = vmul.f32 %v2156, %v2353
        %v2397 = vmul.f32 %v2157, %v2363
        %v2398 = vmul.f32 %v2158, %v2373
        %v2399 = vmul.f32 %v2159, %v2383
        %2400 = vst [vmem:[#allocation2] sm:$0xff] %v2384
        %2401 = vst [vmem:[#allocation2 + $0x8] sm:$0xff] %v2385
        %2402 = vst [vmem:[#allocation2 + $0x10] sm:$0xff] %v2386
        %2403 = vst [vmem:[#allocation2 + $0x18] sm:$0xff] %v2387
        %2404 = vst [vmem:[#allocation2 + $0x20] sm:$0xff] %v2388
        %2405 = vst [vmem:[#allocation2 + $0x28] sm:$0xff] %v2389
        %2406 = vst [vmem:[#allocation2 + $0x30] sm:$0xff] %v2390
        %2407 = vst [vmem:[#allocation2 + $0x38] sm:$0xff] %v2391
        %2408 = vst [vmem:[#allocation2 + $0x40] sm:$0xff] %v2392
        %2409 = vst [vmem:[#allocation2 + $0x48] sm:$0xff] %v2393
        %2410 = vst [vmem:[#allocation2 + $0x50] sm:$0xff] %v2394
        %2411 = vst [vmem:[#allocation2 + $0x58] sm:$0xff] %v2395
        %2412 = vst [vmem:[#allocation2 + $0x60] sm:$0xff] %v2396
        %2413 = vst [vmem:[#allocation2 + $0x68] sm:$0xff] %v2397
        %2414 = vst [vmem:[#allocation2 + $0x70] sm:$0xff] %v2398
        %2415 = vst [vmem:[#allocation2 + $0x78] sm:$0xff] %v2399
        %v2416 = vld [vmem:[#allocation2] ss:$8 sm:$0xf]
        %v2417 = vld [vmem:[#allocation2] ss:$8 sm:$0xf0]
        %v2418 = vor.u32 %v2416, %v2417
        %s2419 = scalar_lea.vmem [#allocation2], 64
        %v2420 = vld [vmem:[%s2419] ss:$8 sm:$0xf]
        %v2421 = vld [vmem:[%s2419] ss:$8 sm:$0xf0]
        %v2422 = vor.u32 %v2420, %v2421
        %v2423 = vpack.c.bf16 %v2422, %v2418
        %v2424 = vld [vmem:[#allocation3] sm:$0xf]
        %v2425 = vld [vmem:[#allocation3 + $0x4] sm:$0xf]
        %v2426 = vld [vmem:[#allocation3 + $0x8] sm:$0xf]
        %v2427 = vld [vmem:[#allocation3 + $0xc] sm:$0xf]
        %v2428 = vld [vmem:[#allocation3 + $0x10] sm:$0xf]
        %v2429 = vld [vmem:[#allocation3 + $0x14] sm:$0xf]
        %v2430 = vld [vmem:[#allocation3 + $0x18] sm:$0xf]
        %v2431 = vld [vmem:[#allocation3 + $0x1c] sm:$0xf]
        %v2432 = vld [vmem:[#allocation3 + $0x20] sm:$0xf]
        %v2433 = vld [vmem:[#allocation3 + $0x24] sm:$0xf]
        %v2434 = vld [vmem:[#allocation3 + $0x28] sm:$0xf]
        %v2435 = vld [vmem:[#allocation3 + $0x2c] sm:$0xf]
        %v2436 = vld [vmem:[#allocation3 + $0x30] sm:$0xf]
        %v2437 = vld [vmem:[#allocation3 + $0x34] sm:$0xf]
        %v2438 = vld [vmem:[#allocation3 + $0x38] sm:$0xf]
        %v2439 = vld [vmem:[#allocation3 + $0x3c] sm:$0xf]
        %s2440 = scalar_lea.vmem [#allocation2], 1
        %v2441 = vld [vmem:[%s2440] ss:$8 sm:$0xf]
        %v2442 = vld [vmem:[%s2440] ss:$8 sm:$0xf0]
        %v2443 = vor.u32 %v2441, %v2442
        %s2444 = scalar_lea.vmem [#allocation2], 65
        %v2445 = vld [vmem:[%s2444] ss:$8 sm:$0xf]
        %v2446 = vld [vmem:[%s2444] ss:$8 sm:$0xf0]
        %v2447 = vor.u32 %v2445, %v2446
        %v2448 = vpack.c.bf16 %v2447, %v2443
        %s2449 = scalar_lea.vmem [#allocation3], 64
        %v2450 = vld [vmem:[%s2449] sm:$0xf]
        %v2451 = vld [vmem:[%s2449 + $0x4] sm:$0xf]
        %v2452 = vld [vmem:[%s2449 + $0x8] sm:$0xf]
        %v2453 = vld [vmem:[%s2449 + $0xc] sm:$0xf]
        %v2454 = vld [vmem:[%s2449 + $0x10] sm:$0xf]
        %v2455 = vld [vmem:[%s2449 + $0x14] sm:$0xf]
        %v2456 = vld [vmem:[%s2449 + $0x18] sm:$0xf]
        %v2457 = vld [vmem:[%s2449 + $0x1c] sm:$0xf]
        %v2458 = vld [vmem:[%s2449 + $0x20] sm:$0xf]
        %v2459 = vld [vmem:[%s2449 + $0x24] sm:$0xf]
        %v2460 = vld [vmem:[%s2449 + $0x28] sm:$0xf]
        %v2461 = vld [vmem:[%s2449 + $0x2c] sm:$0xf]
        %v2462 = vld [vmem:[%s2449 + $0x30] sm:$0xf]
        %v2463 = vld [vmem:[%s2449 + $0x34] sm:$0xf]
        %v2464 = vld [vmem:[%s2449 + $0x38] sm:$0xf]
        %v2465 = vld [vmem:[%s2449 + $0x3c] sm:$0xf]
        %v2482 = vunpack.c.l.b16 %v2450
        %v2483 = vunpack.c.l.b16 %v2451
        %v2484 = vunpack.c.l.b16 %v2452
        %v2485 = vunpack.c.l.b16 %v2453
        %v2486 = vunpack.c.l.b16 %v2454
        %v2487 = vunpack.c.l.b16 %v2455
        %v2488 = vunpack.c.l.b16 %v2456
        %v2489 = vunpack.c.l.b16 %v2457
        %v2490 = vunpack.c.l.b16 %v2458
        %v2491 = vunpack.c.l.b16 %v2459
        %v2492 = vunpack.c.l.b16 %v2460
        %v2493 = vunpack.c.l.b16 %v2461
        %v2494 = vunpack.c.l.b16 %v2462
        %v2495 = vunpack.c.l.b16 %v2463
        %v2496 = vunpack.c.l.b16 %v2464
        %v2497 = vunpack.c.l.b16 %v2465
        %v2498 = vpack.c.b16 %v2483, %v2482
        %v2499 = vpack.c.b16 %v2485, %v2484
        %v2500 = vpack.c.b16 %v2487, %v2486
        %v2501 = vpack.c.b16 %v2489, %v2488
        %v2502 = vpack.c.b16 %v2491, %v2490
        %v2503 = vpack.c.b16 %v2493, %v2492
        %v2504 = vpack.c.b16 %v2495, %v2494
        %v2505 = vpack.c.b16 %v2497, %v2496
        %2514 = vmatpush.bf16.msra.mxu0 %v2505
        %2515 = vmatpush.bf16.msra.mxu0 %v2504
        %2516 = vmatpush.bf16.msra.mxu0 %v2503
        %2517 = vmatpush.bf16.msra.mxu0 %v2502
        %2518 = vmatpush.bf16.msra.mxu0 %v2501
        %2519 = vmatpush.bf16.msra.mxu0 %v2500
        %2520 = vmatpush.bf16.msra.mxu0 %v2499
        %2521 = vmatpush.bf16.msra.mxu0 %v2498
        %2522 = vmatmul.bf16.gmra.mxu0 %v2448
        %v2523 = vpop.f32.mrf.mxu0
        %v2524 = vadd.f32 0.0, %v2523
        %v2525 = vpop.f32.mrf.mxu0
        %v2526 = vadd.f32 0.0, %v2525
        %2527 = vdwg.mxu0
        %v2544 = vunpack.c.l.b16 %v2424
        %v2545 = vunpack.c.l.b16 %v2425
        %v2546 = vunpack.c.l.b16 %v2426
        %v2547 = vunpack.c.l.b16 %v2427
        %v2548 = vunpack.c.l.b16 %v2428
        %v2549 = vunpack.c.l.b16 %v2429
        %v2550 = vunpack.c.l.b16 %v2430
        %v2551 = vunpack.c.l.b16 %v2431
        %v2552 = vunpack.c.l.b16 %v2432
        %v2553 = vunpack.c.l.b16 %v2433
        %v2554 = vunpack.c.l.b16 %v2434
        %v2555 = vunpack.c.l.b16 %v2435
        %v2556 = vunpack.c.l.b16 %v2436
        %v2557 = vunpack.c.l.b16 %v2437
        %v2558 = vunpack.c.l.b16 %v2438
        %v2559 = vunpack.c.l.b16 %v2439
        %v2560 = vpack.c.b16 %v2545, %v2544
        %v2561 = vpack.c.b16 %v2547, %v2546
        %v2562 = vpack.c.b16 %v2549, %v2548
        %v2563 = vpack.c.b16 %v2551, %v2550
        %v2564 = vpack.c.b16 %v2553, %v2552
        %v2565 = vpack.c.b16 %v2555, %v2554
        %v2566 = vpack.c.b16 %v2557, %v2556
        %v2567 = vpack.c.b16 %v2559, %v2558
        %2576 = vmatpush.bf16.msra.mxu0 %v2567
        %2577 = vmatpush.bf16.msra.mxu0 %v2566
        %2578 = vmatpush.bf16.msra.mxu0 %v2565
        %2579 = vmatpush.bf16.msra.mxu0 %v2564
        %2580 = vmatpush.bf16.msra.mxu0 %v2563
        %2581 = vmatpush.bf16.msra.mxu0 %v2562
        %2582 = vmatpush.bf16.msra.mxu0 %v2561
        %2583 = vmatpush.bf16.msra.mxu0 %v2560
        %2584 = vmatmul.bf16.gmra.mxu0 %v2423
        %v2585 = vpop.f32.mrf.mxu0
        %v2586 = vadd.f32 %v2524, %v2585
        %v2587 = vpop.f32.mrf.mxu0
        %v2588 = vadd.f32 %v2526, %v2587
        %2589 = vdwg.mxu0
        %s2590 = scalar_lea.vmem [#allocation2], 2
        %v2591 = vld [vmem:[%s2590] ss:$8 sm:$0xf]
        %v2592 = vld [vmem:[%s2590] ss:$8 sm:$0xf0]
        %v2593 = vor.u32 %v2591, %v2592
        %s2594 = scalar_lea.vmem [#allocation2], 66
        %v2595 = vld [vmem:[%s2594] ss:$8 sm:$0xf]
        %v2596 = vld [vmem:[%s2594] ss:$8 sm:$0xf0]
        %v2597 = vor.u32 %v2595, %v2596
        %v2598 = vpack.c.bf16 %v2597, %v2593
        %s2599 = scalar_lea.vmem [#allocation3], 128
        %v2600 = vld [vmem:[%s2599] sm:$0xf]
        %v2601 = vld [vmem:[%s2599 + $0x4] sm:$0xf]
        %v2602 = vld [vmem:[%s2599 + $0x8] sm:$0xf]
        %v2603 = vld [vmem:[%s2599 + $0xc] sm:$0xf]
        %v2604 = vld [vmem:[%s2599 + $0x10] sm:$0xf]
        %v2605 = vld [vmem:[%s2599 + $0x14] sm:$0xf]
        %v2606 = vld [vmem:[%s2599 + $0x18] sm:$0xf]
        %v2607 = vld [vmem:[%s2599 + $0x1c] sm:$0xf]
        %v2608 = vld [vmem:[%s2599 + $0x20] sm:$0xf]
        %v2609 = vld [vmem:[%s2599 + $0x24] sm:$0xf]
        %v2610 = vld [vmem:[%s2599 + $0x28] sm:$0xf]
        %v2611 = vld [vmem:[%s2599 + $0x2c] sm:$0xf]
        %v2612 = vld [vmem:[%s2599 + $0x30] sm:$0xf]
        %v2613 = vld [vmem:[%s2599 + $0x34] sm:$0xf]
        %v2614 = vld [vmem:[%s2599 + $0x38] sm:$0xf]
        %v2615 = vld [vmem:[%s2599 + $0x3c] sm:$0xf]
        %v2632 = vunpack.c.l.b16 %v2600
        %v2633 = vunpack.c.l.b16 %v2601
        %v2634 = vunpack.c.l.b16 %v2602
        %v2635 = vunpack.c.l.b16 %v2603
        %v2636 = vunpack.c.l.b16 %v2604
        %v2637 = vunpack.c.l.b16 %v2605
        %v2638 = vunpack.c.l.b16 %v2606
        %v2639 = vunpack.c.l.b16 %v2607
        %v2640 = vunpack.c.l.b16 %v2608
        %v2641 = vunpack.c.l.b16 %v2609
        %v2642 = vunpack.c.l.b16 %v2610
        %v2643 = vunpack.c.l.b16 %v2611
        %v2644 = vunpack.c.l.b16 %v2612
        %v2645 = vunpack.c.l.b16 %v2613
        %v2646 = vunpack.c.l.b16 %v2614
        %v2647 = vunpack.c.l.b16 %v2615
        %v2648 = vpack.c.b16 %v2633, %v2632
        %v2649 = vpack.c.b16 %v2635, %v2634
        %v2650 = vpack.c.b16 %v2637, %v2636
        %v2651 = vpack.c.b16 %v2639, %v2638
        %v2652 = vpack.c.b16 %v2641, %v2640
        %v2653 = vpack.c.b16 %v2643, %v2642
        %v2654 = vpack.c.b16 %v2645, %v2644
        %v2655 = vpack.c.b16 %v2647, %v2646
        %2664 = vmatpush.bf16.msra.mxu0 %v2655
        %2665 = vmatpush.bf16.msra.mxu0 %v2654
        %2666 = vmatpush.bf16.msra.mxu0 %v2653
        %2667 = vmatpush.bf16.msra.mxu0 %v2652
        %2668 = vmatpush.bf16.msra.mxu0 %v2651
        %2669 = vmatpush.bf16.msra.mxu0 %v2650
        %2670 = vmatpush.bf16.msra.mxu0 %v2649
        %2671 = vmatpush.bf16.msra.mxu0 %v2648
        %2672 = vmatmul.bf16.gmra.mxu0 %v2598
        %v2673 = vpop.f32.mrf.mxu0
        %v2674 = vadd.f32 0.0, %v2673
        %v2675 = vpop.f32.mrf.mxu0
        %v2676 = vadd.f32 0.0, %v2675
        %2677 = vdwg.mxu0
        %v2678 = vadd.f32 %v2586, %v2674
        %v2679 = vadd.f32 %v2588, %v2676
        %s2680 = scalar_lea.vmem [#allocation2], 3
        %v2681 = vld [vmem:[%s2680] ss:$8 sm:$0xf]
        %v2682 = vld [vmem:[%s2680] ss:$8 sm:$0xf0]
        %v2683 = vor.u32 %v2681, %v2682
        %s2684 = scalar_lea.vmem [#allocation2], 67
        %v2685 = vld [vmem:[%s2684] ss:$8 sm:$0xf]
        %v2686 = vld [vmem:[%s2684] ss:$8 sm:$0xf0]
        %v2687 = vor.u32 %v2685, %v2686
        %v2688 = vpack.c.bf16 %v2687, %v2683
        %s2689 = scalar_lea.vmem [#allocation3], 192
        %v2690 = vld [vmem:[%s2689] sm:$0xf]
        %v2691 = vld [vmem:[%s2689 + $0x4] sm:$0xf]
        %v2692 = vld [vmem:[%s2689 + $0x8] sm:$0xf]
        %v2693 = vld [vmem:[%s2689 + $0xc] sm:$0xf]
        %v2694 = vld [vmem:[%s2689 + $0x10] sm:$0xf]
        %v2695 = vld [vmem:[%s2689 + $0x14] sm:$0xf]
        %v2696 = vld [vmem:[%s2689 + $0x18] sm:$0xf]
        %v2697 = vld [vmem:[%s2689 + $0x1c] sm:$0xf]
        %v2698 = vld [vmem:[%s2689 + $0x20] sm:$0xf]
        %v2699 = vld [vmem:[%s2689 + $0x24] sm:$0xf]
        %v2700 = vld [vmem:[%s2689 + $0x28] sm:$0xf]
        %v2701 = vld [vmem:[%s2689 + $0x2c] sm:$0xf]
        %v2702 = vld [vmem:[%s2689 + $0x30] sm:$0xf]
        %v2703 = vld [vmem:[%s2689 + $0x34] sm:$0xf]
        %v2704 = vld [vmem:[%s2689 + $0x38] sm:$0xf]
        %v2705 = vld [vmem:[%s2689 + $0x3c] sm:$0xf]
        %v2722 = vunpack.c.l.b16 %v2690
        %v2723 = vunpack.c.l.b16 %v2691
        %v2724 = vunpack.c.l.b16 %v2692
        %v2725 = vunpack.c.l.b16 %v2693
        %v2726 = vunpack.c.l.b16 %v2694
        %v2727 = vunpack.c.l.b16 %v2695
        %v2728 = vunpack.c.l.b16 %v2696
        %v2729 = vunpack.c.l.b16 %v2697
        %v2730 = vunpack.c.l.b16 %v2698
        %v2731 = vunpack.c.l.b16 %v2699
        %v2732 = vunpack.c.l.b16 %v2700
        %v2733 = vunpack.c.l.b16 %v2701
        %v2734 = vunpack.c.l.b16 %v2702
        %v2735 = vunpack.c.l.b16 %v2703
        %v2736 = vunpack.c.l.b16 %v2704
        %v2737 = vunpack.c.l.b16 %v2705
        %v2738 = vpack.c.b16 %v2723, %v2722
        %v2739 = vpack.c.b16 %v2725, %v2724
        %v2740 = vpack.c.b16 %v2727, %v2726
        %v2741 = vpack.c.b16 %v2729, %v2728
        %v2742 = vpack.c.b16 %v2731, %v2730
        %v2743 = vpack.c.b16 %v2733, %v2732
        %v2744 = vpack.c.b16 %v2735, %v2734
        %v2745 = vpack.c.b16 %v2737, %v2736
        %2754 = vmatpush.bf16.msra.mxu0 %v2745
        %2755 = vmatpush.bf16.msra.mxu0 %v2744
        %2756 = vmatpush.bf16.msra.mxu0 %v2743
        %2757 = vmatpush.bf16.msra.mxu0 %v2742
        %2758 = vmatpush.bf16.msra.mxu0 %v2741
        %2759 = vmatpush.bf16.msra.mxu0 %v2740
        %2760 = vmatpush.bf16.msra.mxu0 %v2739
        %2761 = vmatpush.bf16.msra.mxu0 %v2738
        %2762 = vmatmul.bf16.gmra.mxu0 %v2688
        %v2763 = vpop.f32.mrf.mxu0
        %v2764 = vadd.f32 0.0, %v2763
        %v2765 = vpop.f32.mrf.mxu0
        %v2766 = vadd.f32 0.0, %v2765
        %2767 = vdwg.mxu0
        %v2768 = vadd.f32 %v2678, %v2764
        %v2769 = vadd.f32 %v2679, %v2766
        %s2770 = scalar_lea.vmem [#allocation2], 4
        %v2771 = vld [vmem:[%s2770] ss:$8 sm:$0xf]
        %v2772 = vld [vmem:[%s2770] ss:$8 sm:$0xf0]
        %v2773 = vor.u32 %v2771, %v2772
        %s2774 = scalar_lea.vmem [#allocation2], 68
        %v2775 = vld [vmem:[%s2774] ss:$8 sm:$0xf]
        %v2776 = vld [vmem:[%s2774] ss:$8 sm:$0xf0]
        %v2777 = vor.u32 %v2775, %v2776
        %v2778 = vpack.c.bf16 %v2777, %v2773
        %s2779 = scalar_lea.vmem [#allocation3], 256
        %v2780 = vld [vmem:[%s2779] sm:$0xf]
        %v2781 = vld [vmem:[%s2779 + $0x4] sm:$0xf]
        %v2782 = vld [vmem:[%s2779 + $0x8] sm:$0xf]
        %v2783 = vld [vmem:[%s2779 + $0xc] sm:$0xf]
        %v2784 = vld [vmem:[%s2779 + $0x10] sm:$0xf]
        %v2785 = vld [vmem:[%s2779 + $0x14] sm:$0xf]
        %v2786 = vld [vmem:[%s2779 + $0x18] sm:$0xf]
        %v2787 = vld [vmem:[%s2779 + $0x1c] sm:$0xf]
        %v2788 = vld [vmem:[%s2779 + $0x20] sm:$0xf]
        %v2789 = vld [vmem:[%s2779 + $0x24] sm:$0xf]
        %v2790 = vld [vmem:[%s2779 + $0x28] sm:$0xf]
        %v2791 = vld [vmem:[%s2779 + $0x2c] sm:$0xf]
        %v2792 = vld [vmem:[%s2779 + $0x30] sm:$0xf]
        %v2793 = vld [vmem:[%s2779 + $0x34] sm:$0xf]
        %v2794 = vld [vmem:[%s2779 + $0x38] sm:$0xf]
        %v2795 = vld [vmem:[%s2779 + $0x3c] sm:$0xf]
        %v2812 = vunpack.c.l.b16 %v2780
        %v2813 = vunpack.c.l.b16 %v2781
        %v2814 = vunpack.c.l.b16 %v2782
        %v2815 = vunpack.c.l.b16 %v2783
        %v2816 = vunpack.c.l.b16 %v2784
        %v2817 = vunpack.c.l.b16 %v2785
        %v2818 = vunpack.c.l.b16 %v2786
        %v2819 = vunpack.c.l.b16 %v2787
        %v2820 = vunpack.c.l.b16 %v2788
        %v2821 = vunpack.c.l.b16 %v2789
        %v2822 = vunpack.c.l.b16 %v2790
        %v2823 = vunpack.c.l.b16 %v2791
        %v2824 = vunpack.c.l.b16 %v2792
        %v2825 = vunpack.c.l.b16 %v2793
        %v2826 = vunpack.c.l.b16 %v2794
        %v2827 = vunpack.c.l.b16 %v2795
        %v2828 = vpack.c.b16 %v2813, %v2812
        %v2829 = vpack.c.b16 %v2815, %v2814
        %v2830 = vpack.c.b16 %v2817, %v2816
        %v2831 = vpack.c.b16 %v2819, %v2818
        %v2832 = vpack.c.b16 %v2821, %v2820
        %v2833 = vpack.c.b16 %v2823, %v2822
        %v2834 = vpack.c.b16 %v2825, %v2824
        %v2835 = vpack.c.b16 %v2827, %v2826
        %2844 = vmatpush.bf16.msra.mxu0 %v2835
        %2845 = vmatpush.bf16.msra.mxu0 %v2834
        %2846 = vmatpush.bf16.msra.mxu0 %v2833
        %2847 = vmatpush.bf16.msra.mxu0 %v2832
        %2848 = vmatpush.bf16.msra.mxu0 %v2831
        %2849 = vmatpush.bf16.msra.mxu0 %v2830
        %2850 = vmatpush.bf16.msra.mxu0 %v2829
        %2851 = vmatpush.bf16.msra.mxu0 %v2828
        %2852 = vmatmul.bf16.gmra.mxu0 %v2778
        %v2853 = vpop.f32.mrf.mxu0
        %v2854 = vadd.f32 0.0, %v2853
        %v2855 = vpop.f32.mrf.mxu0
        %v2856 = vadd.f32 0.0, %v2855
        %2857 = vdwg.mxu0
        %v2858 = vadd.f32 %v2768, %v2854
        %v2859 = vadd.f32 %v2769, %v2856
        %s2860 = scalar_lea.vmem [#allocation2], 5
        %v2861 = vld [vmem:[%s2860] ss:$8 sm:$0xf]
        %v2862 = vld [vmem:[%s2860] ss:$8 sm:$0xf0]
        %v2863 = vor.u32 %v2861, %v2862
        %s2864 = scalar_lea.vmem [#allocation2], 69
        %v2865 = vld [vmem:[%s2864] ss:$8 sm:$0xf]
        %v2866 = vld [vmem:[%s2864] ss:$8 sm:$0xf0]
        %v2867 = vor.u32 %v2865, %v2866
        %v2868 = vpack.c.bf16 %v2867, %v2863
        %s2869 = scalar_lea.vmem [#allocation3], 320
        %v2870 = vld [vmem:[%s2869] sm:$0xf]
        %v2871 = vld [vmem:[%s2869 + $0x4] sm:$0xf]
        %v2872 = vld [vmem:[%s2869 + $0x8] sm:$0xf]
        %v2873 = vld [vmem:[%s2869 + $0xc] sm:$0xf]
        %v2874 = vld [vmem:[%s2869 + $0x10] sm:$0xf]
        %v2875 = vld [vmem:[%s2869 + $0x14] sm:$0xf]
        %v2876 = vld [vmem:[%s2869 + $0x18] sm:$0xf]
        %v2877 = vld [vmem:[%s2869 + $0x1c] sm:$0xf]
        %v2878 = vld [vmem:[%s2869 + $0x20] sm:$0xf]
        %v2879 = vld [vmem:[%s2869 + $0x24] sm:$0xf]
        %v2880 = vld [vmem:[%s2869 + $0x28] sm:$0xf]
        %v2881 = vld [vmem:[%s2869 + $0x2c] sm:$0xf]
        %v2882 = vld [vmem:[%s2869 + $0x30] sm:$0xf]
        %v2883 = vld [vmem:[%s2869 + $0x34] sm:$0xf]
        %v2884 = vld [vmem:[%s2869 + $0x38] sm:$0xf]
        %v2885 = vld [vmem:[%s2869 + $0x3c] sm:$0xf]
        %v2902 = vunpack.c.l.b16 %v2870
        %v2903 = vunpack.c.l.b16 %v2871
        %v2904 = vunpack.c.l.b16 %v2872
        %v2905 = vunpack.c.l.b16 %v2873
        %v2906 = vunpack.c.l.b16 %v2874
        %v2907 = vunpack.c.l.b16 %v2875
        %v2908 = vunpack.c.l.b16 %v2876
        %v2909 = vunpack.c.l.b16 %v2877
        %v2910 = vunpack.c.l.b16 %v2878
        %v2911 = vunpack.c.l.b16 %v2879
        %v2912 = vunpack.c.l.b16 %v2880
        %v2913 = vunpack.c.l.b16 %v2881
        %v2914 = vunpack.c.l.b16 %v2882
        %v2915 = vunpack.c.l.b16 %v2883
        %v2916 = vunpack.c.l.b16 %v2884
        %v2917 = vunpack.c.l.b16 %v2885
        %v2918 = vpack.c.b16 %v2903, %v2902
        %v2919 = vpack.c.b16 %v2905, %v2904
        %v2920 = vpack.c.b16 %v2907, %v2906
        %v2921 = vpack.c.b16 %v2909, %v2908
        %v2922 = vpack.c.b16 %v2911, %v2910
        %v2923 = vpack.c.b16 %v2913, %v2912
        %v2924 = vpack.c.b16 %v2915, %v2914
        %v2925 = vpack.c.b16 %v2917, %v2916
        %2934 = vmatpush.bf16.msra.mxu0 %v2925
        %2935 = vmatpush.bf16.msra.mxu0 %v2924
        %2936 = vmatpush.bf16.msra.mxu0 %v2923
        %2937 = vmatpush.bf16.msra.mxu0 %v2922
        %2938 = vmatpush.bf16.msra.mxu0 %v2921
        %2939 = vmatpush.bf16.msra.mxu0 %v2920
        %2940 = vmatpush.bf16.msra.mxu0 %v2919
        %2941 = vmatpush.bf16.msra.mxu0 %v2918
        %2942 = vmatmul.bf16.gmra.mxu0 %v2868
        %v2943 = vpop.f32.mrf.mxu0
        %v2944 = vadd.f32 0.0, %v2943
        %v2945 = vpop.f32.mrf.mxu0
        %v2946 = vadd.f32 0.0, %v2945
        %2947 = vdwg.mxu0
        %v2948 = vadd.f32 %v2858, %v2944
        %v2949 = vadd.f32 %v2859, %v2946
        %s2950 = scalar_lea.vmem [#allocation2], 6
        %v2951 = vld [vmem:[%s2950] ss:$8 sm:$0xf]
        %v2952 = vld [vmem:[%s2950] ss:$8 sm:$0xf0]
        %v2953 = vor.u32 %v2951, %v2952
        %s2954 = scalar_lea.vmem [#allocation2], 70
        %v2955 = vld [vmem:[%s2954] ss:$8 sm:$0xf]
        %v2956 = vld [vmem:[%s2954] ss:$8 sm:$0xf0]
        %v2957 = vor.u32 %v2955, %v2956
        %v2958 = vpack.c.bf16 %v2957, %v2953
        %s2959 = scalar_lea.vmem [#allocation3], 384
        %v2960 = vld [vmem:[%s2959] sm:$0xf]
        %v2961 = vld [vmem:[%s2959 + $0x4] sm:$0xf]
        %v2962 = vld [vmem:[%s2959 + $0x8] sm:$0xf]
        %v2963 = vld [vmem:[%s2959 + $0xc] sm:$0xf]
        %v2964 = vld [vmem:[%s2959 + $0x10] sm:$0xf]
        %v2965 = vld [vmem:[%s2959 + $0x14] sm:$0xf]
        %v2966 = vld [vmem:[%s2959 + $0x18] sm:$0xf]
        %v2967 = vld [vmem:[%s2959 + $0x1c] sm:$0xf]
        %v2968 = vld [vmem:[%s2959 + $0x20] sm:$0xf]
        %v2969 = vld [vmem:[%s2959 + $0x24] sm:$0xf]
        %v2970 = vld [vmem:[%s2959 + $0x28] sm:$0xf]
        %v2971 = vld [vmem:[%s2959 + $0x2c] sm:$0xf]
        %v2972 = vld [vmem:[%s2959 + $0x30] sm:$0xf]
        %v2973 = vld [vmem:[%s2959 + $0x34] sm:$0xf]
        %v2974 = vld [vmem:[%s2959 + $0x38] sm:$0xf]
        %v2975 = vld [vmem:[%s2959 + $0x3c] sm:$0xf]
        %v2992 = vunpack.c.l.b16 %v2960
        %v2993 = vunpack.c.l.b16 %v2961
        %v2994 = vunpack.c.l.b16 %v2962
        %v2995 = vunpack.c.l.b16 %v2963
        %v2996 = vunpack.c.l.b16 %v2964
        %v2997 = vunpack.c.l.b16 %v2965
        %v2998 = vunpack.c.l.b16 %v2966
        %v2999 = vunpack.c.l.b16 %v2967
        %v3000 = vunpack.c.l.b16 %v2968
        %v3001 = vunpack.c.l.b16 %v2969
        %v3002 = vunpack.c.l.b16 %v2970
        %v3003 = vunpack.c.l.b16 %v2971
        %v3004 = vunpack.c.l.b16 %v2972
        %v3005 = vunpack.c.l.b16 %v2973
        %v3006 = vunpack.c.l.b16 %v2974
        %v3007 = vunpack.c.l.b16 %v2975
        %v3008 = vpack.c.b16 %v2993, %v2992
        %v3009 = vpack.c.b16 %v2995, %v2994
        %v3010 = vpack.c.b16 %v2997, %v2996
        %v3011 = vpack.c.b16 %v2999, %v2998
        %v3012 = vpack.c.b16 %v3001, %v3000
        %v3013 = vpack.c.b16 %v3003, %v3002
        %v3014 = vpack.c.b16 %v3005, %v3004
        %v3015 = vpack.c.b16 %v3007, %v3006
        %3024 = vmatpush.bf16.msra.mxu0 %v3015
        %3025 = vmatpush.bf16.msra.mxu0 %v3014
        %3026 = vmatpush.bf16.msra.mxu0 %v3013
        %3027 = vmatpush.bf16.msra.mxu0 %v3012
        %3028 = vmatpush.bf16.msra.mxu0 %v3011
        %3029 = vmatpush.bf16.msra.mxu0 %v3010
        %3030 = vmatpush.bf16.msra.mxu0 %v3009
        %3031 = vmatpush.bf16.msra.mxu0 %v3008
        %3032 = vmatmul.bf16.gmra.mxu0 %v2958
        %v3033 = vpop.f32.mrf.mxu0
        %v3034 = vadd.f32 0.0, %v3033
        %v3035 = vpop.f32.mrf.mxu0
        %v3036 = vadd.f32 0.0, %v3035
        %3037 = vdwg.mxu0
        %v3038 = vadd.f32 %v2948, %v3034
        %v3039 = vadd.f32 %v2949, %v3036
        %s3040 = scalar_lea.vmem [#allocation2], 7
        %v3041 = vld [vmem:[%s3040] ss:$8 sm:$0xf]
        %v3042 = vld [vmem:[%s3040] ss:$8 sm:$0xf0]
        %v3043 = vor.u32 %v3041, %v3042
        %s3044 = scalar_lea.vmem [#allocation2], 71
        %v3045 = vld [vmem:[%s3044] ss:$8 sm:$0xf]
        %v3046 = vld [vmem:[%s3044] ss:$8 sm:$0xf0]
        %v3047 = vor.u32 %v3045, %v3046
        %v3048 = vpack.c.bf16 %v3047, %v3043
        %s3049 = scalar_lea.vmem [#allocation3], 448
        %v3050 = vld [vmem:[%s3049] sm:$0xf]
        %v3051 = vld [vmem:[%s3049 + $0x4] sm:$0xf]
        %v3052 = vld [vmem:[%s3049 + $0x8] sm:$0xf]
        %v3053 = vld [vmem:[%s3049 + $0xc] sm:$0xf]
        %v3054 = vld [vmem:[%s3049 + $0x10] sm:$0xf]
        %v3055 = vld [vmem:[%s3049 + $0x14] sm:$0xf]
        %v3056 = vld [vmem:[%s3049 + $0x18] sm:$0xf]
        %v3057 = vld [vmem:[%s3049 + $0x1c] sm:$0xf]
        %v3058 = vld [vmem:[%s3049 + $0x20] sm:$0xf]
        %v3059 = vld [vmem:[%s3049 + $0x24] sm:$0xf]
        %v3060 = vld [vmem:[%s3049 + $0x28] sm:$0xf]
        %v3061 = vld [vmem:[%s3049 + $0x2c] sm:$0xf]
        %v3062 = vld [vmem:[%s3049 + $0x30] sm:$0xf]
        %v3063 = vld [vmem:[%s3049 + $0x34] sm:$0xf]
        %v3064 = vld [vmem:[%s3049 + $0x38] sm:$0xf]
        %v3065 = vld [vmem:[%s3049 + $0x3c] sm:$0xf]
        %v3082 = vunpack.c.l.b16 %v3050
        %v3083 = vunpack.c.l.b16 %v3051
        %v3084 = vunpack.c.l.b16 %v3052
        %v3085 = vunpack.c.l.b16 %v3053
        %v3086 = vunpack.c.l.b16 %v3054
        %v3087 = vunpack.c.l.b16 %v3055
        %v3088 = vunpack.c.l.b16 %v3056
        %v3089 = vunpack.c.l.b16 %v3057
        %v3090 = vunpack.c.l.b16 %v3058
        %v3091 = vunpack.c.l.b16 %v3059
        %v3092 = vunpack.c.l.b16 %v3060
        %v3093 = vunpack.c.l.b16 %v3061
        %v3094 = vunpack.c.l.b16 %v3062
        %v3095 = vunpack.c.l.b16 %v3063
        %v3096 = vunpack.c.l.b16 %v3064
        %v3097 = vunpack.c.l.b16 %v3065
        %v3098 = vpack.c.b16 %v3083, %v3082
        %v3099 = vpack.c.b16 %v3085, %v3084
        %v3100 = vpack.c.b16 %v3087, %v3086
        %v3101 = vpack.c.b16 %v3089, %v3088
        %v3102 = vpack.c.b16 %v3091, %v3090
        %v3103 = vpack.c.b16 %v3093, %v3092
        %v3104 = vpack.c.b16 %v3095, %v3094
        %v3105 = vpack.c.b16 %v3097, %v3096
        %3114 = vmatpush.bf16.msra.mxu0 %v3105
        %3115 = vmatpush.bf16.msra.mxu0 %v3104
        %3116 = vmatpush.bf16.msra.mxu0 %v3103
        %3117 = vmatpush.bf16.msra.mxu0 %v3102
        %3118 = vmatpush.bf16.msra.mxu0 %v3101
        %3119 = vmatpush.bf16.msra.mxu0 %v3100
        %3120 = vmatpush.bf16.msra.mxu0 %v3099
        %3121 = vmatpush.bf16.msra.mxu0 %v3098
        %3122 = vmatmul.bf16.gmra.mxu0 %v3048
        %v3123 = vpop.f32.mrf.mxu0
        %v3124 = vadd.f32 0.0, %v3123
        %v3125 = vpop.f32.mrf.mxu0
        %v3126 = vadd.f32 0.0, %v3125
        %3127 = vdwg.mxu0
        %v3128 = vadd.f32 %v3038, %v3124
        %v3129 = vadd.f32 %v3039, %v3126
        %v3130 = vld [vmem:[%s6] sm:$0x1]
        %v3132 = vperm.slane %v3130, 0
        %v3134 = vadd.f32 %v3128, %v3132
        %v3135 = vadd.f32 %v3129, %v3132
        %v3136 = vmul.f32 %v3134, %v3134
        %v3137 = vmul.f32 %v3135, %v3135
        %3138 = vadd.xlane.f32.xlu0 %v3136
        %v3139 = vpop.xlane.xlu0 %3138
        %3140 = vadd.xlane.f32.xlu0 %v3137
        %v3141 = vpop.xlane.xlu0 %3140
        %v3142 = vmax.f32 %v3139, 1e-24
        %v3143 = vmax.f32 %v3141, 1e-24
        %v3144 = vrsqrt.pop %v3142
        %v3145 = vmul.f32 %v3144, %v3142
        %v3146 = vmul.f32 %v3145, %v3144
        %v3147 = vmul.f32 0.5, %v3146
        %v3148 = vsub.f32 1.5, %v3147
        %v3149 = vmul.f32 %v3144, %v3148
        %vm3150 = vweird.f32 %v3142
        %vm3151 = vweird.f32 %v3144
        %vm3152 = vmor %vm3150, %vm3151
        %v3153 = vsel %vm3152, %v3144, %v3149
        %v3154 = vrsqrt.pop %v3143
        %v3155 = vmul.f32 %v3154, %v3143
        %v3156 = vmul.f32 %v3155, %v3154
        %v3157 = vmul.f32 0.5, %v3156
        %v3158 = vsub.f32 1.5, %v3157
        %v3159 = vmul.f32 %v3154, %v3158
        %vm3160 = vweird.f32 %v3143
        %vm3161 = vweird.f32 %v3154
        %vm3162 = vmor %vm3160, %vm3161
        %v3163 = vsel %vm3162, %v3154, %v3159
        %v3164 = vmul.f32 %v3134, %v3153
        %v3165 = vmul.f32 %v3135, %v3163
        %3166 = vst [vmem:[%s305] sm:$0xff] %v3164
        %3167 = vst [vmem:[%s305 + $0x8] sm:$0xff] %v3165
        %s3168 = sand.u32 %s187, 1
        %s3169 = scalar_lea.sflag [#allocation5], %s3168
        %s3170 = sand.u32 %s187, 1
        %s3171 = smul.addr %s3170, 16
        %s3172 = scalar_lea.vmem [#allocation6], %s3171
        // Predicated region
        $region53: #{tpu_custom_call.1} parent=47 // pred_check
          %p3173 = pneg %p197
        $region54: #{tpu_custom_call.1} parent=47 // pred_check_branch
          %3175 = sbr.rel (%p3173) target = $region56
        $region55: #{tpu_custom_call.1} parent=47 // pred_region
          %s3176 = smul.u32 2, %s22
          %3178 = vsyncadd %s3169, 0
          %s3179 = smul.addr %s3176, 8
          %s3180 = scalar_lea.hbm %s7, %s3179
          %s3181 = sshll.u32 %s3172, 4
          %s3182 = int_to_ptr.vmem [resolvable:$true] %s3181
          %s3183 = sshll.u32 %s3180, 4
          %s3184 = int_to_ptr.hbm [resolvable:$true] %s3183
          %3189 = dma.vmem_to_hbm [thread:$0]  %s3182, 256, %s3184, %s3169, 128, 128, 8
        $region56: #{tpu_custom_call.1} parent=47 // pred_fallthru
          _
      $region48: #{tpu_custom_call.1} parent=5 // pred_fallthru
        _
      %p3190 = scmp.le.s32.totalorder 2, %s17
      // Predicated region
      $region57: #{tpu_custom_call.1} parent=5 // pred_check
        %p3191 = pneg %p3190
      $region58: #{tpu_custom_call.1} parent=5 // pred_check_branch
        %3193 = sbr.rel (%p3191) target = $region60
      $region59: #{tpu_custom_call.1} parent=5 // pred_region
        %s3194 = ssub.s32 %s17, 2
        // Predicated region
        $region61: #{tpu_custom_call.1} parent=59 // pred_check
          %p3195 = pneg %p203
        $region62: #{tpu_custom_call.1} parent=59 // pred_check_branch
          %3197 = sbr.rel (%p3195) target = $region64
        $region63: #{tpu_custom_call.1} parent=59 // pred_region
          %s3198 = sand.u32 %s188, 1
          %s3199 = scalar_lea.sflag [#allocation5], %s3198
          %s3200 = sand.u32 %s188, 1
          %s3201 = smul.addr %s3200, 16
          %s3202 = scalar_lea.vmem [#allocation6], %s3201
          %3204 = dma.done %s3199, 256
        $region64: #{tpu_custom_call.1} parent=59 // pred_fallthru
          _
      $region60: #{tpu_custom_call.1} parent=5 // pred_fallthru
        _
    $region6: #{tpu_custom_call.1} parent=1 // loop_footer
      %s21 = sadd.s32 1, %s17
    $region7: #{tpu_custom_call.1} parent=1 // loop_footer_branch
      %16 = sbr.rel target = $region3
    $region8: #{tpu_custom_call.1} parent=1 // loop_exit
      _
    %3205 = vsyncpa [#allocation4], 1
    %s3206 = scalar_lea.sflag [#allocation4], 1
    %3207 = vsyncpa %s3206, 1
    %3208 = vsyncpa [#allocation5], 1
    %s3209 = scalar_lea.sflag [#allocation5], 1
    %3210 = vsyncpa %s3209, 1

</llo_original>
